<compile_context>
chip_gen: v5e
topology: v5e:2x2
jax: 0.10.0
libtpu: 0.0.40
codegen_flags: <defaults>
</compile_context>

<pallas_src>
import functools

import jax
import jax.numpy as jnp
import numpy as np
from jax import lax
from jax.experimental import pallas as pl
from jax.experimental.pallas import tpu as pltpu

NUM_CLASSES = 10       # args.num_classes
_ROW_STRIDE = 80       # per-image row stride of the internal block-grid layout
_LANE = 128            # lane padding for the MLP head / final output


# ---------------------------------------------------------------------------
# Host-side layout glue (cheap XLA ops / trace-time numpy, no HBM blow-up)
# ---------------------------------------------------------------------------
def _space_to_depth4_flat(x):
    """(N, 3, 32, 32) NCHW -> (N*80, 48) block-grid layout.

    Row p = R*8 + S (8x8 grid of 4x4 pixel blocks; rows 64..79 zero pad),
    column e = (u*4 + v)*3 + c for pixel (4R+u, 4S+v), channel c.
    """
    n = x.shape[0]
    t = x.transpose(0, 2, 3, 1)                    # NHWC
    t = t.reshape(n, 8, 4, 8, 4, 3)                # (n, R, u, S, v, c)
    t = t.transpose(0, 1, 3, 2, 4, 5)              # (n, R, S, u, v, c)
    t = t.reshape(n, 64, 48)
    t = jnp.pad(t, ((0, 0), (0, _ROW_STRIDE - 64), (0, 0)))
    return t.reshape(n * _ROW_STRIDE, 48)


def _conv1_effective(w):
    """conv1 weights (6,3,5,5) -> (192, 96) fused conv+pool matrix.

    Patch index k = (A*2+B)*48 + (u*4+v)*3 + ci   (2x2 window of 4x4 blocks)
    Column    col = (off*4 + sub)*6 + co           off = pool offset (dy,dx),
                                                   sub = pooled sub-position (a,b)
    """
    idx = np.zeros((192, 96), np.int32)
    msk = np.zeros((192, 96), np.float32)
    for a in range(2):
        for b in range(2):
            for dy in range(2):
                for dx in range(2):
                    for co in range(6):
                        col = ((dy * 2 + dx) * 4 + (a * 2 + b)) * 6 + co
                        for ci in range(3):
                            for ky in range(5):
                                for kx in range(5):
                                    yy = 2 * a + dy + ky
                                    xx = 2 * b + dx + kx
                                    ta, u = divmod(yy, 4)
                                    tb, v = divmod(xx, 4)
                                    k = (ta * 2 + tb) * 48 + (u * 4 + v) * 3 + ci
                                    idx[k, col] = ((co * 3 + ci) * 5 + ky) * 5 + kx
                                    msk[k, col] = 1.0
    return w.reshape(-1)[idx] * msk


def _conv2_effective(w):
    """conv2 weights (16,6,5,5) -> (216, 64) fused conv+pool matrix.

    Patch index k = (a*3+b)*24 + (a2*2+b2)*6 + ki  (3x3 window of pooled blocks)
    Column    col = off*16 + ko                    off = pool offset (dy,dx)
    """
    idx = np.zeros((216, 64), np.int32)
    msk = np.zeros((216, 64), np.float32)
    for dy in range(2):
        for dx in range(2):
            for ko in range(16):
                col = (dy * 2 + dx) * 16 + ko
                for ki in range(6):
                    for ky in range(5):
                        for kx in range(5):
                            a, a2 = divmod(dy + ky, 2)
                            b, b2 = divmod(dx + kx, 2)
                            k = (a * 3 + b) * 24 + (a2 * 2 + b2) * 6 + ki
                            idx[k, col] = ((ko * 6 + ki) * 5 + ky) * 5 + kx
                            msk[k, col] = 1.0
    return w.reshape(-1)[idx] * msk


def _pad2(w, rows, cols):
    return jnp.pad(w, ((0, rows - w.shape[0]), (0, cols - w.shape[1])))


def _pad_bias(b, cols):
    return jnp.pad(b, (0, cols - b.shape[0])).reshape(1, cols).astype(jnp.float32)


def _fc1_packed(w):
    # torch flattens NCHW -> rows ordered (c, r, s); kernel produces (r, s, c).
    wp = w.reshape(16, 5, 5, -1).transpose(1, 2, 0, 3).reshape(400, -1)
    return _pad2(wp, 400, _LANE)


# ---------------------------------------------------------------------------
# The fused kernel: conv1+pool -> conv2+pool -> flatten -> fc1/fc2/fc3 -> log_softmax
# ---------------------------------------------------------------------------
def _fused_cnn_kernel(x_ref, w1_ref, b1_ref, w2_ref, b2_ref,
                      wf1_ref, bf1_ref, wf2_ref, bf2_ref, wf3_ref, bf3_ref,
                      o_ref, p1_ref, p2_ref, f_ref,
                      *, tile_n, compute_dtype):
    f32 = jnp.float32
    cdt = compute_dtype
    l1 = _ROW_STRIDE * tile_n - 16     # rows of conv1+pool output (block grid, 7x7 valid)
    l2 = _ROW_STRIDE * tile_n - 40     # rows of conv2+pool output (5x5 valid)
    l3 = _ROW_STRIDE * tile_n - 76     # rows of the flattened-feature grid

    # ---- conv1 (5x5, 3->6) + bias + ReLU + 2x2 maxpool -----------------------
    # im2col in VMEM scratch: 2x2 window of 4x4-space-to-depth blocks, K = 192.
    for t, off in enumerate((0, 1, 8, 9)):
        p1_ref[:, 48 * t:48 * (t + 1)] = x_ref[off:off + l1, :]
    z1 = jnp.dot(p1_ref[...], w1_ref[...], preferred_element_type=f32)   # (l1, 96)
    # one merged matmul covered all 4 pool offsets -> max them, then bias+ReLU
    y1 = jnp.maximum(jnp.maximum(z1[:, 0:24], z1[:, 24:48]),
                     jnp.maximum(z1[:, 48:72], z1[:, 72:96]))
    y1 = jnp.maximum(y1 + b1_ref[...], 0.0)                              # (l1, 24) f32

    # ---- conv2 (5x5, 6->16) + bias + ReLU + 2x2 maxpool ----------------------
    # im2col: 3x3 window of pooled blocks, K = 216.
    t = 0
    for a in range(3):
        for b in range(3):
            off = a * 8 + b
            p2_ref[:, 24 * t:24 * (t + 1)] = y1[off:off + l2, :].astype(cdt)
            t += 1
    z2 = jnp.dot(p2_ref[...], w2_ref[...], preferred_element_type=f32)   # (l2, 64)
    y2 = jnp.maximum(jnp.maximum(z2[:, 0:16], z2[:, 16:32]),
                     jnp.maximum(z2[:, 32:48], z2[:, 48:64]))
    y2 = jnp.maximum(y2 + b2_ref[...], 0.0)                              # (l2, 16) f32

    # ---- flatten: gather the 5x5 spatial grid of each image into 400 lanes ---
    t = 0
    for r in range(5):
        for s in range(5):
            off = r * 8 + s
            f_ref[:, 16 * t:16 * (t + 1)] = y2[off:off + l3, :].astype(cdt)
            t += 1
    rows = lax.broadcasted_iota(jnp.int32, (tile_n, l3), 1)
    imgs = lax.broadcasted_iota(jnp.int32, (tile_n, l3), 0)
    sel = (rows == imgs * _ROW_STRIDE).astype(cdt)          # one-hot row picker
    flat = jnp.dot(sel, f_ref[...], preferred_element_type=f32)          # (tile_n, 400)

    # ---- MLP head: fc1+ReLU -> fc2+ReLU -> fc3 -> log_softmax (padded lanes) -
    h = jnp.dot(flat.astype(cdt), wf1_ref[...], preferred_element_type=f32) + bf1_ref[...]
    h = jnp.maximum(h, 0.0)
    h = jnp.dot(h.astype(cdt), wf2_ref[...], preferred_element_type=f32) + bf2_ref[...]
    h = jnp.maximum(h, 0.0)
    logits = jnp.dot(h.astype(cdt), wf3_ref[...], preferred_element_type=f32) + bf3_ref[...]

    lg = logits[:, :NUM_CLASSES]                            # real classes only
    mx = jnp.max(lg, axis=1, keepdims=True)
    lse = jnp.log(jnp.sum(jnp.exp(lg - mx), axis=1, keepdims=True)) + mx
    o_ref[...] = (logits - lse).astype(o_ref.dtype)


# ---------------------------------------------------------------------------
# Wrapper: single pallas_call, grid over batch tiles
# ---------------------------------------------------------------------------
def cnn_custom_forward(x, params, *, tile_n=8, compute_dtype=jnp.bfloat16):
    n = x.shape[0]
    tile_n = max(1, min(tile_n, n))
    n_tiles = pl.cdiv(n, tile_n)
    n_pad = n_tiles * tile_n
    if n_pad != n:
        x = jnp.pad(x, ((0, n_pad - n), (0, 0), (0, 0), (0, 0)))

    xf = _space_to_depth4_flat(x).astype(compute_dtype)                 # (n_pad*80, 48)
    w1e = _conv1_effective(params["conv1_w"]).astype(compute_dtype)     # (192, 96)
    b1t = jnp.tile(params["conv1_b"], 4).reshape(1, 24).astype(jnp.float32)
    w2e = _conv2_effective(params["conv2_w"]).astype(compute_dtype)     # (216, 64)
    b2t = params["conv2_b"].reshape(1, 16).astype(jnp.float32)
    wf1 = _fc1_packed(params["fc1_w"]).astype(compute_dtype)            # (400, 128)
    bf1 = _pad_bias(params["fc1_b"], _LANE)
    wf2 = _pad2(params["fc2_w"], _LANE, _LANE).astype(compute_dtype)    # (128, 128)
    bf2 = _pad_bias(params["fc2_b"], _LANE)
    wf3 = _pad2(params["fc3_w"], _LANE, _LANE).astype(compute_dtype)    # (128, 128)
    bf3 = _pad_bias(params["fc3_b"], _LANE)

    rows_per_tile = _ROW_STRIDE * tile_n
    l1 = rows_per_tile - 16
    l2 = rows_per_tile - 40
    l3 = rows_per_tile - 76

    kernel = functools.partial(_fused_cnn_kernel, tile_n=tile_n,
                               compute_dtype=compute_dtype)

    flops = 2 * n_tiles * (l1 * 192 * 96 + l2 * 216 * 64
                           + tile_n * (l3 * 400 + 400 * _LANE + 2 * _LANE * _LANE))
    bytes_accessed = int(xf.size * xf.dtype.itemsize
                         + sum(a.size * a.dtype.itemsize
                               for a in (w1e, w2e, wf1, wf2, wf3))
                         + n_pad * _LANE * 4)

    out = pl.pallas_call(
        kernel,
        out_shape=jax.ShapeDtypeStruct((n_tiles, tile_n, _LANE), jnp.float32),
        grid_spec=pltpu.PrefetchScalarGridSpec(
            num_scalar_prefetch=0,
            grid=(n_tiles,),
            in_specs=[
                pl.BlockSpec((rows_per_tile, 48), lambda i: (i, 0)),     # input tile
                pl.BlockSpec((192, 96), lambda i: (0, 0)),               # conv1 (fused)
                pl.BlockSpec((1, 24), lambda i: (0, 0)),
                pl.BlockSpec((216, 64), lambda i: (0, 0)),               # conv2 (fused)
                pl.BlockSpec((1, 16), lambda i: (0, 0)),
                pl.BlockSpec((400, _LANE), lambda i: (0, 0)),            # fc1
                pl.BlockSpec((1, _LANE), lambda i: (0, 0)),
                pl.BlockSpec((_LANE, _LANE), lambda i: (0, 0)),          # fc2
                pl.BlockSpec((1, _LANE), lambda i: (0, 0)),
                pl.BlockSpec((_LANE, _LANE), lambda i: (0, 0)),          # fc3
                pl.BlockSpec((1, _LANE), lambda i: (0, 0)),
            ],
            out_specs=pl.BlockSpec((None, tile_n, _LANE), lambda i: (i, 0, 0)),
            scratch_shapes=[
                pltpu.VMEM((l1, 192), compute_dtype),   # conv1 im2col patches
                pltpu.VMEM((l2, 216), compute_dtype),   # conv2 im2col patches
                pltpu.VMEM((l3, 400), compute_dtype),   # flattened features
            ],
        ),
        compiler_params=pltpu.CompilerParams(
            dimension_semantics=("parallel",),
            vmem_limit_bytes=32 * 1024 * 1024,
        ),
        cost_estimate=pl.CostEstimate(
            flops=int(flops),
            transcendentals=int(n_pad * (NUM_CLASSES + 1)),
            bytes_accessed=bytes_accessed),
    )(xf, w1e, b1t, w2e, b2t, wf1, bf1, wf2, bf2, wf3, bf3)

    return out.reshape(n_pad, _LANE)[:n, :NUM_CLASSES]


# ---------------------------------------------------------------------------
# Pure-JAX reference (mirrors the PyTorch forward exactly) for validation
# ---------------------------------------------------------------------------
def reference_forward(x, params):
    def conv(z, w, b):
        y = lax.conv_general_dilated(z, w, (1, 1), "VALID",
                                     dimension_numbers=("NCHW", "OIHW", "NCHW"))
        return y + b.reshape(1, -1, 1, 1)

    def maxpool2(z):
        return lax.reduce_window(z, -jnp.inf, lax.max,
                                 (1, 1, 2, 2), (1, 1, 2, 2), "VALID")

    h = maxpool2(jax.nn.relu(conv(x, params["conv1_w"], params["conv1_b"])))
    h = maxpool2(jax.nn.relu(conv(h, params["conv2_w"], params["conv2_b"])))
    h = h.reshape(h.shape[0], -1)
    h = jax.nn.relu(h @ params["fc1_w"] + params["fc1_b"])
    h = jax.nn.relu(h @ params["fc2_w"] + params["fc2_b"])
    logits = h @ params["fc3_w"] + params["fc3_b"]
    return jax.nn.log_softmax(logits, axis=1)


def init_params(key):
    ks = jax.random.split(key, 10)
    s = 0.05
    return {
        "conv1_w": s * jax.random.normal(ks[0], (6, 3, 5, 5), jnp.float32),
        "conv1_b": s * jax.random.normal(ks[1], (6,), jnp.float32),
        "conv2_w": s * jax.random.normal(ks[2], (16, 6, 5, 5), jnp.float32),
        "conv2_b": s * jax.random.normal(ks[3], (16,), jnp.float32),
        # FC weights stored as (in, out) == torch weight.T
        "fc1_w": s * jax.random.normal(ks[4], (16 * 5 * 5, 120), jnp.float32),
        "fc1_b": s * jax.random.normal(ks[5], (120,), jnp.float32),
        "fc2_w": s * jax.random.normal(ks[6], (120, 84), jnp.float32),
        "fc2_b": s * jax.random.normal(ks[7], (84,), jnp.float32),
        "fc3_w": s * jax.random.normal(ks[8], (84, NUM_CLASSES), jnp.float32),
        "fc3_b": s * jax.random.normal(ks[9], (NUM_CLASSES,), jnp.float32),
    }


if __name__ == "__main__":
    key = jax.random.PRNGKey(0)
    pkey, xkey = jax.random.split(key)
    params = init_params(pkey)
    # 5x5 valid convs + two 2x2 pools -> 16*5*5 features force 32x32 inputs.
    x = jax.random.normal(xkey, (4, 3, 32, 32), jnp.float32)

    fwd = jax.jit(cnn_custom_forward, static_argnames=("tile_n", "compute_dtype"))
    ref = jax.block_until_ready(reference_forward(x, params))

    # f32 path (multi-step grid: 4 images, tile of 2) -- validates the fused plumbing
    out_f32 = jax.block_until_ready(
        fwd(x, params, tile_n=2, compute_dtype=jnp.float32))
    assert out_f32.shape == (4, NUM_CLASSES)
    np.testing.assert_allclose(np.asarray(out_f32), np.asarray(ref),
                               atol=2e-2, rtol=2e-2)

    # default fast path: bf16 MXU operands, f32 accumulation
    out_bf16 = jax.block_until_ready(
        fwd(x, params, tile_n=2, compute_dtype=jnp.bfloat16))
    assert out_bf16.shape == (4, NUM_CLASSES)
    np.testing.assert_allclose(np.asarray(out_bf16), np.asarray(ref),
                               atol=3e-2, rtol=3e-2)

    print("KERNEL_OK")
</pallas_src>

<mosaic_0001>
module attributes {stable_mosaic.version = 11 : i64} {
  func.func @_fused_cnn_kernel(%arg0: i32, %arg1: memref<160x48xf32, #tpu.memory_space<vmem>>, %arg2: memref<192x96xf32, #tpu.memory_space<vmem>>, %arg3: memref<1x24xf32, #tpu.memory_space<vmem>>, %arg4: memref<216x64xf32, #tpu.memory_space<vmem>>, %arg5: memref<1x16xf32, #tpu.memory_space<vmem>>, %arg6: memref<400x128xf32, #tpu.memory_space<vmem>>, %arg7: memref<1x128xf32, #tpu.memory_space<vmem>>, %arg8: memref<128x128xf32, #tpu.memory_space<vmem>>, %arg9: memref<1x128xf32, #tpu.memory_space<vmem>>, %arg10: memref<128x128xf32, #tpu.memory_space<vmem>>, %arg11: memref<1x128xf32, #tpu.memory_space<vmem>>, %arg12: memref<1x2x128xf32, #tpu.memory_space<vmem>>, %arg13: memref<144x192xf32, #tpu.memory_space<vmem>>, %arg14: memref<120x216xf32, #tpu.memory_space<vmem>>, %arg15: memref<84x400xf32, #tpu.memory_space<vmem>>) attributes {dimension_semantics = [#tpu.dimension_semantics<parallel>], iteration_bounds = array<i64: 2>, scalar_prefetch = 0 : i64, scratch_operands = 3 : i64, tpu.core_type = #tpu.core_type<tc>, window_params = [{transform_indices = @transform_0, window_bounds = array<i64: 160, 48>}, {pipeline_mode = #tpu.pipeline_mode<synchronous>, transform_indices = @transform_1, window_bounds = array<i64: 192, 96>}, {pipeline_mode = #tpu.pipeline_mode<synchronous>, transform_indices = @transform_2, window_bounds = array<i64: 1, 24>}, {pipeline_mode = #tpu.pipeline_mode<synchronous>, transform_indices = @transform_3, window_bounds = array<i64: 216, 64>}, {pipeline_mode = #tpu.pipeline_mode<synchronous>, transform_indices = @transform_4, window_bounds = array<i64: 1, 16>}, {pipeline_mode = #tpu.pipeline_mode<synchronous>, transform_indices = @transform_5, window_bounds = array<i64: 400, 128>}, {pipeline_mode = #tpu.pipeline_mode<synchronous>, transform_indices = @transform_6, window_bounds = array<i64: 1, 128>}, {pipeline_mode = #tpu.pipeline_mode<synchronous>, transform_indices = @transform_7, window_bounds = array<i64: 128, 128>}, {pipeline_mode = #tpu.pipeline_mode<synchronous>, transform_indices = @transform_8, window_bounds = array<i64: 1, 128>}, {pipeline_mode = #tpu.pipeline_mode<synchronous>, transform_indices = @transform_9, window_bounds = array<i64: 128, 128>}, {pipeline_mode = #tpu.pipeline_mode<synchronous>, transform_indices = @transform_10, window_bounds = array<i64: 1, 128>}, {transform_indices = @transform_11, window_bounds = array<i64: 1, 2, 128>}]} {
    %c0 = arith.constant 0 : index
    %c0_0 = arith.constant 0 : index
    %0 = vector.load %arg1[%c0, %c0_0] : memref<160x48xf32, #tpu.memory_space<vmem>>, vector<144x48xf32>
    %c0_1 = arith.constant 0 : index
    %c0_2 = arith.constant 0 : index
    %1 = vector.load %arg13[%c0_1, %c0_2] : memref<144x192xf32, #tpu.memory_space<vmem>>, vector<144x48xf32>
    tpu.vector_store %arg13[%c0_1, %c0_2], %0 {strides = array<i32>} : memref<144x192xf32, #tpu.memory_space<vmem>>, vector<144x48xf32>,
    %c1 = arith.constant 1 : index
    %c0_3 = arith.constant 0 : index
    %2 = vector.load %arg1[%c1, %c0_3] : memref<160x48xf32, #tpu.memory_space<vmem>>, vector<144x48xf32>
    %c0_4 = arith.constant 0 : index
    %c48 = arith.constant 48 : index
    %3 = vector.load %arg13[%c0_4, %c48] : memref<144x192xf32, #tpu.memory_space<vmem>>, vector<144x48xf32>
    tpu.vector_store %arg13[%c0_4, %c48], %2 {strides = array<i32>} : memref<144x192xf32, #tpu.memory_space<vmem>>, vector<144x48xf32>,
    %c8 = arith.constant 8 : index
    %c0_5 = arith.constant 0 : index
    %4 = vector.load %arg1[%c8, %c0_5] : memref<160x48xf32, #tpu.memory_space<vmem>>, vector<144x48xf32>
    %c0_6 = arith.constant 0 : index
    %c96 = arith.constant 96 : index
    %5 = vector.load %arg13[%c0_6, %c96] : memref<144x192xf32, #tpu.memory_space<vmem>>, vector<144x48xf32>
    tpu.vector_store %arg13[%c0_6, %c96], %4 {strides = array<i32>} : memref<144x192xf32, #tpu.memory_space<vmem>>, vector<144x48xf32>,
    %c9 = arith.constant 9 : index
    %c0_7 = arith.constant 0 : index
    %6 = vector.load %arg1[%c9, %c0_7] : memref<160x48xf32, #tpu.memory_space<vmem>>, vector<144x48xf32>
    %c0_8 = arith.constant 0 : index
    %c144 = arith.constant 144 : index
    %7 = vector.load %arg13[%c0_8, %c144] : memref<144x192xf32, #tpu.memory_space<vmem>>, vector<144x48xf32>
    tpu.vector_store %arg13[%c0_8, %c144], %6 {strides = array<i32>} : memref<144x192xf32, #tpu.memory_space<vmem>>, vector<144x48xf32>,
    %c0_9 = arith.constant 0 : index
    %c0_10 = arith.constant 0 : index
    %8 = vector.load %arg13[%c0_9, %c0_10] : memref<144x192xf32, #tpu.memory_space<vmem>>, vector<144x192xf32>
    %c0_11 = arith.constant 0 : index
    %c0_12 = arith.constant 0 : index
    %9 = vector.load %arg2[%c0_11, %c0_12] : memref<192x96xf32, #tpu.memory_space<vmem>>, vector<192x96xf32>
    %cst = arith.constant dense<0.000000e+00> : vector<144x96xf32>
    %10 = tpu.matmul %8, %9, %cst {dimension_numbers = #tpu.dot_dimension_numbers<[1], [0], [0], [1], [0, 0, 1, 1], [], []>} : vector<144x192xf32>, vector<192x96xf32>, vector<144x96xf32> -> vector<144x96xf32>
    %11 = vector.extract_strided_slice %10 {offsets = [0, 0], sizes = [144, 24], strides = [1, 1]} : vector<144x96xf32> to vector<144x24xf32>
    %12 = vector.extract_strided_slice %10 {offsets = [0, 24], sizes = [144, 24], strides = [1, 1]} : vector<144x96xf32> to vector<144x24xf32>
    %13 = arith.maximumf %11, %12 : vector<144x24xf32>
    %14 = vector.extract_strided_slice %10 {offsets = [0, 48], sizes = [144, 24], strides = [1, 1]} : vector<144x96xf32> to vector<144x24xf32>
    %15 = vector.extract_strided_slice %10 {offsets = [0, 72], sizes = [144, 24], strides = [1, 1]} : vector<144x96xf32> to vector<144x24xf32>
    %16 = arith.maximumf %14, %15 : vector<144x24xf32>
    %17 = arith.maximumf %13, %16 : vector<144x24xf32>
    %c0_13 = arith.constant 0 : index
    %c0_14 = arith.constant 0 : index
    %18 = vector.load %arg3[%c0_13, %c0_14] : memref<1x24xf32, #tpu.memory_space<vmem>>, vector<1x24xf32>
    %19 = vector.broadcast %18 : vector<1x24xf32> to vector<144x24xf32>
    %20 = arith.addf %17, %19 : vector<144x24xf32>
    %cst_15 = arith.constant 0.000000e+00 : f32
    %21 = vector.broadcast %cst_15 : f32 to vector<144x24xf32>
    %22 = arith.maximumf %20, %21 : vector<144x24xf32>
    %23 = vector.extract_strided_slice %22 {offsets = [0, 0], sizes = [120, 24], strides = [1, 1]} : vector<144x24xf32> to vector<120x24xf32>
    %c0_16 = arith.constant 0 : index
    %c0_17 = arith.constant 0 : index
    %24 = vector.load %arg14[%c0_16, %c0_17] : memref<120x216xf32, #tpu.memory_space<vmem>>, vector<120x24xf32>
    tpu.vector_store %arg14[%c0_16, %c0_17], %23 {strides = array<i32>} : memref<120x216xf32, #tpu.memory_space<vmem>>, vector<120x24xf32>,
    %25 = vector.extract_strided_slice %22 {offsets = [1, 0], sizes = [120, 24], strides = [1, 1]} : vector<144x24xf32> to vector<120x24xf32>
    %c0_18 = arith.constant 0 : index
    %c24 = arith.constant 24 : index
    %26 = vector.load %arg14[%c0_18, %c24] : memref<120x216xf32, #tpu.memory_space<vmem>>, vector<120x24xf32>
    tpu.vector_store %arg14[%c0_18, %c24], %25 {strides = array<i32>} : memref<120x216xf32, #tpu.memory_space<vmem>>, vector<120x24xf32>,
    %27 = vector.extract_strided_slice %22 {offsets = [2, 0], sizes = [120, 24], strides = [1, 1]} : vector<144x24xf32> to vector<120x24xf32>
    %c0_19 = arith.constant 0 : index
    %c48_20 = arith.constant 48 : index
    %28 = vector.load %arg14[%c0_19, %c48_20] : memref<120x216xf32, #tpu.memory_space<vmem>>, vector<120x24xf32>
    tpu.vector_store %arg14[%c0_19, %c48_20], %27 {strides = array<i32>} : memref<120x216xf32, #tpu.memory_space<vmem>>, vector<120x24xf32>,
    %29 = vector.extract_strided_slice %22 {offsets = [8, 0], sizes = [120, 24], strides = [1, 1]} : vector<144x24xf32> to vector<120x24xf32>
    %c0_21 = arith.constant 0 : index
    %c72 = arith.constant 72 : index
    %30 = vector.load %arg14[%c0_21, %c72] : memref<120x216xf32, #tpu.memory_space<vmem>>, vector<120x24xf32>
    tpu.vector_store %arg14[%c0_21, %c72], %29 {strides = array<i32>} : memref<120x216xf32, #tpu.memory_space<vmem>>, vector<120x24xf32>,
    %31 = vector.extract_strided_slice %22 {offsets = [9, 0], sizes = [120, 24], strides = [1, 1]} : vector<144x24xf32> to vector<120x24xf32>
    %c0_22 = arith.constant 0 : index
    %c96_23 = arith.constant 96 : index
    %32 = vector.load %arg14[%c0_22, %c96_23] : memref<120x216xf32, #tpu.memory_space<vmem>>, vector<120x24xf32>
    tpu.vector_store %arg14[%c0_22, %c96_23], %31 {strides = array<i32>} : memref<120x216xf32, #tpu.memory_space<vmem>>, vector<120x24xf32>,
    %33 = vector.extract_strided_slice %22 {offsets = [10, 0], sizes = [120, 24], strides = [1, 1]} : vector<144x24xf32> to vector<120x24xf32>
    %c0_24 = arith.constant 0 : index
    %c120 = arith.constant 120 : index
    %34 = vector.load %arg14[%c0_24, %c120] : memref<120x216xf32, #tpu.memory_space<vmem>>, vector<120x24xf32>
    tpu.vector_store %arg14[%c0_24, %c120], %33 {strides = array<i32>} : memref<120x216xf32, #tpu.memory_space<vmem>>, vector<120x24xf32>,
    %35 = vector.extract_strided_slice %22 {offsets = [16, 0], sizes = [120, 24], strides = [1, 1]} : vector<144x24xf32> to vector<120x24xf32>
    %c0_25 = arith.constant 0 : index
    %c144_26 = arith.constant 144 : index
    %36 = vector.load %arg14[%c0_25, %c144_26] : memref<120x216xf32, #tpu.memory_space<vmem>>, vector<120x24xf32>
    tpu.vector_store %arg14[%c0_25, %c144_26], %35 {strides = array<i32>} : memref<120x216xf32, #tpu.memory_space<vmem>>, vector<120x24xf32>,
    %37 = vector.extract_strided_slice %22 {offsets = [17, 0], sizes = [120, 24], strides = [1, 1]} : vector<144x24xf32> to vector<120x24xf32>
    %c0_27 = arith.constant 0 : index
    %c168 = arith.constant 168 : index
    %38 = vector.load %arg14[%c0_27, %c168] : memref<120x216xf32, #tpu.memory_space<vmem>>, vector<120x24xf32>
    tpu.vector_store %arg14[%c0_27, %c168], %37 {strides = array<i32>} : memref<120x216xf32, #tpu.memory_space<vmem>>, vector<120x24xf32>,
    %39 = vector.extract_strided_slice %22 {offsets = [18, 0], sizes = [120, 24], strides = [1, 1]} : vector<144x24xf32> to vector<120x24xf32>
    %c0_28 = arith.constant 0 : index
    %c192 = arith.constant 192 : index
    %40 = vector.load %arg14[%c0_28, %c192] : memref<120x216xf32, #tpu.memory_space<vmem>>, vector<120x24xf32>
    tpu.vector_store %arg14[%c0_28, %c192], %39 {strides = array<i32>} : memref<120x216xf32, #tpu.memory_space<vmem>>, vector<120x24xf32>,
    %c0_29 = arith.constant 0 : index
    %c0_30 = arith.constant 0 : index
    %41 = vector.load %arg14[%c0_29, %c0_30] : memref<120x216xf32, #tpu.memory_space<vmem>>, vector<120x216xf32>
    %c0_31 = arith.constant 0 : index
    %c0_32 = arith.constant 0 : index
    %42 = vector.load %arg4[%c0_31, %c0_32] : memref<216x64xf32, #tpu.memory_space<vmem>>, vector<216x64xf32>
    %cst_33 = arith.constant dense<0.000000e+00> : vector<120x64xf32>
    %43 = tpu.matmul %41, %42, %cst_33 {dimension_numbers = #tpu.dot_dimension_numbers<[1], [0], [0], [1], [0, 0, 1, 1], [], []>} : vector<120x216xf32>, vector<216x64xf32>, vector<120x64xf32> -> vector<120x64xf32>
    %44 = vector.extract_strided_slice %43 {offsets = [0, 0], sizes = [120, 16], strides = [1, 1]} : vector<120x64xf32> to vector<120x16xf32>
    %45 = vector.extract_strided_slice %43 {offsets = [0, 16], sizes = [120, 16], strides = [1, 1]} : vector<120x64xf32> to vector<120x16xf32>
    %46 = arith.maximumf %44, %45 : vector<120x16xf32>
    %47 = vector.extract_strided_slice %43 {offsets = [0, 32], sizes = [120, 16], strides = [1, 1]} : vector<120x64xf32> to vector<120x16xf32>
    %48 = vector.extract_strided_slice %43 {offsets = [0, 48], sizes = [120, 16], strides = [1, 1]} : vector<120x64xf32> to vector<120x16xf32>
    %49 = arith.maximumf %47, %48 : vector<120x16xf32>
    %50 = arith.maximumf %46, %49 : vector<120x16xf32>
    %c0_34 = arith.constant 0 : index
    %c0_35 = arith.constant 0 : index
    %51 = vector.load %arg5[%c0_34, %c0_35] : memref<1x16xf32, #tpu.memory_space<vmem>>, vector<1x16xf32>
    %52 = vector.broadcast %51 : vector<1x16xf32> to vector<120x16xf32>
    %53 = arith.addf %50, %52 : vector<120x16xf32>
    %cst_36 = arith.constant 0.000000e+00 : f32
    %54 = vector.broadcast %cst_36 : f32 to vector<120x16xf32>
    %55 = arith.maximumf %53, %54 : vector<120x16xf32>
    %56 = vector.extract_strided_slice %55 {offsets = [0, 0], sizes = [84, 16], strides = [1, 1]} : vector<120x16xf32> to vector<84x16xf32>
    %c0_37 = arith.constant 0 : index
    %c0_38 = arith.constant 0 : index
    %57 = vector.load %arg15[%c0_37, %c0_38] : memref<84x400xf32, #tpu.memory_space<vmem>>, vector<84x16xf32>
    tpu.vector_store %arg15[%c0_37, %c0_38], %56 {strides = array<i32>} : memref<84x400xf32, #tpu.memory_space<vmem>>, vector<84x16xf32>,
    %58 = vector.extract_strided_slice %55 {offsets = [1, 0], sizes = [84, 16], strides = [1, 1]} : vector<120x16xf32> to vector<84x16xf32>
    %c0_39 = arith.constant 0 : index
    %c16 = arith.constant 16 : index
    %59 = vector.load %arg15[%c0_39, %c16] : memref<84x400xf32, #tpu.memory_space<vmem>>, vector<84x16xf32>
    tpu.vector_store %arg15[%c0_39, %c16], %58 {strides = array<i32>} : memref<84x400xf32, #tpu.memory_space<vmem>>, vector<84x16xf32>,
    %60 = vector.extract_strided_slice %55 {offsets = [2, 0], sizes = [84, 16], strides = [1, 1]} : vector<120x16xf32> to vector<84x16xf32>
    %c0_40 = arith.constant 0 : index
    %c32 = arith.constant 32 : index
    %61 = vector.load %arg15[%c0_40, %c32] : memref<84x400xf32, #tpu.memory_space<vmem>>, vector<84x16xf32>
    tpu.vector_store %arg15[%c0_40, %c32], %60 {strides = array<i32>} : memref<84x400xf32, #tpu.memory_space<vmem>>, vector<84x16xf32>,
    %62 = vector.extract_strided_slice %55 {offsets = [3, 0], sizes = [84, 16], strides = [1, 1]} : vector<120x16xf32> to vector<84x16xf32>
    %c0_41 = arith.constant 0 : index
    %c48_42 = arith.constant 48 : index
    %63 = vector.load %arg15[%c0_41, %c48_42] : memref<84x400xf32, #tpu.memory_space<vmem>>, vector<84x16xf32>
    tpu.vector_store %arg15[%c0_41, %c48_42], %62 {strides = array<i32>} : memref<84x400xf32, #tpu.memory_space<vmem>>, vector<84x16xf32>,
    %64 = vector.extract_strided_slice %55 {offsets = [4, 0], sizes = [84, 16], strides = [1, 1]} : vector<120x16xf32> to vector<84x16xf32>
    %c0_43 = arith.constant 0 : index
    %c64 = arith.constant 64 : index
    %65 = vector.load %arg15[%c0_43, %c64] : memref<84x400xf32, #tpu.memory_space<vmem>>, vector<84x16xf32>
    tpu.vector_store %arg15[%c0_43, %c64], %64 {strides = array<i32>} : memref<84x400xf32, #tpu.memory_space<vmem>>, vector<84x16xf32>,
    %66 = vector.extract_strided_slice %55 {offsets = [8, 0], sizes = [84, 16], strides = [1, 1]} : vector<120x16xf32> to vector<84x16xf32>
    %c0_44 = arith.constant 0 : index
    %c80 = arith.constant 80 : index
    %67 = vector.load %arg15[%c0_44, %c80] : memref<84x400xf32, #tpu.memory_space<vmem>>, vector<84x16xf32>
    tpu.vector_store %arg15[%c0_44, %c80], %66 {strides = array<i32>} : memref<84x400xf32, #tpu.memory_space<vmem>>, vector<84x16xf32>,
    %68 = vector.extract_strided_slice %55 {offsets = [9, 0], sizes = [84, 16], strides = [1, 1]} : vector<120x16xf32> to vector<84x16xf32>
    %c0_45 = arith.constant 0 : index
    %c96_46 = arith.constant 96 : index
    %69 = vector.load %arg15[%c0_45, %c96_46] : memref<84x400xf32, #tpu.memory_space<vmem>>, vector<84x16xf32>
    tpu.vector_store %arg15[%c0_45, %c96_46], %68 {strides = array<i32>} : memref<84x400xf32, #tpu.memory_space<vmem>>, vector<84x16xf32>,
    %70 = vector.extract_strided_slice %55 {offsets = [10, 0], sizes = [84, 16], strides = [1, 1]} : vector<120x16xf32> to vector<84x16xf32>
    %c0_47 = arith.constant 0 : index
    %c112 = arith.constant 112 : index
    %71 = vector.load %arg15[%c0_47, %c112] : memref<84x400xf32, #tpu.memory_space<vmem>>, vector<84x16xf32>
    tpu.vector_store %arg15[%c0_47, %c112], %70 {strides = array<i32>} : memref<84x400xf32, #tpu.memory_space<vmem>>, vector<84x16xf32>,
    %72 = vector.extract_strided_slice %55 {offsets = [11, 0], sizes = [84, 16], strides = [1, 1]} : vector<120x16xf32> to vector<84x16xf32>
    %c0_48 = arith.constant 0 : index
    %c128 = arith.constant 128 : index
    %73 = vector.load %arg15[%c0_48, %c128] : memref<84x400xf32, #tpu.memory_space<vmem>>, vector<84x16xf32>
    tpu.vector_store %arg15[%c0_48, %c128], %72 {strides = array<i32>} : memref<84x400xf32, #tpu.memory_space<vmem>>, vector<84x16xf32>,
    %74 = vector.extract_strided_slice %55 {offsets = [12, 0], sizes = [84, 16], strides = [1, 1]} : vector<120x16xf32> to vector<84x16xf32>
    %c0_49 = arith.constant 0 : index
    %c144_50 = arith.constant 144 : index
    %75 = vector.load %arg15[%c0_49, %c144_50] : memref<84x400xf32, #tpu.memory_space<vmem>>, vector<84x16xf32>
    tpu.vector_store %arg15[%c0_49, %c144_50], %74 {strides = array<i32>} : memref<84x400xf32, #tpu.memory_space<vmem>>, vector<84x16xf32>,
    %76 = vector.extract_strided_slice %55 {offsets = [16, 0], sizes = [84, 16], strides = [1, 1]} : vector<120x16xf32> to vector<84x16xf32>
    %c0_51 = arith.constant 0 : index
    %c160 = arith.constant 160 : index
    %77 = vector.load %arg15[%c0_51, %c160] : memref<84x400xf32, #tpu.memory_space<vmem>>, vector<84x16xf32>
    tpu.vector_store %arg15[%c0_51, %c160], %76 {strides = array<i32>} : memref<84x400xf32, #tpu.memory_space<vmem>>, vector<84x16xf32>,
    %78 = vector.extract_strided_slice %55 {offsets = [17, 0], sizes = [84, 16], strides = [1, 1]} : vector<120x16xf32> to vector<84x16xf32>
    %c0_52 = arith.constant 0 : index
    %c176 = arith.constant 176 : index
    %79 = vector.load %arg15[%c0_52, %c176] : memref<84x400xf32, #tpu.memory_space<vmem>>, vector<84x16xf32>
    tpu.vector_store %arg15[%c0_52, %c176], %78 {strides = array<i32>} : memref<84x400xf32, #tpu.memory_space<vmem>>, vector<84x16xf32>,
    %80 = vector.extract_strided_slice %55 {offsets = [18, 0], sizes = [84, 16], strides = [1, 1]} : vector<120x16xf32> to vector<84x16xf32>
    %c0_53 = arith.constant 0 : index
    %c192_54 = arith.constant 192 : index
    %81 = vector.load %arg15[%c0_53, %c192_54] : memref<84x400xf32, #tpu.memory_space<vmem>>, vector<84x16xf32>
    tpu.vector_store %arg15[%c0_53, %c192_54], %80 {strides = array<i32>} : memref<84x400xf32, #tpu.memory_space<vmem>>, vector<84x16xf32>,
    %82 = vector.extract_strided_slice %55 {offsets = [19, 0], sizes = [84, 16], strides = [1, 1]} : vector<120x16xf32> to vector<84x16xf32>
    %c0_55 = arith.constant 0 : index
    %c208 = arith.constant 208 : index
    %83 = vector.load %arg15[%c0_55, %c208] : memref<84x400xf32, #tpu.memory_space<vmem>>, vector<84x16xf32>
    tpu.vector_store %arg15[%c0_55, %c208], %82 {strides = array<i32>} : memref<84x400xf32, #tpu.memory_space<vmem>>, vector<84x16xf32>,
    %84 = vector.extract_strided_slice %55 {offsets = [20, 0], sizes = [84, 16], strides = [1, 1]} : vector<120x16xf32> to vector<84x16xf32>
    %c0_56 = arith.constant 0 : index
    %c224 = arith.constant 224 : index
    %85 = vector.load %arg15[%c0_56, %c224] : memref<84x400xf32, #tpu.memory_space<vmem>>, vector<84x16xf32>
    tpu.vector_store %arg15[%c0_56, %c224], %84 {strides = array<i32>} : memref<84x400xf32, #tpu.memory_space<vmem>>, vector<84x16xf32>,
    %86 = vector.extract_strided_slice %55 {offsets = [24, 0], sizes = [84, 16], strides = [1, 1]} : vector<120x16xf32> to vector<84x16xf32>
    %c0_57 = arith.constant 0 : index
    %c240 = arith.constant 240 : index
    %87 = vector.load %arg15[%c0_57, %c240] : memref<84x400xf32, #tpu.memory_space<vmem>>, vector<84x16xf32>
    tpu.vector_store %arg15[%c0_57, %c240], %86 {strides = array<i32>} : memref<84x400xf32, #tpu.memory_space<vmem>>, vector<84x16xf32>,
    %88 = vector.extract_strided_slice %55 {offsets = [25, 0], sizes = [84, 16], strides = [1, 1]} : vector<120x16xf32> to vector<84x16xf32>
    %c0_58 = arith.constant 0 : index
    %c256 = arith.constant 256 : index
    %89 = vector.load %arg15[%c0_58, %c256] : memref<84x400xf32, #tpu.memory_space<vmem>>, vector<84x16xf32>
    tpu.vector_store %arg15[%c0_58, %c256], %88 {strides = array<i32>} : memref<84x400xf32, #tpu.memory_space<vmem>>, vector<84x16xf32>,
    %90 = vector.extract_strided_slice %55 {offsets = [26, 0], sizes = [84, 16], strides = [1, 1]} : vector<120x16xf32> to vector<84x16xf32>
    %c0_59 = arith.constant 0 : index
    %c272 = arith.constant 272 : index
    %91 = vector.load %arg15[%c0_59, %c272] : memref<84x400xf32, #tpu.memory_space<vmem>>, vector<84x16xf32>
    tpu.vector_store %arg15[%c0_59, %c272], %90 {strides = array<i32>} : memref<84x400xf32, #tpu.memory_space<vmem>>, vector<84x16xf32>,
    %92 = vector.extract_strided_slice %55 {offsets = [27, 0], sizes = [84, 16], strides = [1, 1]} : vector<120x16xf32> to vector<84x16xf32>
    %c0_60 = arith.constant 0 : index
    %c288 = arith.constant 288 : index
    %93 = vector.load %arg15[%c0_60, %c288] : memref<84x400xf32, #tpu.memory_space<vmem>>, vector<84x16xf32>
    tpu.vector_store %arg15[%c0_60, %c288], %92 {strides = array<i32>} : memref<84x400xf32, #tpu.memory_space<vmem>>, vector<84x16xf32>,
    %94 = vector.extract_strided_slice %55 {offsets = [28, 0], sizes = [84, 16], strides = [1, 1]} : vector<120x16xf32> to vector<84x16xf32>
    %c0_61 = arith.constant 0 : index
    %c304 = arith.constant 304 : index
    %95 = vector.load %arg15[%c0_61, %c304] : memref<84x400xf32, #tpu.memory_space<vmem>>, vector<84x16xf32>
    tpu.vector_store %arg15[%c0_61, %c304], %94 {strides = array<i32>} : memref<84x400xf32, #tpu.memory_space<vmem>>, vector<84x16xf32>,
    %96 = vector.extract_strided_slice %55 {offsets = [32, 0], sizes = [84, 16], strides = [1, 1]} : vector<120x16xf32> to vector<84x16xf32>
    %c0_62 = arith.constant 0 : index
    %c320 = arith.constant 320 : index
    %97 = vector.load %arg15[%c0_62, %c320] : memref<84x400xf32, #tpu.memory_space<vmem>>, vector<84x16xf32>
    tpu.vector_store %arg15[%c0_62, %c320], %96 {strides = array<i32>} : memref<84x400xf32, #tpu.memory_space<vmem>>, vector<84x16xf32>,
    %98 = vector.extract_strided_slice %55 {offsets = [33, 0], sizes = [84, 16], strides = [1, 1]} : vector<120x16xf32> to vector<84x16xf32>
    %c0_63 = arith.constant 0 : index
    %c336 = arith.constant 336 : index
    %99 = vector.load %arg15[%c0_63, %c336] : memref<84x400xf32, #tpu.memory_space<vmem>>, vector<84x16xf32>
    tpu.vector_store %arg15[%c0_63, %c336], %98 {strides = array<i32>} : memref<84x400xf32, #tpu.memory_space<vmem>>, vector<84x16xf32>,
    %100 = vector.extract_strided_slice %55 {offsets = [34, 0], sizes = [84, 16], strides = [1, 1]} : vector<120x16xf32> to vector<84x16xf32>
    %c0_64 = arith.constant 0 : index
    %c352 = arith.constant 352 : index
    %101 = vector.load %arg15[%c0_64, %c352] : memref<84x400xf32, #tpu.memory_space<vmem>>, vector<84x16xf32>
    tpu.vector_store %arg15[%c0_64, %c352], %100 {strides = array<i32>} : memref<84x400xf32, #tpu.memory_space<vmem>>, vector<84x16xf32>,
    %102 = vector.extract_strided_slice %55 {offsets = [35, 0], sizes = [84, 16], strides = [1, 1]} : vector<120x16xf32> to vector<84x16xf32>
    %c0_65 = arith.constant 0 : index
    %c368 = arith.constant 368 : index
    %103 = vector.load %arg15[%c0_65, %c368] : memref<84x400xf32, #tpu.memory_space<vmem>>, vector<84x16xf32>
    tpu.vector_store %arg15[%c0_65, %c368], %102 {strides = array<i32>} : memref<84x400xf32, #tpu.memory_space<vmem>>, vector<84x16xf32>,
    %104 = vector.extract_strided_slice %55 {offsets = [36, 0], sizes = [84, 16], strides = [1, 1]} : vector<120x16xf32> to vector<84x16xf32>
    %c0_66 = arith.constant 0 : index
    %c384 = arith.constant 384 : index
    %105 = vector.load %arg15[%c0_66, %c384] : memref<84x400xf32, #tpu.memory_space<vmem>>, vector<84x16xf32>
    tpu.vector_store %arg15[%c0_66, %c384], %104 {strides = array<i32>} : memref<84x400xf32, #tpu.memory_space<vmem>>, vector<84x16xf32>,
    %106 = tpu.iota {dimensions = array<i32: 1>} : vector<2x84xi32>
    %107 = tpu.iota {dimensions = array<i32: 0>} : vector<2x84xi32>
    %c80_i32 = arith.constant 80 : i32
    %108 = vector.broadcast %c80_i32 : i32 to vector<2x84xi32>
    %109 = arith.muli %107, %108 : vector<2x84xi32>
    %110 = arith.cmpi eq, %106, %109 : vector<2x84xi32>
    %111 = arith.extui %110 : vector<2x84xi1> to vector<2x84xi32>
    %112 = arith.sitofp %111 : vector<2x84xi32> to vector<2x84xf32>
    %c0_67 = arith.constant 0 : index
    %c0_68 = arith.constant 0 : index
    %113 = vector.load %arg15[%c0_67, %c0_68] : memref<84x400xf32, #tpu.memory_space<vmem>>, vector<84x400xf32>
    %cst_69 = arith.constant dense<0.000000e+00> : vector<2x400xf32>
    %114 = tpu.matmul %112, %113, %cst_69 {dimension_numbers = #tpu.dot_dimension_numbers<[1], [0], [0], [1], [0, 0, 1, 1], [], []>} : vector<2x84xf32>, vector<84x400xf32>, vector<2x400xf32> -> vector<2x400xf32>
    %c0_70 = arith.constant 0 : index
    %c0_71 = arith.constant 0 : index
    %115 = vector.load %arg6[%c0_70, %c0_71] : memref<400x128xf32, #tpu.memory_space<vmem>>, vector<400x128xf32>
    %cst_72 = arith.constant dense<0.000000e+00> : vector<2x128xf32>
    %116 = tpu.matmul %114, %115, %cst_72 {dimension_numbers = #tpu.dot_dimension_numbers<[1], [0], [0], [1], [0, 0, 1, 1], [], []>} : vector<2x400xf32>, vector<400x128xf32>, vector<2x128xf32> -> vector<2x128xf32>
    %c0_73 = arith.constant 0 : index
    %c0_74 = arith.constant 0 : index
    %117 = vector.load %arg7[%c0_73, %c0_74] : memref<1x128xf32, #tpu.memory_space<vmem>>, vector<1x128xf32>
    %118 = vector.broadcast %117 : vector<1x128xf32> to vector<2x128xf32>
    %119 = arith.addf %116, %118 : vector<2x128xf32>
    %cst_75 = arith.constant 0.000000e+00 : f32
    %120 = vector.broadcast %cst_75 : f32 to vector<2x128xf32>
    %121 = arith.maximumf %119, %120 : vector<2x128xf32>
    %c0_76 = arith.constant 0 : index
    %c0_77 = arith.constant 0 : index
    %122 = vector.load %arg8[%c0_76, %c0_77] : memref<128x128xf32, #tpu.memory_space<vmem>>, vector<128x128xf32>
    %cst_78 = arith.constant dense<0.000000e+00> : vector<2x128xf32>
    %123 = tpu.matmul %121, %122, %cst_78 {dimension_numbers = #tpu.dot_dimension_numbers<[1], [0], [0], [1], [0, 0, 1, 1], [], []>} : vector<2x128xf32>, vector<128x128xf32>, vector<2x128xf32> -> vector<2x128xf32>
    %c0_79 = arith.constant 0 : index
    %c0_80 = arith.constant 0 : index
    %124 = vector.load %arg9[%c0_79, %c0_80] : memref<1x128xf32, #tpu.memory_space<vmem>>, vector<1x128xf32>
    %125 = vector.broadcast %124 : vector<1x128xf32> to vector<2x128xf32>
    %126 = arith.addf %123, %125 : vector<2x128xf32>
    %cst_81 = arith.constant 0.000000e+00 : f32
    %127 = vector.broadcast %cst_81 : f32 to vector<2x128xf32>
    %128 = arith.maximumf %126, %127 : vector<2x128xf32>
    %c0_82 = arith.constant 0 : index
    %c0_83 = arith.constant 0 : index
    %129 = vector.load %arg10[%c0_82, %c0_83] : memref<128x128xf32, #tpu.memory_space<vmem>>, vector<128x128xf32>
    %cst_84 = arith.constant dense<0.000000e+00> : vector<2x128xf32>
    %130 = tpu.matmul %128, %129, %cst_84 {dimension_numbers = #tpu.dot_dimension_numbers<[1], [0], [0], [1], [0, 0, 1, 1], [], []>} : vector<2x128xf32>, vector<128x128xf32>, vector<2x128xf32> -> vector<2x128xf32>
    %c0_85 = arith.constant 0 : index
    %c0_86 = arith.constant 0 : index
    %131 = vector.load %arg11[%c0_85, %c0_86] : memref<1x128xf32, #tpu.memory_space<vmem>>, vector<1x128xf32>
    %132 = vector.broadcast %131 : vector<1x128xf32> to vector<2x128xf32>
    %133 = arith.addf %130, %132 : vector<2x128xf32>
    %134 = vector.extract_strided_slice %133 {offsets = [0, 0], sizes = [2, 10], strides = [1, 1]} : vector<2x128xf32> to vector<2x10xf32>
    %cst_87 = arith.constant dense<0xFF800000> : vector<2xf32>
    %135 = vector.multi_reduction <maximumf>, %134, %cst_87 [1] : vector<2x10xf32> to vector<2xf32>
    %136 = vector.shape_cast %135 : vector<2xf32> to vector<2x1xf32>
    %137 = vector.broadcast %136 : vector<2x1xf32> to vector<2x10xf32>
    %138 = arith.subf %134, %137 : vector<2x10xf32>
    %139 = math.exp %138 : vector<2x10xf32>
    %cst_88 = arith.constant dense<0.000000e+00> : vector<2xf32>
    %140 = vector.multi_reduction <add>, %139, %cst_88 [1] : vector<2x10xf32> to vector<2xf32>
    %141 = vector.shape_cast %140 : vector<2xf32> to vector<2x1xf32>
    %142 = math.log %141 : vector<2x1xf32>
    %143 = arith.addf %142, %136 : vector<2x1xf32>
    %144 = vector.broadcast %143 : vector<2x1xf32> to vector<2x128xf32>
    %145 = arith.subf %133, %144 : vector<2x128xf32>
    %c0_89 = arith.constant 0 : index
    %c0_90 = arith.constant 0 : index
    %c0_91 = arith.constant 0 : index
    %146 = vector.load %arg12[%c0_89, %c0_90, %c0_91] : memref<1x2x128xf32, #tpu.memory_space<vmem>>, vector<1x2x128xf32>
    %147 = vector.shape_cast %146 : vector<1x2x128xf32> to vector<2x128xf32>
    %148 = vector.shape_cast %145 : vector<2x128xf32> to vector<1x2x128xf32>
    tpu.vector_store %arg12[%c0_89, %c0_90, %c0_91], %148 {strides = array<i32>} : memref<1x2x128xf32, #tpu.memory_space<vmem>>, vector<1x2x128xf32>,
    return
  }
  func.func @transform_0(%arg0: i32) -> (i32, i32) {
    %c0_i32 = arith.constant 0 : i32
    %c0_i32_0 = arith.constant 0 : i32
    return %arg0, %c0_i32 : i32, i32
  }
  func.func @transform_1(%arg0: i32) -> (i32, i32) {
    %c0_i32 = arith.constant 0 : i32
    %c0_i32_0 = arith.constant 0 : i32
    %c0_i32_1 = arith.constant 0 : i32
    return %c0_i32, %c0_i32_0 : i32, i32
  }
  func.func @transform_2(%arg0: i32) -> (i32, i32) {
    %c0_i32 = arith.constant 0 : i32
    %c0_i32_0 = arith.constant 0 : i32
    %c0_i32_1 = arith.constant 0 : i32
    return %c0_i32, %c0_i32_0 : i32, i32
  }
  func.func @transform_3(%arg0: i32) -> (i32, i32) {
    %c0_i32 = arith.constant 0 : i32
    %c0_i32_0 = arith.constant 0 : i32
    %c0_i32_1 = arith.constant 0 : i32
    return %c0_i32, %c0_i32_0 : i32, i32
  }
  func.func @transform_4(%arg0: i32) -> (i32, i32) {
    %c0_i32 = arith.constant 0 : i32
    %c0_i32_0 = arith.constant 0 : i32
    %c0_i32_1 = arith.constant 0 : i32
    return %c0_i32, %c0_i32_0 : i32, i32
  }
  func.func @transform_5(%arg0: i32) -> (i32, i32) {
    %c0_i32 = arith.constant 0 : i32
    %c0_i32_0 = arith.constant 0 : i32
    %c0_i32_1 = arith.constant 0 : i32
    return %c0_i32, %c0_i32_0 : i32, i32
  }
  func.func @transform_6(%arg0: i32) -> (i32, i32) {
    %c0_i32 = arith.constant 0 : i32
    %c0_i32_0 = arith.constant 0 : i32
    %c0_i32_1 = arith.constant 0 : i32
    return %c0_i32, %c0_i32_0 : i32, i32
  }
  func.func @transform_7(%arg0: i32) -> (i32, i32) {
    %c0_i32 = arith.constant 0 : i32
    %c0_i32_0 = arith.constant 0 : i32
    %c0_i32_1 = arith.constant 0 : i32
    return %c0_i32, %c0_i32_0 : i32, i32
  }
  func.func @transform_8(%arg0: i32) -> (i32, i32) {
    %c0_i32 = arith.constant 0 : i32
    %c0_i32_0 = arith.constant 0 : i32
    %c0_i32_1 = arith.constant 0 : i32
    return %c0_i32, %c0_i32_0 : i32, i32
  }
  func.func @transform_9(%arg0: i32) -> (i32, i32) {
    %c0_i32 = arith.constant 0 : i32
    %c0_i32_0 = arith.constant 0 : i32
    %c0_i32_1 = arith.constant 0 : i32
    return %c0_i32, %c0_i32_0 : i32, i32
  }
  func.func @transform_10(%arg0: i32) -> (i32, i32) {
    %c0_i32 = arith.constant 0 : i32
    %c0_i32_0 = arith.constant 0 : i32
    %c0_i32_1 = arith.constant 0 : i32
    return %c0_i32, %c0_i32_0 : i32, i32
  }
  func.func @transform_11(%arg0: i32) -> (i32, i32, i32) {
    %c0_i32 = arith.constant 0 : i32
    %c0_i32_0 = arith.constant 0 : i32
    %c0_i32_1 = arith.constant 0 : i32
    return %arg0, %c0_i32, %c0_i32_0 : i32, i32, i32
  }
}

</mosaic_0001>

<llo_original>
// kernel: mul.1
$region0: #{mul.1}
  #allocation0 [shape = 's32[1]{0}', space=sflag, size = 0x4, scoped, tag = 'scoped memory for mul.1']
  %s0 = inlined_call_operand.vmem [shape: f32[13824], index: 0, kind: input, shape index: {}]
  %s1 = inlined_call_operand.vmem [shape: f32[13824], index: 1, kind: input, shape index: {}]
  %s2 = inlined_call_operand.vmem [shape: f32[13824], index: 2, kind: output, shape index: {}]
  %v3 = vld [vmem:[%s0] sm:$0xff]
  %v4 = vld [vmem:[%s1] sm:$0xff]
  %5 = xla_tuple %v3, %v4
  %6 = xla_tuple %5
  %v7 = vmul.f32 %v3, %v4
  %8 = xla_tuple %v7
  %9 = vst [vmem:[%s2] sm:$0xff] %v7
  %s10 = scalar_lea.vmem %s0, 8
  %v11 = vld [vmem:[%s10] sm:$0xff]
  %s12 = scalar_lea.vmem %s1, 8
  %v13 = vld [vmem:[%s12] sm:$0xff]
  %14 = xla_tuple %v11, %v13
  %15 = xla_tuple %14
  %v16 = vmul.f32 %v11, %v13
  %17 = xla_tuple %v16
  %s18 = scalar_lea.vmem %s2, 8
  %19 = vst [vmem:[%s18] sm:$0xff] %v16
  %s20 = scalar_lea.vmem %s0, 16
  %v21 = vld [vmem:[%s20] sm:$0xff]
  %s22 = scalar_lea.vmem %s1, 16
  %v23 = vld [vmem:[%s22] sm:$0xff]
  %24 = xla_tuple %v21, %v23
  %25 = xla_tuple %24
  %v26 = vmul.f32 %v21, %v23
  %27 = xla_tuple %v26
  %s28 = scalar_lea.vmem %s2, 16
  %29 = vst [vmem:[%s28] sm:$0xff] %v26
  %s30 = scalar_lea.vmem %s0, 24
  %v31 = vld [vmem:[%s30] sm:$0xff]
  %s32 = scalar_lea.vmem %s1, 24
  %v33 = vld [vmem:[%s32] sm:$0xff]
  %34 = xla_tuple %v31, %v33
  %35 = xla_tuple %34
  %v36 = vmul.f32 %v31, %v33
  %37 = xla_tuple %v36
  %s38 = scalar_lea.vmem %s2, 24
  %39 = vst [vmem:[%s38] sm:$0xff] %v36
  %s40 = scalar_lea.vmem %s0, 32
  %v41 = vld [vmem:[%s40] sm:$0xff]
  %s42 = scalar_lea.vmem %s1, 32
  %v43 = vld [vmem:[%s42] sm:$0xff]
  %44 = xla_tuple %v41, %v43
  %45 = xla_tuple %44
  %v46 = vmul.f32 %v41, %v43
  %47 = xla_tuple %v46
  %s48 = scalar_lea.vmem %s2, 32
  %49 = vst [vmem:[%s48] sm:$0xff] %v46
  %s50 = scalar_lea.vmem %s0, 40
  %v51 = vld [vmem:[%s50] sm:$0xff]
  %s52 = scalar_lea.vmem %s1, 40
  %v53 = vld [vmem:[%s52] sm:$0xff]
  %54 = xla_tuple %v51, %v53
  %55 = xla_tuple %54
  %v56 = vmul.f32 %v51, %v53
  %57 = xla_tuple %v56
  %s58 = scalar_lea.vmem %s2, 40
  %59 = vst [vmem:[%s58] sm:$0xff] %v56
  %s60 = scalar_lea.vmem %s0, 48
  %v61 = vld [vmem:[%s60] sm:$0xff]
  %s62 = scalar_lea.vmem %s1, 48
  %v63 = vld [vmem:[%s62] sm:$0xff]
  %64 = xla_tuple %v61, %v63
  %65 = xla_tuple %64
  %v66 = vmul.f32 %v61, %v63
  %67 = xla_tuple %v66
  %s68 = scalar_lea.vmem %s2, 48
  %69 = vst [vmem:[%s68] sm:$0xff] %v66
  %s70 = scalar_lea.vmem %s0, 56
  %v71 = vld [vmem:[%s70] sm:$0xff]
  %s72 = scalar_lea.vmem %s1, 56
  %v73 = vld [vmem:[%s72] sm:$0xff]
  %74 = xla_tuple %v71, %v73
  %75 = xla_tuple %74
  %v76 = vmul.f32 %v71, %v73
  %77 = xla_tuple %v76
  %s78 = scalar_lea.vmem %s2, 56
  %79 = vst [vmem:[%s78] sm:$0xff] %v76
  %s80 = scalar_lea.vmem %s0, 64
  %v81 = vld [vmem:[%s80] sm:$0xff]
  %s82 = scalar_lea.vmem %s1, 64
  %v83 = vld [vmem:[%s82] sm:$0xff]
  %84 = xla_tuple %v81, %v83
  %85 = xla_tuple %84
  %v86 = vmul.f32 %v81, %v83
  %87 = xla_tuple %v86
  %s88 = scalar_lea.vmem %s2, 64
  %89 = vst [vmem:[%s88] sm:$0xff] %v86
  %s90 = scalar_lea.vmem %s0, 72
  %v91 = vld [vmem:[%s90] sm:$0xff]
  %s92 = scalar_lea.vmem %s1, 72
  %v93 = vld [vmem:[%s92] sm:$0xff]
  %94 = xla_tuple %v91, %v93
  %95 = xla_tuple %94
  %v96 = vmul.f32 %v91, %v93
  %97 = xla_tuple %v96
  %s98 = scalar_lea.vmem %s2, 72
  %99 = vst [vmem:[%s98] sm:$0xff] %v96
  %s100 = scalar_lea.vmem %s0, 80
  %v101 = vld [vmem:[%s100] sm:$0xff]
  %s102 = scalar_lea.vmem %s1, 80
  %v103 = vld [vmem:[%s102] sm:$0xff]
  %104 = xla_tuple %v101, %v103
  %105 = xla_tuple %104
  %v106 = vmul.f32 %v101, %v103
  %107 = xla_tuple %v106
  %s108 = scalar_lea.vmem %s2, 80
  %109 = vst [vmem:[%s108] sm:$0xff] %v106
  %s110 = scalar_lea.vmem %s0, 88
  %v111 = vld [vmem:[%s110] sm:$0xff]
  %s112 = scalar_lea.vmem %s1, 88
  %v113 = vld [vmem:[%s112] sm:$0xff]
  %114 = xla_tuple %v111, %v113
  %115 = xla_tuple %114
  %v116 = vmul.f32 %v111, %v113
  %117 = xla_tuple %v116
  %s118 = scalar_lea.vmem %s2, 88
  %119 = vst [vmem:[%s118] sm:$0xff] %v116
  %s120 = scalar_lea.vmem %s0, 96
  %v121 = vld [vmem:[%s120] sm:$0xff]
  %s122 = scalar_lea.vmem %s1, 96
  %v123 = vld [vmem:[%s122] sm:$0xff]
  %124 = xla_tuple %v121, %v123
  %125 = xla_tuple %124
  %v126 = vmul.f32 %v121, %v123
  %127 = xla_tuple %v126
  %s128 = scalar_lea.vmem %s2, 96
  %129 = vst [vmem:[%s128] sm:$0xff] %v126
  %s130 = scalar_lea.vmem %s0, 104
  %v131 = vld [vmem:[%s130] sm:$0xff]
  %s132 = scalar_lea.vmem %s1, 104
  %v133 = vld [vmem:[%s132] sm:$0xff]
  %134 = xla_tuple %v131, %v133
  %135 = xla_tuple %134
  %v136 = vmul.f32 %v131, %v133
  %137 = xla_tuple %v136
  %s138 = scalar_lea.vmem %s2, 104
  %139 = vst [vmem:[%s138] sm:$0xff] %v136

// kernel: mul.0
$region0: #{mul.0}
  #allocation0 [shape = 's32[1]{0}', space=sflag, size = 0x4, scoped, tag = 'scoped memory for mul.0']
  %s0 = inlined_call_operand.vmem [shape: f32[18432], index: 0, kind: input, shape index: {}]
  %s1 = inlined_call_operand.vmem [shape: f32[18432], index: 1, kind: input, shape index: {}]
  %s2 = inlined_call_operand.vmem [shape: f32[18432], index: 2, kind: output, shape index: {}]
  %v3 = vld [vmem:[%s0] sm:$0xff]
  %v4 = vld [vmem:[%s1] sm:$0xff]
  %5 = xla_tuple %v3, %v4
  %6 = xla_tuple %5
  %v7 = vmul.f32 %v3, %v4
  %8 = xla_tuple %v7
  %9 = vst [vmem:[%s2] sm:$0xff] %v7
  %s10 = scalar_lea.vmem %s0, 8
  %v11 = vld [vmem:[%s10] sm:$0xff]
  %s12 = scalar_lea.vmem %s1, 8
  %v13 = vld [vmem:[%s12] sm:$0xff]
  %14 = xla_tuple %v11, %v13
  %15 = xla_tuple %14
  %v16 = vmul.f32 %v11, %v13
  %17 = xla_tuple %v16
  %s18 = scalar_lea.vmem %s2, 8
  %19 = vst [vmem:[%s18] sm:$0xff] %v16
  %s20 = scalar_lea.vmem %s0, 16
  %v21 = vld [vmem:[%s20] sm:$0xff]
  %s22 = scalar_lea.vmem %s1, 16
  %v23 = vld [vmem:[%s22] sm:$0xff]
  %24 = xla_tuple %v21, %v23
  %25 = xla_tuple %24
  %v26 = vmul.f32 %v21, %v23
  %27 = xla_tuple %v26
  %s28 = scalar_lea.vmem %s2, 16
  %29 = vst [vmem:[%s28] sm:$0xff] %v26
  %s30 = scalar_lea.vmem %s0, 24
  %v31 = vld [vmem:[%s30] sm:$0xff]
  %s32 = scalar_lea.vmem %s1, 24
  %v33 = vld [vmem:[%s32] sm:$0xff]
  %34 = xla_tuple %v31, %v33
  %35 = xla_tuple %34
  %v36 = vmul.f32 %v31, %v33
  %37 = xla_tuple %v36
  %s38 = scalar_lea.vmem %s2, 24
  %39 = vst [vmem:[%s38] sm:$0xff] %v36
  %s40 = scalar_lea.vmem %s0, 32
  %v41 = vld [vmem:[%s40] sm:$0xff]
  %s42 = scalar_lea.vmem %s1, 32
  %v43 = vld [vmem:[%s42] sm:$0xff]
  %44 = xla_tuple %v41, %v43
  %45 = xla_tuple %44
  %v46 = vmul.f32 %v41, %v43
  %47 = xla_tuple %v46
  %s48 = scalar_lea.vmem %s2, 32
  %49 = vst [vmem:[%s48] sm:$0xff] %v46
  %s50 = scalar_lea.vmem %s0, 40
  %v51 = vld [vmem:[%s50] sm:$0xff]
  %s52 = scalar_lea.vmem %s1, 40
  %v53 = vld [vmem:[%s52] sm:$0xff]
  %54 = xla_tuple %v51, %v53
  %55 = xla_tuple %54
  %v56 = vmul.f32 %v51, %v53
  %57 = xla_tuple %v56
  %s58 = scalar_lea.vmem %s2, 40
  %59 = vst [vmem:[%s58] sm:$0xff] %v56
  %s60 = scalar_lea.vmem %s0, 48
  %v61 = vld [vmem:[%s60] sm:$0xff]
  %s62 = scalar_lea.vmem %s1, 48
  %v63 = vld [vmem:[%s62] sm:$0xff]
  %64 = xla_tuple %v61, %v63
  %65 = xla_tuple %64
  %v66 = vmul.f32 %v61, %v63
  %67 = xla_tuple %v66
  %s68 = scalar_lea.vmem %s2, 48
  %69 = vst [vmem:[%s68] sm:$0xff] %v66
  %s70 = scalar_lea.vmem %s0, 56
  %v71 = vld [vmem:[%s70] sm:$0xff]
  %s72 = scalar_lea.vmem %s1, 56
  %v73 = vld [vmem:[%s72] sm:$0xff]
  %74 = xla_tuple %v71, %v73
  %75 = xla_tuple %74
  %v76 = vmul.f32 %v71, %v73
  %77 = xla_tuple %v76
  %s78 = scalar_lea.vmem %s2, 56
  %79 = vst [vmem:[%s78] sm:$0xff] %v76
  %s80 = scalar_lea.vmem %s0, 64
  %v81 = vld [vmem:[%s80] sm:$0xff]
  %s82 = scalar_lea.vmem %s1, 64
  %v83 = vld [vmem:[%s82] sm:$0xff]
  %84 = xla_tuple %v81, %v83
  %85 = xla_tuple %84
  %v86 = vmul.f32 %v81, %v83
  %87 = xla_tuple %v86
  %s88 = scalar_lea.vmem %s2, 64
  %89 = vst [vmem:[%s88] sm:$0xff] %v86
  %s90 = scalar_lea.vmem %s0, 72
  %v91 = vld [vmem:[%s90] sm:$0xff]
  %s92 = scalar_lea.vmem %s1, 72
  %v93 = vld [vmem:[%s92] sm:$0xff]
  %94 = xla_tuple %v91, %v93
  %95 = xla_tuple %94
  %v96 = vmul.f32 %v91, %v93
  %97 = xla_tuple %v96
  %s98 = scalar_lea.vmem %s2, 72
  %99 = vst [vmem:[%s98] sm:$0xff] %v96
  %s100 = scalar_lea.vmem %s0, 80
  %v101 = vld [vmem:[%s100] sm:$0xff]
  %s102 = scalar_lea.vmem %s1, 80
  %v103 = vld [vmem:[%s102] sm:$0xff]
  %104 = xla_tuple %v101, %v103
  %105 = xla_tuple %104
  %v106 = vmul.f32 %v101, %v103
  %107 = xla_tuple %v106
  %s108 = scalar_lea.vmem %s2, 80
  %109 = vst [vmem:[%s108] sm:$0xff] %v106
  %s110 = scalar_lea.vmem %s0, 88
  %v111 = vld [vmem:[%s110] sm:$0xff]
  %s112 = scalar_lea.vmem %s1, 88
  %v113 = vld [vmem:[%s112] sm:$0xff]
  %114 = xla_tuple %v111, %v113
  %115 = xla_tuple %114
  %v116 = vmul.f32 %v111, %v113
  %117 = xla_tuple %v116
  %s118 = scalar_lea.vmem %s2, 88
  %119 = vst [vmem:[%s118] sm:$0xff] %v116
  %s120 = scalar_lea.vmem %s0, 96
  %v121 = vld [vmem:[%s120] sm:$0xff]
  %s122 = scalar_lea.vmem %s1, 96
  %v123 = vld [vmem:[%s122] sm:$0xff]
  %124 = xla_tuple %v121, %v123
  %125 = xla_tuple %124
  %v126 = vmul.f32 %v121, %v123
  %127 = xla_tuple %v126
  %s128 = scalar_lea.vmem %s2, 96
  %129 = vst [vmem:[%s128] sm:$0xff] %v126
  %s130 = scalar_lea.vmem %s0, 104
  %v131 = vld [vmem:[%s130] sm:$0xff]
  %s132 = scalar_lea.vmem %s1, 104
  %v133 = vld [vmem:[%s132] sm:$0xff]
  %134 = xla_tuple %v131, %v133
  %135 = xla_tuple %134
  %v136 = vmul.f32 %v131, %v133
  %137 = xla_tuple %v136
  %s138 = scalar_lea.vmem %s2, 104
  %139 = vst [vmem:[%s138] sm:$0xff] %v136
  %s140 = scalar_lea.vmem %s0, 112
  %v141 = vld [vmem:[%s140] sm:$0xff]
  %s142 = scalar_lea.vmem %s1, 112
  %v143 = vld [vmem:[%s142] sm:$0xff]
  %144 = xla_tuple %v141, %v143
  %145 = xla_tuple %144
  %v146 = vmul.f32 %v141, %v143
  %147 = xla_tuple %v146
  %s148 = scalar_lea.vmem %s2, 112
  %149 = vst [vmem:[%s148] sm:$0xff] %v146
  %s150 = scalar_lea.vmem %s0, 120
  %v151 = vld [vmem:[%s150] sm:$0xff]
  %s152 = scalar_lea.vmem %s1, 120
  %v153 = vld [vmem:[%s152] sm:$0xff]
  %154 = xla_tuple %v151, %v153
  %155 = xla_tuple %154
  %v156 = vmul.f32 %v151, %v153
  %157 = xla_tuple %v156
  %s158 = scalar_lea.vmem %s2, 120
  %159 = vst [vmem:[%s158] sm:$0xff] %v156
  %s160 = scalar_lea.vmem %s0, 128
  %v161 = vld [vmem:[%s160] sm:$0xff]
  %s162 = scalar_lea.vmem %s1, 128
  %v163 = vld [vmem:[%s162] sm:$0xff]
  %164 = xla_tuple %v161, %v163
  %165 = xla_tuple %164
  %v166 = vmul.f32 %v161, %v163
  %167 = xla_tuple %v166
  %s168 = scalar_lea.vmem %s2, 128
  %169 = vst [vmem:[%s168] sm:$0xff] %v166
  %s170 = scalar_lea.vmem %s0, 136
  %v171 = vld [vmem:[%s170] sm:$0xff]
  %s172 = scalar_lea.vmem %s1, 136
  %v173 = vld [vmem:[%s172] sm:$0xff]
  %174 = xla_tuple %v171, %v173
  %175 = xla_tuple %174
  %v176 = vmul.f32 %v171, %v173
  %177 = xla_tuple %v176
  %s178 = scalar_lea.vmem %s2, 136
  %179 = vst [vmem:[%s178] sm:$0xff] %v176

// kernel: tile.8
$region0: #{tile.8}
  #allocation0 [shape = 's32[1]{0}', space=sflag, size = 0x4, scoped, tag = 'scoped memory for tile.8']
  %s0 = inlined_call_operand.vmem [shape: f32[6], index: 0, kind: input, shape index: {}]
  %s1 = inlined_call_operand.vmem [shape: f32[4,6], index: 1, kind: output, shape index: {}]
  // Predicated region
  $region2: #{tile.8} parent=0 // pred_check
    _
  $region3: #{tile.8} parent=0 // pred_check_branch
    %3 = sbr.rel (0) target = $region5
  $region4: #{tile.8} parent=0 // pred_region
    _
  $region5: #{tile.8} parent=0 // pred_fallthru
    _
  %v4 = vld [vmem:[%s0] ss:$0 sm:$0xff]
  %5 = vst [vmem:[%s1] sm:$0xf] %v4

// kernel: tile.9
$region0: #{tile.9}
  %s0 = inlined_call_operand.vmem [shape: f32[4,6], index: 0, kind: input, shape index: {}]
  %s1 = inlined_call_operand.vmem [shape: f32[1,24], index: 1, kind: output, shape index: {}]
  $region1: #{tile.9} parent=0
    #allocation0 [shape = 'u8[4096]{0}', space=vmem, size = 0x1000, scoped, tag = 'scoped mem for output reshape']
    #allocation1 [shape = 'u8[4096]{0}', space=vmem, size = 0x1000, scoped, tag = 'scoped mem for input reshape']
    %s3 = ssub.s32 16, 1
    %v4 = vld [vmem:[%s0] sm:%s3]
    %5 = vst [vmem:[#allocation1] sm:%s3] %v4
    %v6 = vld [vmem:[#allocation1] sm:$0x1]
    %vm7 = vcmask 48128
    %8 = vst.msk [vmem:[#allocation0] sm:$0x1] %vm7, %v6
    %s9 = scalar_lea.vmem [#allocation1], 3
    %v10 = vld [vmem:[%s9] sm:$0x1]
    %11 = vrot.lane.b32.xlu0 %v10, 18
    %v12 = vpop.permute.xlu0 %11
    %vm13 = vcmask 195728
    %14 = vst.msk [vmem:[#allocation0] sm:$0x1] %vm13, %v12
    %s15 = scalar_lea.vmem [#allocation1], 2
    %v16 = vld [vmem:[%s15] sm:$0x1]
    %17 = vrot.lane.b32.xlu0 %v16, 12
    %v18 = vpop.permute.xlu0 %17
    %vm19 = vcmask 146528
    %20 = vst.msk [vmem:[#allocation0] sm:$0x1] %vm19, %v18
    %s21 = scalar_lea.vmem [#allocation1], 1
    %v22 = vld [vmem:[%s21] sm:$0x1]
    %23 = vrot.lane.b32.xlu0 %v22, 6
    %v24 = vpop.permute.xlu0 %23
    %vm25 = vcmask 97328
    %26 = vst.msk [vmem:[#allocation0] sm:$0x1] %vm25, %v24
    %s28 = ssub.s32 2, 1
    %v29 = vld [vmem:[#allocation0] sm:%s28]
    %s31 = ssub.s32 2, 1
    %32 = vst [vmem:[%s1] sm:%s31] %v29

// kernel: cnn_custom_forward.1
$region0: #{cnn_custom_forward.1}
  #allocation0 [shape = 'u32[]', space=smem, size = 0x4, offset = 0x4, fixed_abs, tag = 'smem constant byte address 0x4 - core index']
  #allocation1 [shape = 'u32[72,128]{1,0:T(1,128)}', space=vmem, size = 0x9000, scoped, tag = 'internal scratch']
  #allocation2 [shape = 'f32[144,192]{1,0:T(8,128)}', space=vmem, size = 0x24000, scoped, tag = 'scratch operand']
  #allocation3 [shape = 'f32[120,216]{1,0:T(8,128)}', space=vmem, size = 0x1e000, scoped, tag = 'scratch operand']
  #allocation4 [shape = 'f32[84,400]{1,0:T(8,128)}', space=vmem, size = 0x2c000, scoped, tag = 'scratch operand']
  %s0 = inlined_call_operand.vmem [shape: f32[320,48], index: 0, kind: input, shape index: {}]
  %s1 = inlined_call_operand.vmem [shape: f32[192,96], index: 1, kind: input, shape index: {}]
  %s2 = inlined_call_operand.vmem [shape: f32[1,24], index: 2, kind: input, shape index: {}]
  %s3 = inlined_call_operand.vmem [shape: f32[216,64], index: 3, kind: input, shape index: {}]
  %s4 = inlined_call_operand.vmem [shape: f32[1,16], index: 4, kind: input, shape index: {}]
  %s5 = inlined_call_operand.vmem [shape: f32[400,128], index: 5, kind: input, shape index: {}]
  %s6 = inlined_call_operand.vmem [shape: f32[1,128], index: 6, kind: input, shape index: {}]
  %s7 = inlined_call_operand.vmem [shape: f32[128,128], index: 7, kind: input, shape index: {}]
  %s8 = inlined_call_operand.vmem [shape: f32[1,128], index: 8, kind: input, shape index: {}]
  %s9 = inlined_call_operand.vmem [shape: f32[128,128], index: 9, kind: input, shape index: {}]
  %s10 = inlined_call_operand.vmem [shape: f32[1,128], index: 10, kind: input, shape index: {}]
  %s11 = inlined_call_operand.hbm [shape: f32[2,2,128], index: 11, kind: output, shape index: {}]
  %s12 = sld [smem:[#allocation0]]
  $region77: #{cnn_custom_forward.1} parent=0
    _
  %s14 = ssub.s32 1, %s12
  %s15 = scalar_select 0, %s14, %s12
  $region1: #{cnn_custom_forward.1} parent=0
    #allocation5 [shape = 'u8[2048]{0}', space=vmem, size = 0x800, scoped, tag = 'output window, operand 0']
    #allocation6 [shape = 's32[2]{0}', space=sflag, size = 0x8, scoped, tag = 'scoped memory for cnn_custom_forward.1']
    %16 = vsyncpa [#allocation6], 0
    %s17 = scalar_lea.sflag [#allocation6], 1
    %18 = vsyncpa %s17, 0
    loop: start=0, step=1, limit=4
    $region2: #{cnn_custom_forward.1} parent=1 // loop_pre_header
      _
    $region3: #{cnn_custom_forward.1} parent=1 // loop_header
      %s20 = sphi 0, %s24
      %p21 = scmp.ge.s32.totalorder %s20, 4
      %s30 = sphi 0, %s32
      %s33 = sphi 0, %s30
      %s34 = sphi 0, %s33
      %s50 = sphi 0, %s34
      %s54 = sphi 0, %s54
      %s56 = sphi 0, %s54
      %s57 = sphi 0, %s56
      %s71 = sphi 0, %s57
      %s75 = sphi 0, %s75
      %s77 = sphi 0, %s75
      %s78 = sphi 0, %s77
      %s92 = sphi 0, %s78
      %s96 = sphi 0, %s96
      %s98 = sphi 0, %s96
      %s99 = sphi 0, %s98
      %s113 = sphi 0, %s99
      %s117 = sphi 0, %s117
      %s119 = sphi 0, %s117
      %s120 = sphi 0, %s119
      %s134 = sphi 0, %s120
      %s138 = sphi 0, %s138
      %s140 = sphi 0, %s138
      %s141 = sphi 0, %s140
      %s155 = sphi 0, %s141
      %s159 = sphi 0, %s159
      %s161 = sphi 0, %s159
      %s162 = sphi 0, %s161
      %s176 = sphi 0, %s162
      %s180 = sphi 0, %s180
      %s182 = sphi 0, %s180
      %s183 = sphi 0, %s182
      %s197 = sphi 0, %s183
      %s201 = sphi 0, %s201
      %s203 = sphi 0, %s201
      %s204 = sphi 0, %s203
      %s218 = sphi 0, %s204
      %s222 = sphi 0, %s222
      %s224 = sphi 0, %s222
      %s225 = sphi 0, %s224
      %s239 = sphi 0, %s225
      %s243 = sphi 0, %s243
      %s245 = sphi 0, %s243
      %s246 = sphi 0, %s245
      %s260 = sphi 0, %s246
      %s266 = sphi 0, %s268
      %s269 = sphi 0, %s266
      %s270 = sphi 0, %s269
      %s286 = sphi 0, %s270
    $region4: #{cnn_custom_forward.1} parent=1 // loop_header_branch
      %23 = sbr.rel (%p21) target = $region8
    $region5: #{cnn_custom_forward.1} parent=1 // loop_body
      %s25 = ssub.s32 %s20, 1
      %s26 = ssub.s32 %s20, 2
      %s27 = sadd.s32 %s20, 1
      %s28 = ssub.s32 %s20, %s27
      %p29 = scmp.eq.s32.totalorder %s28, 0
      %s31 = sadd.s32 %s30, 1
      %s32 = scalar_select %p29, %s30, %s31
      %p35 = pneg %p29
      %p36 = scmp.eq.s32.totalorder %s20, 1
      %p37 = por %p35, %p36
      %p38 = scmp.ne.s32.totalorder %s30, %s33
      %p39 = scmp.eq.s32.totalorder %s20, 0
      %p40 = por %p38, %p39
      %p41 = scmp.ne.s32.totalorder %s30, %s33
      %p42 = scmp.eq.s32.totalorder %s25, 1
      %p43 = por %p41, %p42
      %p44 = scmp.ne.s32.totalorder %s33, %s34
      %p45 = scmp.eq.s32.totalorder %s25, 0
      %p46 = por %p44, %p45
      %p47 = scmp.ne.s32.totalorder %s33, %s34
      %p48 = scmp.eq.s32.totalorder %s26, 1
      %p49 = por %p47, %p48
      %p51 = scmp.ne.s32.totalorder %s34, %s50
      %p52 = scmp.eq.s32.totalorder %s26, 0
      %p53 = por %p51, %p52
      %s55 = sadd.s32 %s54, 1
      %p58 = scmp.eq.s32.totalorder %s20, 1
      %p59 = scmp.ne.s32.totalorder %s54, %s56
      %p60 = scmp.eq.s32.totalorder %s20, 0
      %p61 = por %p59, %p60
      %p62 = scmp.ne.s32.totalorder %s54, %s56
      %p63 = scmp.eq.s32.totalorder %s25, 1
      %p64 = por %p62, %p63
      %p65 = scmp.ne.s32.totalorder %s56, %s57
      %p66 = scmp.eq.s32.totalorder %s25, 0
      %p67 = por %p65, %p66
      %p68 = scmp.ne.s32.totalorder %s56, %s57
      %p69 = scmp.eq.s32.totalorder %s26, 1
      %p70 = por %p68, %p69
      %p72 = scmp.ne.s32.totalorder %s57, %s71
      %p73 = scmp.eq.s32.totalorder %s26, 0
      %p74 = por %p72, %p73
      %s76 = sadd.s32 %s75, 1
      %p79 = scmp.eq.s32.totalorder %s20, 1
      %p80 = scmp.ne.s32.totalorder %s75, %s77
      %p81 = scmp.eq.s32.totalorder %s20, 0
      %p82 = por %p80, %p81
      %p83 = scmp.ne.s32.totalorder %s75, %s77
      %p84 = scmp.eq.s32.totalorder %s25, 1
      %p85 = por %p83, %p84
      %p86 = scmp.ne.s32.totalorder %s77, %s78
      %p87 = scmp.eq.s32.totalorder %s25, 0
      %p88 = por %p86, %p87
      %p89 = scmp.ne.s32.totalorder %s77, %s78
      %p90 = scmp.eq.s32.totalorder %s26, 1
      %p91 = por %p89, %p90
      %p93 = scmp.ne.s32.totalorder %s78, %s92
      %p94 = scmp.eq.s32.totalorder %s26, 0
      %p95 = por %p93, %p94
      %s97 = sadd.s32 %s96, 1
      %p100 = scmp.eq.s32.totalorder %s20, 1
      %p101 = scmp.ne.s32.totalorder %s96, %s98
      %p102 = scmp.eq.s32.totalorder %s20, 0
      %p103 = por %p101, %p102
      %p104 = scmp.ne.s32.totalorder %s96, %s98
      %p105 = scmp.eq.s32.totalorder %s25, 1
      %p106 = por %p104, %p105
      %p107 = scmp.ne.s32.totalorder %s98, %s99
      %p108 = scmp.eq.s32.totalorder %s25, 0
      %p109 = por %p107, %p108
      %p110 = scmp.ne.s32.totalorder %s98, %s99
      %p111 = scmp.eq.s32.totalorder %s26, 1
      %p112 = por %p110, %p111
      %p114 = scmp.ne.s32.totalorder %s99, %s113
      %p115 = scmp.eq.s32.totalorder %s26, 0
      %p116 = por %p114, %p115
      %s118 = sadd.s32 %s117, 1
      %p121 = scmp.eq.s32.totalorder %s20, 1
      %p122 = scmp.ne.s32.totalorder %s117, %s119
      %p123 = scmp.eq.s32.totalorder %s20, 0
      %p124 = por %p122, %p123
      %p125 = scmp.ne.s32.totalorder %s117, %s119
      %p126 = scmp.eq.s32.totalorder %s25, 1
      %p127 = por %p125, %p126
      %p128 = scmp.ne.s32.totalorder %s119, %s120
      %p129 = scmp.eq.s32.totalorder %s25, 0
      %p130 = por %p128, %p129
      %p131 = scmp.ne.s32.totalorder %s119, %s120
      %p132 = scmp.eq.s32.totalorder %s26, 1
      %p133 = por %p131, %p132
      %p135 = scmp.ne.s32.totalorder %s120, %s134
      %p136 = scmp.eq.s32.totalorder %s26, 0
      %p137 = por %p135, %p136
      %s139 = sadd.s32 %s138, 1
      %p142 = scmp.eq.s32.totalorder %s20, 1
      %p143 = scmp.ne.s32.totalorder %s138, %s140
      %p144 = scmp.eq.s32.totalorder %s20, 0
      %p145 = por %p143, %p144
      %p146 = scmp.ne.s32.totalorder %s138, %s140
      %p147 = scmp.eq.s32.totalorder %s25, 1
      %p148 = por %p146, %p147
      %p149 = scmp.ne.s32.totalorder %s140, %s141
      %p150 = scmp.eq.s32.totalorder %s25, 0
      %p151 = por %p149, %p150
      %p152 = scmp.ne.s32.totalorder %s140, %s141
      %p153 = scmp.eq.s32.totalorder %s26, 1
      %p154 = por %p152, %p153
      %p156 = scmp.ne.s32.totalorder %s141, %s155
      %p157 = scmp.eq.s32.totalorder %s26, 0
      %p158 = por %p156, %p157
      %s160 = sadd.s32 %s159, 1
      %p163 = scmp.eq.s32.totalorder %s20, 1
      %p164 = scmp.ne.s32.totalorder %s159, %s161
      %p165 = scmp.eq.s32.totalorder %s20, 0
      %p166 = por %p164, %p165
      %p167 = scmp.ne.s32.totalorder %s159, %s161
      %p168 = scmp.eq.s32.totalorder %s25, 1
      %p169 = por %p167, %p168
      %p170 = scmp.ne.s32.totalorder %s161, %s162
      %p171 = scmp.eq.s32.totalorder %s25, 0
      %p172 = por %p170, %p171
      %p173 = scmp.ne.s32.totalorder %s161, %s162
      %p174 = scmp.eq.s32.totalorder %s26, 1
      %p175 = por %p173, %p174
      %p177 = scmp.ne.s32.totalorder %s162, %s176
      %p178 = scmp.eq.s32.totalorder %s26, 0
      %p179 = por %p177, %p178
      %s181 = sadd.s32 %s180, 1
      %p184 = scmp.eq.s32.totalorder %s20, 1
      %p185 = scmp.ne.s32.totalorder %s180, %s182
      %p186 = scmp.eq.s32.totalorder %s20, 0
      %p187 = por %p185, %p186
      %p188 = scmp.ne.s32.totalorder %s180, %s182
      %p189 = scmp.eq.s32.totalorder %s25, 1
      %p190 = por %p188, %p189
      %p191 = scmp.ne.s32.totalorder %s182, %s183
      %p192 = scmp.eq.s32.totalorder %s25, 0
      %p193 = por %p191, %p192
      %p194 = scmp.ne.s32.totalorder %s182, %s183
      %p195 = scmp.eq.s32.totalorder %s26, 1
      %p196 = por %p194, %p195
      %p198 = scmp.ne.s32.totalorder %s183, %s197
      %p199 = scmp.eq.s32.totalorder %s26, 0
      %p200 = por %p198, %p199
      %s202 = sadd.s32 %s201, 1
      %p205 = scmp.eq.s32.totalorder %s20, 1
      %p206 = scmp.ne.s32.totalorder %s201, %s203
      %p207 = scmp.eq.s32.totalorder %s20, 0
      %p208 = por %p206, %p207
      %p209 = scmp.ne.s32.totalorder %s201, %s203
      %p210 = scmp.eq.s32.totalorder %s25, 1
      %p211 = por %p209, %p210
      %p212 = scmp.ne.s32.totalorder %s203, %s204
      %p213 = scmp.eq.s32.totalorder %s25, 0
      %p214 = por %p212, %p213
      %p215 = scmp.ne.s32.totalorder %s203, %s204
      %p216 = scmp.eq.s32.totalorder %s26, 1
      %p217 = por %p215, %p216
      %p219 = scmp.ne.s32.totalorder %s204, %s218
      %p220 = scmp.eq.s32.totalorder %s26, 0
      %p221 = por %p219, %p220
      %s223 = sadd.s32 %s222, 1
      %p226 = scmp.eq.s32.totalorder %s20, 1
      %p227 = scmp.ne.s32.totalorder %s222, %s224
      %p228 = scmp.eq.s32.totalorder %s20, 0
      %p229 = por %p227, %p228
      %p230 = scmp.ne.s32.totalorder %s222, %s224
      %p231 = scmp.eq.s32.totalorder %s25, 1
      %p232 = por %p230, %p231
      %p233 = scmp.ne.s32.totalorder %s224, %s225
      %p234 = scmp.eq.s32.totalorder %s25, 0
      %p235 = por %p233, %p234
      %p236 = scmp.ne.s32.totalorder %s224, %s225
      %p237 = scmp.eq.s32.totalorder %s26, 1
      %p238 = por %p236, %p237
      %p240 = scmp.ne.s32.totalorder %s225, %s239
      %p241 = scmp.eq.s32.totalorder %s26, 0
      %p242 = por %p240, %p241
      %s244 = sadd.s32 %s243, 1
      %p247 = scmp.eq.s32.totalorder %s20, 1
      %p248 = scmp.ne.s32.totalorder %s243, %s245
      %p249 = scmp.eq.s32.totalorder %s20, 0
      %p250 = por %p248, %p249
      %p251 = scmp.ne.s32.totalorder %s243, %s245
      %p252 = scmp.eq.s32.totalorder %s25, 1
      %p253 = por %p251, %p252
      %p254 = scmp.ne.s32.totalorder %s245, %s246
      %p255 = scmp.eq.s32.totalorder %s25, 0
      %p256 = por %p254, %p255
      %p257 = scmp.ne.s32.totalorder %s245, %s246
      %p258 = scmp.eq.s32.totalorder %s26, 1
      %p259 = por %p257, %p258
      %p261 = scmp.ne.s32.totalorder %s246, %s260
      %p262 = scmp.eq.s32.totalorder %s26, 0
      %p263 = por %p261, %p262
      %s264 = ssub.s32 %s20, %s27
      %p265 = scmp.eq.s32.totalorder %s264, 0
      %s267 = sadd.s32 %s266, 1
      %s268 = scalar_select %p265, %s266, %s267
      %p271 = pneg %p265
      %p272 = scmp.eq.s32.totalorder %s20, 1
      %p273 = por %p271, %p272
      %p274 = scmp.ne.s32.totalorder %s266, %s269
      %p275 = scmp.eq.s32.totalorder %s20, 0
      %p276 = por %p274, %p275
      %p277 = scmp.ne.s32.totalorder %s266, %s269
      %p278 = scmp.eq.s32.totalorder %s25, 1
      %p279 = por %p277, %p278
      %p280 = scmp.ne.s32.totalorder %s269, %s270
      %p281 = scmp.eq.s32.totalorder %s25, 0
      %p282 = por %p280, %p281
      %p283 = scmp.ne.s32.totalorder %s269, %s270
      %p284 = scmp.eq.s32.totalorder %s26, 1
      %p285 = por %p283, %p284
      %p287 = scmp.ne.s32.totalorder %s270, %s286
      %p288 = scmp.eq.s32.totalorder %s26, 0
      %p289 = por %p287, %p288
      %p290 = scmp.le.s32.totalorder 1, %s20
      %p291 = scmp.lt.s32.totalorder %s20, 3
      %p292 = pnand %p290, %p291
      %p293 = pneg %p292
      // Predicated region
      $region9: #{cnn_custom_forward.1} parent=5 // pred_check
        _
      $region10: #{cnn_custom_forward.1} parent=5 // pred_check_branch
        %295 = sbr.rel (%p292) target = $region12
      $region11: #{cnn_custom_forward.1} parent=5 // pred_region
        %s296 = ssub.s32 %s20, 1
        // Predicated region
        $region13: #{cnn_custom_forward.1} parent=11 // pred_check
          %p297 = pneg %p67
        $region14: #{cnn_custom_forward.1} parent=11 // pred_check_branch
          %299 = sbr.rel (%p297) target = $region16
        $region15: #{cnn_custom_forward.1} parent=11 // pred_region
          _
        $region16: #{cnn_custom_forward.1} parent=11 // pred_fallthru
          _
        // Predicated region
        $region17: #{cnn_custom_forward.1} parent=11 // pred_check
          %p300 = pneg %p88
        $region18: #{cnn_custom_forward.1} parent=11 // pred_check_branch
          %302 = sbr.rel (%p300) target = $region20
        $region19: #{cnn_custom_forward.1} parent=11 // pred_region
          _
        $region20: #{cnn_custom_forward.1} parent=11 // pred_fallthru
          _
        // Predicated region
        $region21: #{cnn_custom_forward.1} parent=11 // pred_check
          %p303 = pneg %p109
        $region22: #{cnn_custom_forward.1} parent=11 // pred_check_branch
          %305 = sbr.rel (%p303) target = $region24
        $region23: #{cnn_custom_forward.1} parent=11 // pred_region
          _
        $region24: #{cnn_custom_forward.1} parent=11 // pred_fallthru
          _
        // Predicated region
        $region25: #{cnn_custom_forward.1} parent=11 // pred_check
          %p306 = pneg %p130
        $region26: #{cnn_custom_forward.1} parent=11 // pred_check_branch
          %308 = sbr.rel (%p306) target = $region28
        $region27: #{cnn_custom_forward.1} parent=11 // pred_region
          _
        $region28: #{cnn_custom_forward.1} parent=11 // pred_fallthru
          _
        // Predicated region
        $region29: #{cnn_custom_forward.1} parent=11 // pred_check
          %p309 = pneg %p151
        $region30: #{cnn_custom_forward.1} parent=11 // pred_check_branch
          %311 = sbr.rel (%p309) target = $region32
        $region31: #{cnn_custom_forward.1} parent=11 // pred_region
          _
        $region32: #{cnn_custom_forward.1} parent=11 // pred_fallthru
          _
        // Predicated region
        $region33: #{cnn_custom_forward.1} parent=11 // pred_check
          %p312 = pneg %p172
        $region34: #{cnn_custom_forward.1} parent=11 // pred_check_branch
          %314 = sbr.rel (%p312) target = $region36
        $region35: #{cnn_custom_forward.1} parent=11 // pred_region
          _
        $region36: #{cnn_custom_forward.1} parent=11 // pred_fallthru
          _
        // Predicated region
        $region37: #{cnn_custom_forward.1} parent=11 // pred_check
          %p315 = pneg %p193
        $region38: #{cnn_custom_forward.1} parent=11 // pred_check_branch
          %317 = sbr.rel (%p315) target = $region40
        $region39: #{cnn_custom_forward.1} parent=11 // pred_region
          _
        $region40: #{cnn_custom_forward.1} parent=11 // pred_fallthru
          _
        // Predicated region
        $region41: #{cnn_custom_forward.1} parent=11 // pred_check
          %p318 = pneg %p214
        $region42: #{cnn_custom_forward.1} parent=11 // pred_check_branch
          %320 = sbr.rel (%p318) target = $region44
        $region43: #{cnn_custom_forward.1} parent=11 // pred_region
          _
        $region44: #{cnn_custom_forward.1} parent=11 // pred_fallthru
          _
        // Predicated region
        $region45: #{cnn_custom_forward.1} parent=11 // pred_check
          %p321 = pneg %p235
        $region46: #{cnn_custom_forward.1} parent=11 // pred_check_branch
          %323 = sbr.rel (%p321) target = $region48
        $region47: #{cnn_custom_forward.1} parent=11 // pred_region
          _
        $region48: #{cnn_custom_forward.1} parent=11 // pred_fallthru
          _
        // Predicated region
        $region49: #{cnn_custom_forward.1} parent=11 // pred_check
          %p324 = pneg %p256
        $region50: #{cnn_custom_forward.1} parent=11 // pred_check_branch
          %326 = sbr.rel (%p324) target = $region52
        $region51: #{cnn_custom_forward.1} parent=11 // pred_region
          _
        $region52: #{cnn_custom_forward.1} parent=11 // pred_fallthru
          _
      $region12: #{cnn_custom_forward.1} parent=5 // pred_fallthru
        _
      %p327 = scmp.lt.s32.totalorder %s20, 2
      // Predicated region
      $region53: #{cnn_custom_forward.1} parent=5 // pred_check
        %p328 = pneg %p327
      $region54: #{cnn_custom_forward.1} parent=5 // pred_check_branch
        %330 = sbr.rel (%p328) target = $region56
      $region55: #{cnn_custom_forward.1} parent=5 // pred_region
        // Predicated region
        $region57: #{cnn_custom_forward.1} parent=55 // pred_check
          %p331 = pneg %p40
        $region58: #{cnn_custom_forward.1} parent=55 // pred_check_branch
          %333 = sbr.rel (%p331) target = $region60
        $region59: #{cnn_custom_forward.1} parent=55 // pred_region
          %s334 = smul.u32 20, %s20
          %p335 = scmp.lt.s32.totalorder %s334, 39
          %s336 = scalar_select %p335, %s334, 39
          %s337 = smul.addr %s336, 8
          %s338 = scalar_lea.vmem %s0, %s337
          %s339 = smul.u32 20, %s20
        $region60: #{cnn_custom_forward.1} parent=55 // pred_fallthru
          _
      $region56: #{cnn_custom_forward.1} parent=5 // pred_fallthru
        _
      %p340 = scmp.le.s32.totalorder 1, %s20
      %p341 = scmp.lt.s32.totalorder %s20, 3
      %p342 = pnand %p340, %p341
      %p343 = pneg %p342
      // Predicated region
      $region61: #{cnn_custom_forward.1} parent=5 // pred_check
        _
      $region62: #{cnn_custom_forward.1} parent=5 // pred_check_branch
        %345 = sbr.rel (%p342) target = $region64
      $region63: #{cnn_custom_forward.1} parent=5 // pred_region
        %s346 = ssub.s32 %s20, 1
        %s347 = smul.u32 20, %s25
        %p348 = scmp.lt.s32.totalorder %s347, 39
        %s349 = scalar_select %p348, %s347, 39
        %s350 = smul.addr %s349, 8
        %s351 = scalar_lea.vmem %s0, %s350
        %p352 = pneg %p46
        %p353 = pneg %p43
        %p354 = pneg %p67
        %p355 = pneg %p64
        %p356 = pneg %p88
        %p357 = pneg %p85
        %p358 = pneg %p109
        %p359 = pneg %p106
        %p360 = pneg %p130
        %p361 = pneg %p127
        %p362 = pneg %p151
        %p363 = pneg %p148
        %p364 = pneg %p172
        %p365 = pneg %p169
        %p366 = pneg %p193
        %p367 = pneg %p190
        %p368 = pneg %p214
        %p369 = pneg %p211
        %p370 = pneg %p235
        %p371 = pneg %p232
        %p372 = pneg %p256
        %p373 = pneg %p253
        %p374 = pneg %p282
        %p375 = pneg %p279
        %s376 = sand.u32 %s269, 1
        %s377 = scalar_lea.sflag [#allocation6], %s376
        %s378 = sand.u32 %s269, 1
        %s379 = smul.addr %s378, 2
        %s380 = scalar_lea.vmem [#allocation5], %s379
        %s381 = smul.u32 20, %s25
        %p382 = scmp.lt.s32.totalorder %s381, 39
        %s383 = scalar_select %p382, %s381, 39
        %s384 = smul.addr %s383, 8
        %s385 = scalar_lea.vmem %s0, %s384
        %s386 = smul.u32 20, %s25
        %v387 = vld [vmem:[%s385] sm:$0xff]
        %v388 = vld [vmem:[%s385 + $0x8] sm:$0xff]
        %v389 = vld [vmem:[%s385 + $0x10] sm:$0xff]
        %v390 = vld [vmem:[%s385 + $0x18] sm:$0xff]
        %v391 = vld [vmem:[%s385 + $0x20] sm:$0xff]
        %v392 = vld [vmem:[%s385 + $0x28] sm:$0xff]
        %v393 = vld [vmem:[%s385 + $0x30] sm:$0xff]
        %v394 = vld [vmem:[%s385 + $0x38] sm:$0xff]
        %v395 = vld [vmem:[%s385 + $0x40] sm:$0xff]
        %v396 = vld [vmem:[%s385 + $0x48] sm:$0xff]
        %v397 = vld [vmem:[%s385 + $0x50] sm:$0xff]
        %v398 = vld [vmem:[%s385 + $0x58] sm:$0xff]
        %v399 = vld [vmem:[%s385 + $0x60] sm:$0xff]
        %v400 = vld [vmem:[%s385 + $0x68] sm:$0xff]
        %v401 = vld [vmem:[%s385 + $0x70] sm:$0xff]
        %v402 = vld [vmem:[%s385 + $0x78] sm:$0xff]
        %v403 = vld [vmem:[%s385 + $0x80] sm:$0xff]
        %v404 = vld [vmem:[%s385 + $0x88] sm:$0xff]
        %vm405 = vcmask 392192
        %406 = vst.msk [vmem:[#allocation2] sm:$0xff] %vm405, %v387
        %407 = vst.msk [vmem:[#allocation2 + $0x10] sm:$0xff] %vm405, %v388
        %408 = vst.msk [vmem:[#allocation2 + $0x20] sm:$0xff] %vm405, %v389
        %409 = vst.msk [vmem:[#allocation2 + $0x30] sm:$0xff] %vm405, %v390
        %410 = vst.msk [vmem:[#allocation2 + $0x40] sm:$0xff] %vm405, %v391
        %411 = vst.msk [vmem:[#allocation2 + $0x50] sm:$0xff] %vm405, %v392
        %412 = vst.msk [vmem:[#allocation2 + $0x60] sm:$0xff] %vm405, %v393
        %413 = vst.msk [vmem:[#allocation2 + $0x70] sm:$0xff] %vm405, %v394
        %414 = vst.msk [vmem:[#allocation2 + $0x80] sm:$0xff] %vm405, %v395
        %415 = vst.msk [vmem:[#allocation2 + $0x90] sm:$0xff] %vm405, %v396
        %416 = vst.msk [vmem:[#allocation2 + $0xa0] sm:$0xff] %vm405, %v397
        %417 = vst.msk [vmem:[#allocation2 + $0xb0] sm:$0xff] %vm405, %v398
        %418 = vst.msk [vmem:[#allocation2 + $0xc0] sm:$0xff] %vm405, %v399
        %419 = vst.msk [vmem:[#allocation2 + $0xd0] sm:$0xff] %vm405, %v400
        %420 = vst.msk [vmem:[#allocation2 + $0xe0] sm:$0xff] %vm405, %v401
        %421 = vst.msk [vmem:[#allocation2 + $0xf0] sm:$0xff] %vm405, %v402
        %422 = vst.msk [vmem:[#allocation2 + $0x100] sm:$0xff] %vm405, %v403
        %423 = vst.msk [vmem:[#allocation2 + $0x110] sm:$0xff] %vm405, %v404
        %v424 = vld [vmem:[%s385 + $0x1] sm:$0xff]
        %v425 = vld [vmem:[%s385 + $0x9] sm:$0xff]
        %v426 = vld [vmem:[%s385 + $0x11] sm:$0xff]
        %v427 = vld [vmem:[%s385 + $0x19] sm:$0xff]
        %v428 = vld [vmem:[%s385 + $0x21] sm:$0xff]
        %v429 = vld [vmem:[%s385 + $0x29] sm:$0xff]
        %v430 = vld [vmem:[%s385 + $0x31] sm:$0xff]
        %v431 = vld [vmem:[%s385 + $0x39] sm:$0xff]
        %v432 = vld [vmem:[%s385 + $0x41] sm:$0xff]
        %v433 = vld [vmem:[%s385 + $0x49] sm:$0xff]
        %v434 = vld [vmem:[%s385 + $0x51] sm:$0xff]
        %v435 = vld [vmem:[%s385 + $0x59] sm:$0xff]
        %v436 = vld [vmem:[%s385 + $0x61] sm:$0xff]
        %v437 = vld [vmem:[%s385 + $0x69] sm:$0xff]
        %v438 = vld [vmem:[%s385 + $0x71] sm:$0xff]
        %v439 = vld [vmem:[%s385 + $0x79] sm:$0xff]
        %v440 = vld [vmem:[%s385 + $0x81] sm:$0xff]
        %v441 = vld [vmem:[%s385 + $0x89] sm:$0xff]
        %460 = vrot.lane.b32.xlu0 %v424, 48
        %v461 = vpop.permute.xlu0 %460
        %462 = vrot.lane.b32.xlu0 %v425, 48
        %v463 = vpop.permute.xlu0 %462
        %464 = vrot.lane.b32.xlu0 %v426, 48
        %v465 = vpop.permute.xlu0 %464
        %466 = vrot.lane.b32.xlu0 %v427, 48
        %v467 = vpop.permute.xlu0 %466
        %468 = vrot.lane.b32.xlu0 %v428, 48
        %v469 = vpop.permute.xlu0 %468
        %470 = vrot.lane.b32.xlu0 %v429, 48
        %v471 = vpop.permute.xlu0 %470
        %472 = vrot.lane.b32.xlu0 %v430, 48
        %v473 = vpop.permute.xlu0 %472
        %474 = vrot.lane.b32.xlu0 %v431, 48
        %v475 = vpop.permute.xlu0 %474
        %476 = vrot.lane.b32.xlu0 %v432, 48
        %v477 = vpop.permute.xlu0 %476
        %478 = vrot.lane.b32.xlu0 %v433, 48
        %v479 = vpop.permute.xlu0 %478
        %480 = vrot.lane.b32.xlu0 %v434, 48
        %v481 = vpop.permute.xlu0 %480
        %482 = vrot.lane.b32.xlu0 %v435, 48
        %v483 = vpop.permute.xlu0 %482
        %484 = vrot.lane.b32.xlu0 %v436, 48
        %v485 = vpop.permute.xlu0 %484
        %486 = vrot.lane.b32.xlu0 %v437, 48
        %v487 = vpop.permute.xlu0 %486
        %488 = vrot.lane.b32.xlu0 %v438, 48
        %v489 = vpop.permute.xlu0 %488
        %490 = vrot.lane.b32.xlu0 %v439, 48
        %v491 = vpop.permute.xlu0 %490
        %492 = vrot.lane.b32.xlu0 %v440, 48
        %v493 = vpop.permute.xlu0 %492
        %494 = vrot.lane.b32.xlu0 %v441, 48
        %v495 = vpop.permute.xlu0 %494
        %vm514 = vcmask 785792
        %515 = vst.msk [vmem:[#allocation2] sm:$0xff] %vm514, %v461
        %516 = vst.msk [vmem:[#allocation2 + $0x10] sm:$0xff] %vm514, %v463
        %517 = vst.msk [vmem:[#allocation2 + $0x20] sm:$0xff] %vm514, %v465
        %518 = vst.msk [vmem:[#allocation2 + $0x30] sm:$0xff] %vm514, %v467
        %519 = vst.msk [vmem:[#allocation2 + $0x40] sm:$0xff] %vm514, %v469
        %520 = vst.msk [vmem:[#allocation2 + $0x50] sm:$0xff] %vm514, %v471
        %521 = vst.msk [vmem:[#allocation2 + $0x60] sm:$0xff] %vm514, %v473
        %522 = vst.msk [vmem:[#allocation2 + $0x70] sm:$0xff] %vm514, %v475
        %523 = vst.msk [vmem:[#allocation2 + $0x80] sm:$0xff] %vm514, %v477
        %524 = vst.msk [vmem:[#allocation2 + $0x90] sm:$0xff] %vm514, %v479
        %525 = vst.msk [vmem:[#allocation2 + $0xa0] sm:$0xff] %vm514, %v481
        %526 = vst.msk [vmem:[#allocation2 + $0xb0] sm:$0xff] %vm514, %v483
        %527 = vst.msk [vmem:[#allocation2 + $0xc0] sm:$0xff] %vm514, %v485
        %528 = vst.msk [vmem:[#allocation2 + $0xd0] sm:$0xff] %vm514, %v487
        %529 = vst.msk [vmem:[#allocation2 + $0xe0] sm:$0xff] %vm514, %v489
        %530 = vst.msk [vmem:[#allocation2 + $0xf0] sm:$0xff] %vm514, %v491
        %531 = vst.msk [vmem:[#allocation2 + $0x100] sm:$0xff] %vm514, %v493
        %532 = vst.msk [vmem:[#allocation2 + $0x110] sm:$0xff] %vm514, %v495
        %v533 = vld [vmem:[%s385 + $0x8] sm:$0xff]
        %v534 = vld [vmem:[%s385 + $0x10] sm:$0xff]
        %v535 = vld [vmem:[%s385 + $0x18] sm:$0xff]
        %v536 = vld [vmem:[%s385 + $0x20] sm:$0xff]
        %v537 = vld [vmem:[%s385 + $0x28] sm:$0xff]
        %v538 = vld [vmem:[%s385 + $0x30] sm:$0xff]
        %v539 = vld [vmem:[%s385 + $0x38] sm:$0xff]
        %v540 = vld [vmem:[%s385 + $0x40] sm:$0xff]
        %v541 = vld [vmem:[%s385 + $0x48] sm:$0xff]
        %v542 = vld [vmem:[%s385 + $0x50] sm:$0xff]
        %v543 = vld [vmem:[%s385 + $0x58] sm:$0xff]
        %v544 = vld [vmem:[%s385 + $0x60] sm:$0xff]
        %v545 = vld [vmem:[%s385 + $0x68] sm:$0xff]
        %v546 = vld [vmem:[%s385 + $0x70] sm:$0xff]
        %v547 = vld [vmem:[%s385 + $0x78] sm:$0xff]
        %v548 = vld [vmem:[%s385 + $0x80] sm:$0xff]
        %v549 = vld [vmem:[%s385 + $0x88] sm:$0xff]
        %v550 = vld [vmem:[%s385 + $0x90] sm:$0xff]
        %569 = vrot.lane.b32.xlu0 %v533, 96
        %v570 = vpop.permute.xlu0 %569
        %571 = vrot.lane.b32.xlu0 %v534, 96
        %v572 = vpop.permute.xlu0 %571
        %573 = vrot.lane.b32.xlu0 %v535, 96
        %v574 = vpop.permute.xlu0 %573
        %575 = vrot.lane.b32.xlu0 %v536, 96
        %v576 = vpop.permute.xlu0 %575
        %577 = vrot.lane.b32.xlu0 %v537, 96
        %v578 = vpop.permute.xlu0 %577
        %579 = vrot.lane.b32.xlu0 %v538, 96
        %v580 = vpop.permute.xlu0 %579
        %581 = vrot.lane.b32.xlu0 %v539, 96
        %v582 = vpop.permute.xlu0 %581
        %583 = vrot.lane.b32.xlu0 %v540, 96
        %v584 = vpop.permute.xlu0 %583
        %585 = vrot.lane.b32.xlu0 %v541, 96
        %v586 = vpop.permute.xlu0 %585
        %587 = vrot.lane.b32.xlu0 %v542, 96
        %v588 = vpop.permute.xlu0 %587
        %589 = vrot.lane.b32.xlu0 %v543, 96
        %v590 = vpop.permute.xlu0 %589
        %591 = vrot.lane.b32.xlu0 %v544, 96
        %v592 = vpop.permute.xlu0 %591
        %593 = vrot.lane.b32.xlu0 %v545, 96
        %v594 = vpop.permute.xlu0 %593
        %595 = vrot.lane.b32.xlu0 %v546, 96
        %v596 = vpop.permute.xlu0 %595
        %597 = vrot.lane.b32.xlu0 %v547, 96
        %v598 = vpop.permute.xlu0 %597
        %599 = vrot.lane.b32.xlu0 %v548, 96
        %v600 = vpop.permute.xlu0 %599
        %601 = vrot.lane.b32.xlu0 %v549, 96
        %v602 = vpop.permute.xlu0 %601
        %603 = vrot.lane.b32.xlu0 %v550, 96
        %v604 = vpop.permute.xlu0 %603
        %vm623 = vcmask 1048320
        %624 = vst.msk [vmem:[#allocation2] sm:$0xff] %vm623, %v570
        %vm625 = vcmask 130048
        %626 = vst.msk [vmem:[#allocation2 + $0x8] sm:$0xff] %vm625, %v570
        %627 = vst.msk [vmem:[#allocation2 + $0x10] sm:$0xff] %vm623, %v572
        %628 = vst.msk [vmem:[#allocation2 + $0x18] sm:$0xff] %vm625, %v572
        %629 = vst.msk [vmem:[#allocation2 + $0x20] sm:$0xff] %vm623, %v574
        %630 = vst.msk [vmem:[#allocation2 + $0x28] sm:$0xff] %vm625, %v574
        %631 = vst.msk [vmem:[#allocation2 + $0x30] sm:$0xff] %vm623, %v576
        %632 = vst.msk [vmem:[#allocation2 + $0x38] sm:$0xff] %vm625, %v576
        %633 = vst.msk [vmem:[#allocation2 + $0x40] sm:$0xff] %vm623, %v578
        %634 = vst.msk [vmem:[#allocation2 + $0x48] sm:$0xff] %vm625, %v578
        %635 = vst.msk [vmem:[#allocation2 + $0x50] sm:$0xff] %vm623, %v580
        %636 = vst.msk [vmem:[#allocation2 + $0x58] sm:$0xff] %vm625, %v580
        %637 = vst.msk [vmem:[#allocation2 + $0x60] sm:$0xff] %vm623, %v582
        %638 = vst.msk [vmem:[#allocation2 + $0x68] sm:$0xff] %vm625, %v582
        %639 = vst.msk [vmem:[#allocation2 + $0x70] sm:$0xff] %vm623, %v584
        %640 = vst.msk [vmem:[#allocation2 + $0x78] sm:$0xff] %vm625, %v584
        %641 = vst.msk [vmem:[#allocation2 + $0x80] sm:$0xff] %vm623, %v586
        %642 = vst.msk [vmem:[#allocation2 + $0x88] sm:$0xff] %vm625, %v586
        %643 = vst.msk [vmem:[#allocation2 + $0x90] sm:$0xff] %vm623, %v588
        %644 = vst.msk [vmem:[#allocation2 + $0x98] sm:$0xff] %vm625, %v588
        %645 = vst.msk [vmem:[#allocation2 + $0xa0] sm:$0xff] %vm623, %v590
        %646 = vst.msk [vmem:[#allocation2 + $0xa8] sm:$0xff] %vm625, %v590
        %647 = vst.msk [vmem:[#allocation2 + $0xb0] sm:$0xff] %vm623, %v592
        %648 = vst.msk [vmem:[#allocation2 + $0xb8] sm:$0xff] %vm625, %v592
        %649 = vst.msk [vmem:[#allocation2 + $0xc0] sm:$0xff] %vm623, %v594
        %650 = vst.msk [vmem:[#allocation2 + $0xc8] sm:$0xff] %vm625, %v594
        %651 = vst.msk [vmem:[#allocation2 + $0xd0] sm:$0xff] %vm623, %v596
        %652 = vst.msk [vmem:[#allocation2 + $0xd8] sm:$0xff] %vm625, %v596
        %653 = vst.msk [vmem:[#allocation2 + $0xe0] sm:$0xff] %vm623, %v598
        %654 = vst.msk [vmem:[#allocation2 + $0xe8] sm:$0xff] %vm625, %v598
        %655 = vst.msk [vmem:[#allocation2 + $0xf0] sm:$0xff] %vm623, %v600
        %656 = vst.msk [vmem:[#allocation2 + $0xf8] sm:$0xff] %vm625, %v600
        %657 = vst.msk [vmem:[#allocation2 + $0x100] sm:$0xff] %vm623, %v602
        %658 = vst.msk [vmem:[#allocation2 + $0x108] sm:$0xff] %vm625, %v602
        %659 = vst.msk [vmem:[#allocation2 + $0x110] sm:$0xff] %vm623, %v604
        %660 = vst.msk [vmem:[#allocation2 + $0x118] sm:$0xff] %vm625, %v604
        %v661 = vld [vmem:[%s385 + $0x9] sm:$0xff]
        %v662 = vld [vmem:[%s385 + $0x11] sm:$0xff]
        %v663 = vld [vmem:[%s385 + $0x19] sm:$0xff]
        %v664 = vld [vmem:[%s385 + $0x21] sm:$0xff]
        %v665 = vld [vmem:[%s385 + $0x29] sm:$0xff]
        %v666 = vld [vmem:[%s385 + $0x31] sm:$0xff]
        %v667 = vld [vmem:[%s385 + $0x39] sm:$0xff]
        %v668 = vld [vmem:[%s385 + $0x41] sm:$0xff]
        %v669 = vld [vmem:[%s385 + $0x49] sm:$0xff]
        %v670 = vld [vmem:[%s385 + $0x51] sm:$0xff]
        %v671 = vld [vmem:[%s385 + $0x59] sm:$0xff]
        %v672 = vld [vmem:[%s385 + $0x61] sm:$0xff]
        %v673 = vld [vmem:[%s385 + $0x69] sm:$0xff]
        %v674 = vld [vmem:[%s385 + $0x71] sm:$0xff]
        %v675 = vld [vmem:[%s385 + $0x79] sm:$0xff]
        %v676 = vld [vmem:[%s385 + $0x81] sm:$0xff]
        %v677 = vld [vmem:[%s385 + $0x89] sm:$0xff]
        %v678 = vld [vmem:[%s385 + $0x91] sm:$0xff]
        %697 = vrot.lane.b32.xlu0 %v661, 16
        %v698 = vpop.permute.xlu0 %697
        %699 = vrot.lane.b32.xlu0 %v662, 16
        %v700 = vpop.permute.xlu0 %699
        %701 = vrot.lane.b32.xlu0 %v663, 16
        %v702 = vpop.permute.xlu0 %701
        %703 = vrot.lane.b32.xlu0 %v664, 16
        %v704 = vpop.permute.xlu0 %703
        %705 = vrot.lane.b32.xlu0 %v665, 16
        %v706 = vpop.permute.xlu0 %705
        %707 = vrot.lane.b32.xlu0 %v666, 16
        %v708 = vpop.permute.xlu0 %707
        %709 = vrot.lane.b32.xlu0 %v667, 16
        %v710 = vpop.permute.xlu0 %709
        %711 = vrot.lane.b32.xlu0 %v668, 16
        %v712 = vpop.permute.xlu0 %711
        %713 = vrot.lane.b32.xlu0 %v669, 16
        %v714 = vpop.permute.xlu0 %713
        %715 = vrot.lane.b32.xlu0 %v670, 16
        %v716 = vpop.permute.xlu0 %715
        %717 = vrot.lane.b32.xlu0 %v671, 16
        %v718 = vpop.permute.xlu0 %717
        %719 = vrot.lane.b32.xlu0 %v672, 16
        %v720 = vpop.permute.xlu0 %719
        %721 = vrot.lane.b32.xlu0 %v673, 16
        %v722 = vpop.permute.xlu0 %721
        %723 = vrot.lane.b32.xlu0 %v674, 16
        %v724 = vpop.permute.xlu0 %723
        %725 = vrot.lane.b32.xlu0 %v675, 16
        %v726 = vpop.permute.xlu0 %725
        %727 = vrot.lane.b32.xlu0 %v676, 16
        %v728 = vpop.permute.xlu0 %727
        %729 = vrot.lane.b32.xlu0 %v677, 16
        %v730 = vpop.permute.xlu0 %729
        %731 = vrot.lane.b32.xlu0 %v678, 16
        %v732 = vpop.permute.xlu0 %731
        %vm751 = vcmask 523392
        %752 = vst.msk [vmem:[#allocation2 + $0x8] sm:$0xff] %vm751, %v698
        %753 = vst.msk [vmem:[#allocation2 + $0x18] sm:$0xff] %vm751, %v700
        %754 = vst.msk [vmem:[#allocation2 + $0x28] sm:$0xff] %vm751, %v702
        %755 = vst.msk [vmem:[#allocation2 + $0x38] sm:$0xff] %vm751, %v704
        %756 = vst.msk [vmem:[#allocation2 + $0x48] sm:$0xff] %vm751, %v706
        %757 = vst.msk [vmem:[#allocation2 + $0x58] sm:$0xff] %vm751, %v708
        %758 = vst.msk [vmem:[#allocation2 + $0x68] sm:$0xff] %vm751, %v710
        %759 = vst.msk [vmem:[#allocation2 + $0x78] sm:$0xff] %vm751, %v712
        %760 = vst.msk [vmem:[#allocation2 + $0x88] sm:$0xff] %vm751, %v714
        %761 = vst.msk [vmem:[#allocation2 + $0x98] sm:$0xff] %vm751, %v716
        %762 = vst.msk [vmem:[#allocation2 + $0xa8] sm:$0xff] %vm751, %v718
        %763 = vst.msk [vmem:[#allocation2 + $0xb8] sm:$0xff] %vm751, %v720
        %764 = vst.msk [vmem:[#allocation2 + $0xc8] sm:$0xff] %vm751, %v722
        %765 = vst.msk [vmem:[#allocation2 + $0xd8] sm:$0xff] %vm751, %v724
        %766 = vst.msk [vmem:[#allocation2 + $0xe8] sm:$0xff] %vm751, %v726
        %767 = vst.msk [vmem:[#allocation2 + $0xf8] sm:$0xff] %vm751, %v728
        %768 = vst.msk [vmem:[#allocation2 + $0x108] sm:$0xff] %vm751, %v730
        %769 = vst.msk [vmem:[#allocation2 + $0x118] sm:$0xff] %vm751, %v732
        %v770 = vld [vmem:[#allocation2] sm:$0xff]
        %v771 = vld [vmem:[#allocation2 + $0x8] sm:$0xff]
        %v772 = vld [vmem:[#allocation2 + $0x10] sm:$0xff]
        %v773 = vld [vmem:[#allocation2 + $0x18] sm:$0xff]
        %v774 = vld [vmem:[#allocation2 + $0x20] sm:$0xff]
        %v775 = vld [vmem:[#allocation2 + $0x28] sm:$0xff]
        %v776 = vld [vmem:[#allocation2 + $0x30] sm:$0xff]
        %v777 = vld [vmem:[#allocation2 + $0x38] sm:$0xff]
        %v778 = vld [vmem:[#allocation2 + $0x40] sm:$0xff]
        %v779 = vld [vmem:[#allocation2 + $0x48] sm:$0xff]
        %v780 = vld [vmem:[#allocation2 + $0x50] sm:$0xff]
        %v781 = vld [vmem:[#allocation2 + $0x58] sm:$0xff]
        %v782 = vld [vmem:[#allocation2 + $0x60] sm:$0xff]
        %v783 = vld [vmem:[#allocation2 + $0x68] sm:$0xff]
        %v784 = vld [vmem:[#allocation2 + $0x70] sm:$0xff]
        %v785 = vld [vmem:[#allocation2 + $0x78] sm:$0xff]
        %v786 = vld [vmem:[#allocation2 + $0x80] sm:$0xff]
        %v787 = vld [vmem:[#allocation2 + $0x88] sm:$0xff]
        %v788 = vld [vmem:[#allocation2 + $0x90] sm:$0xff]
        %v789 = vld [vmem:[#allocation2 + $0x98] sm:$0xff]
        %v790 = vld [vmem:[#allocation2 + $0xa0] sm:$0xff]
        %v791 = vld [vmem:[#allocation2 + $0xa8] sm:$0xff]
        %v792 = vld [vmem:[#allocation2 + $0xb0] sm:$0xff]
        %v793 = vld [vmem:[#allocation2 + $0xb8] sm:$0xff]
        %v794 = vld [vmem:[#allocation2 + $0xc0] sm:$0xff]
        %v795 = vld [vmem:[#allocation2 + $0xc8] sm:$0xff]
        %v796 = vld [vmem:[#allocation2 + $0xd0] sm:$0xff]
        %v797 = vld [vmem:[#allocation2 + $0xd8] sm:$0xff]
        %v798 = vld [vmem:[#allocation2 + $0xe0] sm:$0xff]
        %v799 = vld [vmem:[#allocation2 + $0xe8] sm:$0xff]
        %v800 = vld [vmem:[#allocation2 + $0xf0] sm:$0xff]
        %v801 = vld [vmem:[#allocation2 + $0xf8] sm:$0xff]
        %v802 = vld [vmem:[#allocation2 + $0x100] sm:$0xff]
        %v803 = vld [vmem:[#allocation2 + $0x108] sm:$0xff]
        %v804 = vld [vmem:[#allocation2 + $0x110] sm:$0xff]
        %v805 = vld [vmem:[#allocation2 + $0x118] sm:$0xff]
        %v806 = vld [vmem:[%s1] sm:$0xff]
        %v807 = vld [vmem:[%s1 + $0x8] sm:$0xff]
        %v808 = vld [vmem:[%s1 + $0x10] sm:$0xff]
        %v809 = vld [vmem:[%s1 + $0x18] sm:$0xff]
        %v810 = vld [vmem:[%s1 + $0x20] sm:$0xff]
        %v811 = vld [vmem:[%s1 + $0x28] sm:$0xff]
        %v812 = vld [vmem:[%s1 + $0x30] sm:$0xff]
        %v813 = vld [vmem:[%s1 + $0x38] sm:$0xff]
        %v814 = vld [vmem:[%s1 + $0x40] sm:$0xff]
        %v815 = vld [vmem:[%s1 + $0x48] sm:$0xff]
        %v816 = vld [vmem:[%s1 + $0x50] sm:$0xff]
        %v817 = vld [vmem:[%s1 + $0x58] sm:$0xff]
        %v818 = vld [vmem:[%s1 + $0x60] sm:$0xff]
        %v819 = vld [vmem:[%s1 + $0x68] sm:$0xff]
        %v820 = vld [vmem:[%s1 + $0x70] sm:$0xff]
        %v821 = vld [vmem:[%s1 + $0x78] sm:$0xff]
        %v822 = vld [vmem:[%s1 + $0x80] sm:$0xff]
        %v823 = vld [vmem:[%s1 + $0x88] sm:$0xff]
        %v824 = vld [vmem:[%s1 + $0x90] sm:$0xff]
        %v825 = vld [vmem:[%s1 + $0x98] sm:$0xff]
        %v826 = vld [vmem:[%s1 + $0xa0] sm:$0xff]
        %v827 = vld [vmem:[%s1 + $0xa8] sm:$0xff]
        %v828 = vld [vmem:[%s1 + $0xb0] sm:$0xff]
        %v829 = vld [vmem:[%s1 + $0xb8] sm:$0xff]
        %vm830 = vcmask 523264
        %v832 = vsel %vm830, %v771, 0
        %v835 = vsel %vm830, %v773, 0
        %v838 = vsel %vm830, %v775, 0
        %v841 = vsel %vm830, %v777, 0
        %v844 = vsel %vm830, %v779, 0
        %v847 = vsel %vm830, %v781, 0
        %v850 = vsel %vm830, %v783, 0
        %v853 = vsel %vm830, %v785, 0
        %v856 = vsel %vm830, %v787, 0
        %v859 = vsel %vm830, %v789, 0
        %v862 = vsel %vm830, %v791, 0
        %v865 = vsel %vm830, %v793, 0
        %v868 = vsel %vm830, %v795, 0
        %v871 = vsel %vm830, %v797, 0
        %v874 = vsel %vm830, %v799, 0
        %v877 = vsel %vm830, %v801, 0
        %v880 = vsel %vm830, %v803, 0
        %v883 = vsel %vm830, %v805, 0
        %885 = vmatpush.msra.mxu0 %v821
        %886 = vmatpush.msra.mxu0 %v820
        %887 = vmatpush.msra.mxu0 %v819
        %888 = vmatpush.msra.mxu0 %v818
        %889 = vmatpush.msra.mxu0 %v817
        %890 = vmatpush.msra.mxu0 %v816
        %891 = vmatpush.msra.mxu0 %v815
        %892 = vmatpush.msra.mxu0 %v814
        %893 = vmatpush.msra.mxu0 %v813
        %894 = vmatpush.msra.mxu0 %v812
        %895 = vmatpush.msra.mxu0 %v811
        %896 = vmatpush.msra.mxu0 %v810
        %897 = vmatpush.msra.mxu0 %v809
        %898 = vmatpush.msra.mxu0 %v808
        %899 = vmatpush.msra.mxu0 %v807
        %900 = vmatpush.msra.mxu0 %v806
        %901 = vmatmul.f32.gmra.mxu0 %v770
        %v902 = vpop.f32.mrf.mxu0
        %v903 = vadd.f32 0.0, %v902
        %904 = vmatmul.f32.gmra.mxu0 %v772
        %v905 = vpop.f32.mrf.mxu0
        %v906 = vadd.f32 0.0, %v905
        %907 = vmatmul.f32.gmra.mxu0 %v774
        %v908 = vpop.f32.mrf.mxu0
        %v909 = vadd.f32 0.0, %v908
        %910 = vmatmul.f32.gmra.mxu0 %v776
        %v911 = vpop.f32.mrf.mxu0
        %v912 = vadd.f32 0.0, %v911
        %913 = vmatmul.f32.gmra.mxu0 %v778
        %v914 = vpop.f32.mrf.mxu0
        %v915 = vadd.f32 0.0, %v914
        %916 = vmatmul.f32.gmra.mxu0 %v780
        %v917 = vpop.f32.mrf.mxu0
        %v918 = vadd.f32 0.0, %v917
        %919 = vmatmul.f32.gmra.mxu0 %v782
        %v920 = vpop.f32.mrf.mxu0
        %v921 = vadd.f32 0.0, %v920
        %922 = vmatmul.f32.gmra.mxu0 %v784
        %v923 = vpop.f32.mrf.mxu0
        %v924 = vadd.f32 0.0, %v923
        %925 = vmatmul.f32.gmra.mxu0 %v786
        %v926 = vpop.f32.mrf.mxu0
        %v927 = vadd.f32 0.0, %v926
        %928 = vmatmul.f32.gmra.mxu0 %v788
        %v929 = vpop.f32.mrf.mxu0
        %v930 = vadd.f32 0.0, %v929
        %931 = vmatmul.f32.gmra.mxu0 %v790
        %v932 = vpop.f32.mrf.mxu0
        %v933 = vadd.f32 0.0, %v932
        %934 = vmatmul.f32.gmra.mxu0 %v792
        %v935 = vpop.f32.mrf.mxu0
        %v936 = vadd.f32 0.0, %v935
        %937 = vmatmul.f32.gmra.mxu0 %v794
        %v938 = vpop.f32.mrf.mxu0
        %v939 = vadd.f32 0.0, %v938
        %940 = vmatmul.f32.gmra.mxu0 %v796
        %v941 = vpop.f32.mrf.mxu0
        %v942 = vadd.f32 0.0, %v941
        %943 = vmatmul.f32.gmra.mxu0 %v798
        %v944 = vpop.f32.mrf.mxu0
        %v945 = vadd.f32 0.0, %v944
        %946 = vmatmul.f32.gmra.mxu0 %v800
        %v947 = vpop.f32.mrf.mxu0
        %v948 = vadd.f32 0.0, %v947
        %949 = vmatmul.f32.gmra.mxu0 %v802
        %v950 = vpop.f32.mrf.mxu0
        %v951 = vadd.f32 0.0, %v950
        %952 = vmatmul.f32.gmra.mxu0 %v804
        %v953 = vpop.f32.mrf.mxu0
        %v954 = vadd.f32 0.0, %v953
        %955 = vdwg.mxu0
        %956 = vmatpush.msra.mxu0 0.0
        %957 = vmatpush.msra.mxu0 0.0
        %958 = vmatpush.msra.mxu0 0.0
        %959 = vmatpush.msra.mxu0 0.0
        %960 = vmatpush.msra.mxu0 0.0
        %961 = vmatpush.msra.mxu0 0.0
        %962 = vmatpush.msra.mxu0 0.0
        %963 = vmatpush.msra.mxu0 0.0
        %964 = vmatpush.msra.mxu0 %v829
        %965 = vmatpush.msra.mxu0 %v828
        %966 = vmatpush.msra.mxu0 %v827
        %967 = vmatpush.msra.mxu0 %v826
        %968 = vmatpush.msra.mxu0 %v825
        %969 = vmatpush.msra.mxu0 %v824
        %970 = vmatpush.msra.mxu0 %v823
        %971 = vmatpush.msra.mxu0 %v822
        %972 = vmatmul.f32.gmra.mxu0 %v832
        %v973 = vpop.f32.mrf.mxu0
        %v974 = vadd.f32 %v903, %v973
        %975 = vmatmul.f32.gmra.mxu0 %v835
        %v976 = vpop.f32.mrf.mxu0
        %v977 = vadd.f32 %v906, %v976
        %978 = vmatmul.f32.gmra.mxu0 %v838
        %v979 = vpop.f32.mrf.mxu0
        %v980 = vadd.f32 %v909, %v979
        %981 = vmatmul.f32.gmra.mxu0 %v841
        %v982 = vpop.f32.mrf.mxu0
        %v983 = vadd.f32 %v912, %v982
        %984 = vmatmul.f32.gmra.mxu0 %v844
        %v985 = vpop.f32.mrf.mxu0
        %v986 = vadd.f32 %v915, %v985
        %987 = vmatmul.f32.gmra.mxu0 %v847
        %v988 = vpop.f32.mrf.mxu0
        %v989 = vadd.f32 %v918, %v988
        %990 = vmatmul.f32.gmra.mxu0 %v850
        %v991 = vpop.f32.mrf.mxu0
        %v992 = vadd.f32 %v921, %v991
        %993 = vmatmul.f32.gmra.mxu0 %v853
        %v994 = vpop.f32.mrf.mxu0
        %v995 = vadd.f32 %v924, %v994
        %996 = vmatmul.f32.gmra.mxu0 %v856
        %v997 = vpop.f32.mrf.mxu0
        %v998 = vadd.f32 %v927, %v997
        %999 = vmatmul.f32.gmra.mxu0 %v859
        %v1000 = vpop.f32.mrf.mxu0
        %v1001 = vadd.f32 %v930, %v1000
        %1002 = vmatmul.f32.gmra.mxu0 %v862
        %v1003 = vpop.f32.mrf.mxu0
        %v1004 = vadd.f32 %v933, %v1003
        %1005 = vmatmul.f32.gmra.mxu0 %v865
        %v1006 = vpop.f32.mrf.mxu0
        %v1007 = vadd.f32 %v936, %v1006
        %1008 = vmatmul.f32.gmra.mxu0 %v868
        %v1009 = vpop.f32.mrf.mxu0
        %v1010 = vadd.f32 %v939, %v1009
        %1011 = vmatmul.f32.gmra.mxu0 %v871
        %v1012 = vpop.f32.mrf.mxu0
        %v1013 = vadd.f32 %v942, %v1012
        %1014 = vmatmul.f32.gmra.mxu0 %v874
        %v1015 = vpop.f32.mrf.mxu0
        %v1016 = vadd.f32 %v945, %v1015
        %1017 = vmatmul.f32.gmra.mxu0 %v877
        %v1018 = vpop.f32.mrf.mxu0
        %v1019 = vadd.f32 %v948, %v1018
        %1020 = vmatmul.f32.gmra.mxu0 %v880
        %v1021 = vpop.f32.mrf.mxu0
        %v1022 = vadd.f32 %v951, %v1021
        %1023 = vmatmul.f32.gmra.mxu0 %v883
        %v1024 = vpop.f32.mrf.mxu0
        %v1025 = vadd.f32 %v954, %v1024
        %1026 = vdwg.mxu0
        %1045 = vrot.lane.b32.xlu0 %v974, 104
        %v1046 = vpop.permute.xlu0 %1045
        %1047 = vrot.lane.b32.xlu0 %v977, 104
        %v1048 = vpop.permute.xlu0 %1047
        %1049 = vrot.lane.b32.xlu0 %v980, 104
        %v1050 = vpop.permute.xlu0 %1049
        %1051 = vrot.lane.b32.xlu0 %v983, 104
        %v1052 = vpop.permute.xlu0 %1051
        %1053 = vrot.lane.b32.xlu0 %v986, 104
        %v1054 = vpop.permute.xlu0 %1053
        %1055 = vrot.lane.b32.xlu0 %v989, 104
        %v1056 = vpop.permute.xlu0 %1055
        %1057 = vrot.lane.b32.xlu0 %v992, 104
        %v1058 = vpop.permute.xlu0 %1057
        %1059 = vrot.lane.b32.xlu0 %v995, 104
        %v1060 = vpop.permute.xlu0 %1059
        %1061 = vrot.lane.b32.xlu0 %v998, 104
        %v1062 = vpop.permute.xlu0 %1061
        %1063 = vrot.lane.b32.xlu0 %v1001, 104
        %v1064 = vpop.permute.xlu0 %1063
        %1065 = vrot.lane.b32.xlu0 %v1004, 104
        %v1066 = vpop.permute.xlu0 %1065
        %1067 = vrot.lane.b32.xlu0 %v1007, 104
        %v1068 = vpop.permute.xlu0 %1067
        %1069 = vrot.lane.b32.xlu0 %v1010, 104
        %v1070 = vpop.permute.xlu0 %1069
        %1071 = vrot.lane.b32.xlu0 %v1013, 104
        %v1072 = vpop.permute.xlu0 %1071
        %1073 = vrot.lane.b32.xlu0 %v1016, 104
        %v1074 = vpop.permute.xlu0 %1073
        %1075 = vrot.lane.b32.xlu0 %v1019, 104
        %v1076 = vpop.permute.xlu0 %1075
        %1077 = vrot.lane.b32.xlu0 %v1022, 104
        %v1078 = vpop.permute.xlu0 %1077
        %1079 = vrot.lane.b32.xlu0 %v1025, 104
        %v1080 = vpop.permute.xlu0 %1079
        %v1099 = vmax.f32 %v974, %v1046
        %v1100 = vmax.f32 %v977, %v1048
        %v1101 = vmax.f32 %v980, %v1050
        %v1102 = vmax.f32 %v983, %v1052
        %v1103 = vmax.f32 %v986, %v1054
        %v1104 = vmax.f32 %v989, %v1056
        %v1105 = vmax.f32 %v992, %v1058
        %v1106 = vmax.f32 %v995, %v1060
        %v1107 = vmax.f32 %v998, %v1062
        %v1108 = vmax.f32 %v1001, %v1064
        %v1109 = vmax.f32 %v1004, %v1066
        %v1110 = vmax.f32 %v1007, %v1068
        %v1111 = vmax.f32 %v1010, %v1070
        %v1112 = vmax.f32 %v1013, %v1072
        %v1113 = vmax.f32 %v1016, %v1074
        %v1114 = vmax.f32 %v1019, %v1076
        %v1115 = vmax.f32 %v1022, %v1078
        %v1116 = vmax.f32 %v1025, %v1080
        %1135 = vrot.lane.b32.xlu0 %v1099, 80
        %v1136 = vpop.permute.xlu0 %1135
        %1137 = vrot.lane.b32.xlu0 %v1100, 80
        %v1138 = vpop.permute.xlu0 %1137
        %1139 = vrot.lane.b32.xlu0 %v1101, 80
        %v1140 = vpop.permute.xlu0 %1139
        %1141 = vrot.lane.b32.xlu0 %v1102, 80
        %v1142 = vpop.permute.xlu0 %1141
        %1143 = vrot.lane.b32.xlu0 %v1103, 80
        %v1144 = vpop.permute.xlu0 %1143
        %1145 = vrot.lane.b32.xlu0 %v1104, 80
        %v1146 = vpop.permute.xlu0 %1145
        %1147 = vrot.lane.b32.xlu0 %v1105, 80
        %v1148 = vpop.permute.xlu0 %1147
        %1149 = vrot.lane.b32.xlu0 %v1106, 80
        %v1150 = vpop.permute.xlu0 %1149
        %1151 = vrot.lane.b32.xlu0 %v1107, 80
        %v1152 = vpop.permute.xlu0 %1151
        %1153 = vrot.lane.b32.xlu0 %v1108, 80
        %v1154 = vpop.permute.xlu0 %1153
        %1155 = vrot.lane.b32.xlu0 %v1109, 80
        %v1156 = vpop.permute.xlu0 %1155
        %1157 = vrot.lane.b32.xlu0 %v1110, 80
        %v1158 = vpop.permute.xlu0 %1157
        %1159 = vrot.lane.b32.xlu0 %v1111, 80
        %v1160 = vpop.permute.xlu0 %1159
        %1161 = vrot.lane.b32.xlu0 %v1112, 80
        %v1162 = vpop.permute.xlu0 %1161
        %1163 = vrot.lane.b32.xlu0 %v1113, 80
        %v1164 = vpop.permute.xlu0 %1163
        %1165 = vrot.lane.b32.xlu0 %v1114, 80
        %v1166 = vpop.permute.xlu0 %1165
        %1167 = vrot.lane.b32.xlu0 %v1115, 80
        %v1168 = vpop.permute.xlu0 %1167
        %1169 = vrot.lane.b32.xlu0 %v1116, 80
        %v1170 = vpop.permute.xlu0 %1169
        %v1189 = vmax.f32 %v1099, %v1136
        %v1190 = vmax.f32 %v1100, %v1138
        %v1191 = vmax.f32 %v1101, %v1140
        %v1192 = vmax.f32 %v1102, %v1142
        %v1193 = vmax.f32 %v1103, %v1144
        %v1194 = vmax.f32 %v1104, %v1146
        %v1195 = vmax.f32 %v1105, %v1148
        %v1196 = vmax.f32 %v1106, %v1150
        %v1197 = vmax.f32 %v1107, %v1152
        %v1198 = vmax.f32 %v1108, %v1154
        %v1199 = vmax.f32 %v1109, %v1156
        %v1200 = vmax.f32 %v1110, %v1158
        %v1201 = vmax.f32 %v1111, %v1160
        %v1202 = vmax.f32 %v1112, %v1162
        %v1203 = vmax.f32 %v1113, %v1164
        %v1204 = vmax.f32 %v1114, %v1166
        %v1205 = vmax.f32 %v1115, %v1168
        %v1206 = vmax.f32 %v1116, %v1170
        %v1207 = vld [vmem:[%s2] sm:$0x1]
        %v1209 = vperm.slane %v1207, 0
        %v1211 = vadd.f32 %v1189, %v1209
        %v1212 = vadd.f32 %v1190, %v1209
        %v1213 = vadd.f32 %v1191, %v1209
        %v1214 = vadd.f32 %v1192, %v1209
        %v1215 = vadd.f32 %v1193, %v1209
        %v1216 = vadd.f32 %v1194, %v1209
        %v1217 = vadd.f32 %v1195, %v1209
        %v1218 = vadd.f32 %v1196, %v1209
        %v1219 = vadd.f32 %v1197, %v1209
        %v1220 = vadd.f32 %v1198, %v1209
        %v1221 = vadd.f32 %v1199, %v1209
        %v1222 = vadd.f32 %v1200, %v1209
        %v1223 = vadd.f32 %v1201, %v1209
        %v1224 = vadd.f32 %v1202, %v1209
        %v1225 = vadd.f32 %v1203, %v1209
        %v1226 = vadd.f32 %v1204, %v1209
        %v1227 = vadd.f32 %v1205, %v1209
        %v1228 = vadd.f32 %v1206, %v1209
        %v1229 = vmax.f32 %v1211, 0.0
        %v1230 = vmax.f32 %v1212, 0.0
        %v1231 = vmax.f32 %v1213, 0.0
        %v1232 = vmax.f32 %v1214, 0.0
        %v1233 = vmax.f32 %v1215, 0.0
        %v1234 = vmax.f32 %v1216, 0.0
        %v1235 = vmax.f32 %v1217, 0.0
        %v1236 = vmax.f32 %v1218, 0.0
        %v1237 = vmax.f32 %v1219, 0.0
        %v1238 = vmax.f32 %v1220, 0.0
        %v1239 = vmax.f32 %v1221, 0.0
        %v1240 = vmax.f32 %v1222, 0.0
        %v1241 = vmax.f32 %v1223, 0.0
        %v1242 = vmax.f32 %v1224, 0.0
        %v1243 = vmax.f32 %v1225, 0.0
        %v1244 = vmax.f32 %v1226, 0.0
        %v1245 = vmax.f32 %v1227, 0.0
        %v1246 = vmax.f32 %v1228, 0.0
        %vm1247 = vcmask 195584
        %1248 = vst.msk [vmem:[#allocation3] sm:$0xff] %vm1247, %v1229
        %1249 = vst.msk [vmem:[#allocation3 + $0x10] sm:$0xff] %vm1247, %v1230
        %1250 = vst.msk [vmem:[#allocation3 + $0x20] sm:$0xff] %vm1247, %v1231
        %1251 = vst.msk [vmem:[#allocation3 + $0x30] sm:$0xff] %vm1247, %v1232
        %1252 = vst.msk [vmem:[#allocation3 + $0x40] sm:$0xff] %vm1247, %v1233
        %1253 = vst.msk [vmem:[#allocation3 + $0x50] sm:$0xff] %vm1247, %v1234
        %1254 = vst.msk [vmem:[#allocation3 + $0x60] sm:$0xff] %vm1247, %v1235
        %1255 = vst.msk [vmem:[#allocation3 + $0x70] sm:$0xff] %vm1247, %v1236
        %1256 = vst.msk [vmem:[#allocation3 + $0x80] sm:$0xff] %vm1247, %v1237
        %1257 = vst.msk [vmem:[#allocation3 + $0x90] sm:$0xff] %vm1247, %v1238
        %1258 = vst.msk [vmem:[#allocation3 + $0xa0] sm:$0xff] %vm1247, %v1239
        %1259 = vst.msk [vmem:[#allocation3 + $0xb0] sm:$0xff] %vm1247, %v1240
        %1260 = vst.msk [vmem:[#allocation3 + $0xc0] sm:$0xff] %vm1247, %v1241
        %1261 = vst.msk [vmem:[#allocation3 + $0xd0] sm:$0xff] %vm1247, %v1242
        %1262 = vst.msk [vmem:[#allocation3 + $0xe0] sm:$0xff] %vm1247, %v1243
        %vm1279 = vcmask 1046528
        %v1280 = vrot.slane %v1229, 1
        %v1281 = vrot.slane %v1230, 1
        %v1282 = vsel %vm1279, %v1280, %v1281
        %v1283 = vrot.slane %v1231, 1
        %v1284 = vsel %vm1279, %v1281, %v1283
        %v1285 = vrot.slane %v1232, 1
        %v1286 = vsel %vm1279, %v1283, %v1285
        %v1287 = vrot.slane %v1233, 1
        %v1288 = vsel %vm1279, %v1285, %v1287
        %v1289 = vrot.slane %v1234, 1
        %v1290 = vsel %vm1279, %v1287, %v1289
        %v1291 = vrot.slane %v1235, 1
        %v1292 = vsel %vm1279, %v1289, %v1291
        %v1293 = vrot.slane %v1236, 1
        %v1294 = vsel %vm1279, %v1291, %v1293
        %v1295 = vrot.slane %v1237, 1
        %v1296 = vsel %vm1279, %v1293, %v1295
        %v1297 = vrot.slane %v1238, 1
        %v1298 = vsel %vm1279, %v1295, %v1297
        %v1299 = vrot.slane %v1239, 1
        %v1300 = vsel %vm1279, %v1297, %v1299
        %v1301 = vrot.slane %v1240, 1
        %v1302 = vsel %vm1279, %v1299, %v1301
        %v1303 = vrot.slane %v1241, 1
        %v1304 = vsel %vm1279, %v1301, %v1303
        %v1305 = vrot.slane %v1242, 1
        %v1306 = vsel %vm1279, %v1303, %v1305
        %v1307 = vrot.slane %v1243, 1
        %v1308 = vsel %vm1279, %v1305, %v1307
        %v1309 = vrot.slane %v1244, 1
        %v1310 = vsel %vm1279, %v1307, %v1309
        %1311 = vrot.lane.b32.xlu0 %v1282, 24
        %v1312 = vpop.permute.xlu0 %1311
        %1313 = vrot.lane.b32.xlu0 %v1284, 24
        %v1314 = vpop.permute.xlu0 %1313
        %1315 = vrot.lane.b32.xlu0 %v1286, 24
        %v1316 = vpop.permute.xlu0 %1315
        %1317 = vrot.lane.b32.xlu0 %v1288, 24
        %v1318 = vpop.permute.xlu0 %1317
        %1319 = vrot.lane.b32.xlu0 %v1290, 24
        %v1320 = vpop.permute.xlu0 %1319
        %1321 = vrot.lane.b32.xlu0 %v1292, 24
        %v1322 = vpop.permute.xlu0 %1321
        %1323 = vrot.lane.b32.xlu0 %v1294, 24
        %v1324 = vpop.permute.xlu0 %1323
        %1325 = vrot.lane.b32.xlu0 %v1296, 24
        %v1326 = vpop.permute.xlu0 %1325
        %1327 = vrot.lane.b32.xlu0 %v1298, 24
        %v1328 = vpop.permute.xlu0 %1327
        %1329 = vrot.lane.b32.xlu0 %v1300, 24
        %v1330 = vpop.permute.xlu0 %1329
        %1331 = vrot.lane.b32.xlu0 %v1302, 24
        %v1332 = vpop.permute.xlu0 %1331
        %1333 = vrot.lane.b32.xlu0 %v1304, 24
        %v1334 = vpop.permute.xlu0 %1333
        %1335 = vrot.lane.b32.xlu0 %v1306, 24
        %v1336 = vpop.permute.xlu0 %1335
        %1337 = vrot.lane.b32.xlu0 %v1308, 24
        %v1338 = vpop.permute.xlu0 %1337
        %1339 = vrot.lane.b32.xlu0 %v1310, 24
        %v1340 = vpop.permute.xlu0 %1339
        %vm1356 = vcmask 392384
        %1357 = vst.msk [vmem:[#allocation3] sm:$0xff] %vm1356, %v1312
        %1358 = vst.msk [vmem:[#allocation3 + $0x10] sm:$0xff] %vm1356, %v1314
        %1359 = vst.msk [vmem:[#allocation3 + $0x20] sm:$0xff] %vm1356, %v1316
        %1360 = vst.msk [vmem:[#allocation3 + $0x30] sm:$0xff] %vm1356, %v1318
        %1361 = vst.msk [vmem:[#allocation3 + $0x40] sm:$0xff] %vm1356, %v1320
        %1362 = vst.msk [vmem:[#allocation3 + $0x50] sm:$0xff] %vm1356, %v1322
        %1363 = vst.msk [vmem:[#allocation3 + $0x60] sm:$0xff] %vm1356, %v1324
        %1364 = vst.msk [vmem:[#allocation3 + $0x70] sm:$0xff] %vm1356, %v1326
        %1365 = vst.msk [vmem:[#allocation3 + $0x80] sm:$0xff] %vm1356, %v1328
        %1366 = vst.msk [vmem:[#allocation3 + $0x90] sm:$0xff] %vm1356, %v1330
        %1367 = vst.msk [vmem:[#allocation3 + $0xa0] sm:$0xff] %vm1356, %v1332
        %1368 = vst.msk [vmem:[#allocation3 + $0xb0] sm:$0xff] %vm1356, %v1334
        %1369 = vst.msk [vmem:[#allocation3 + $0xc0] sm:$0xff] %vm1356, %v1336
        %1370 = vst.msk [vmem:[#allocation3 + $0xd0] sm:$0xff] %vm1356, %v1338
        %1371 = vst.msk [vmem:[#allocation3 + $0xe0] sm:$0xff] %vm1356, %v1340
        %vm1372 = vcmask 1045504
        %v1373 = vrot.slane %v1229, 2
        %v1374 = vrot.slane %v1230, 2
        %v1375 = vsel %vm1372, %v1373, %v1374
        %v1376 = vrot.slane %v1231, 2
        %v1377 = vsel %vm1372, %v1374, %v1376
        %v1378 = vrot.slane %v1232, 2
        %v1379 = vsel %vm1372, %v1376, %v1378
        %v1380 = vrot.slane %v1233, 2
        %v1381 = vsel %vm1372, %v1378, %v1380
        %v1382 = vrot.slane %v1234, 2
        %v1383 = vsel %vm1372, %v1380, %v1382
        %v1384 = vrot.slane %v1235, 2
        %v1385 = vsel %vm1372, %v1382, %v1384
        %v1386 = vrot.slane %v1236, 2
        %v1387 = vsel %vm1372, %v1384, %v1386
        %v1388 = vrot.slane %v1237, 2
        %v1389 = vsel %vm1372, %v1386, %v1388
        %v1390 = vrot.slane %v1238, 2
        %v1391 = vsel %vm1372, %v1388, %v1390
        %v1392 = vrot.slane %v1239, 2
        %v1393 = vsel %vm1372, %v1390, %v1392
        %v1394 = vrot.slane %v1240, 2
        %v1395 = vsel %vm1372, %v1392, %v1394
        %v1396 = vrot.slane %v1241, 2
        %v1397 = vsel %vm1372, %v1394, %v1396
        %v1398 = vrot.slane %v1242, 2
        %v1399 = vsel %vm1372, %v1396, %v1398
        %v1400 = vrot.slane %v1243, 2
        %v1401 = vsel %vm1372, %v1398, %v1400
        %v1402 = vrot.slane %v1244, 2
        %v1403 = vsel %vm1372, %v1400, %v1402
        %1404 = vrot.lane.b32.xlu0 %v1375, 48
        %v1405 = vpop.permute.xlu0 %1404
        %1406 = vrot.lane.b32.xlu0 %v1377, 48
        %v1407 = vpop.permute.xlu0 %1406
        %1408 = vrot.lane.b32.xlu0 %v1379, 48
        %v1409 = vpop.permute.xlu0 %1408
        %1410 = vrot.lane.b32.xlu0 %v1381, 48
        %v1411 = vpop.permute.xlu0 %1410
        %1412 = vrot.lane.b32.xlu0 %v1383, 48
        %v1413 = vpop.permute.xlu0 %1412
        %1414 = vrot.lane.b32.xlu0 %v1385, 48
        %v1415 = vpop.permute.xlu0 %1414
        %1416 = vrot.lane.b32.xlu0 %v1387, 48
        %v1417 = vpop.permute.xlu0 %1416
        %1418 = vrot.lane.b32.xlu0 %v1389, 48
        %v1419 = vpop.permute.xlu0 %1418
        %1420 = vrot.lane.b32.xlu0 %v1391, 48
        %v1421 = vpop.permute.xlu0 %1420
        %1422 = vrot.lane.b32.xlu0 %v1393, 48
        %v1423 = vpop.permute.xlu0 %1422
        %1424 = vrot.lane.b32.xlu0 %v1395, 48
        %v1425 = vpop.permute.xlu0 %1424
        %1426 = vrot.lane.b32.xlu0 %v1397, 48
        %v1427 = vpop.permute.xlu0 %1426
        %1428 = vrot.lane.b32.xlu0 %v1399, 48
        %v1429 = vpop.permute.xlu0 %1428
        %1430 = vrot.lane.b32.xlu0 %v1401, 48
        %v1431 = vpop.permute.xlu0 %1430
        %1432 = vrot.lane.b32.xlu0 %v1403, 48
        %v1433 = vpop.permute.xlu0 %1432
        %vm1449 = vcmask 589184
        %1450 = vst.msk [vmem:[#allocation3] sm:$0xff] %vm1449, %v1405
        %1451 = vst.msk [vmem:[#allocation3 + $0x10] sm:$0xff] %vm1449, %v1407
        %1452 = vst.msk [vmem:[#allocation3 + $0x20] sm:$0xff] %vm1449, %v1409
        %1453 = vst.msk [vmem:[#allocation3 + $0x30] sm:$0xff] %vm1449, %v1411
        %1454 = vst.msk [vmem:[#allocation3 + $0x40] sm:$0xff] %vm1449, %v1413
        %1455 = vst.msk [vmem:[#allocation3 + $0x50] sm:$0xff] %vm1449, %v1415
        %1456 = vst.msk [vmem:[#allocation3 + $0x60] sm:$0xff] %vm1449, %v1417
        %1457 = vst.msk [vmem:[#allocation3 + $0x70] sm:$0xff] %vm1449, %v1419
        %1458 = vst.msk [vmem:[#allocation3 + $0x80] sm:$0xff] %vm1449, %v1421
        %1459 = vst.msk [vmem:[#allocation3 + $0x90] sm:$0xff] %vm1449, %v1423
        %1460 = vst.msk [vmem:[#allocation3 + $0xa0] sm:$0xff] %vm1449, %v1425
        %1461 = vst.msk [vmem:[#allocation3 + $0xb0] sm:$0xff] %vm1449, %v1427
        %1462 = vst.msk [vmem:[#allocation3 + $0xc0] sm:$0xff] %vm1449, %v1429
        %1463 = vst.msk [vmem:[#allocation3 + $0xd0] sm:$0xff] %vm1449, %v1431
        %1464 = vst.msk [vmem:[#allocation3 + $0xe0] sm:$0xff] %vm1449, %v1433
        %1465 = vrot.lane.b32.xlu0 %v1230, 72
        %v1466 = vpop.permute.xlu0 %1465
        %1467 = vrot.lane.b32.xlu0 %v1231, 72
        %v1468 = vpop.permute.xlu0 %1467
        %1469 = vrot.lane.b32.xlu0 %v1232, 72
        %v1470 = vpop.permute.xlu0 %1469
        %1471 = vrot.lane.b32.xlu0 %v1233, 72
        %v1472 = vpop.permute.xlu0 %1471
        %1473 = vrot.lane.b32.xlu0 %v1234, 72
        %v1474 = vpop.permute.xlu0 %1473
        %1475 = vrot.lane.b32.xlu0 %v1235, 72
        %v1476 = vpop.permute.xlu0 %1475
        %1477 = vrot.lane.b32.xlu0 %v1236, 72
        %v1478 = vpop.permute.xlu0 %1477
        %1479 = vrot.lane.b32.xlu0 %v1237, 72
        %v1480 = vpop.permute.xlu0 %1479
        %1481 = vrot.lane.b32.xlu0 %v1238, 72
        %v1482 = vpop.permute.xlu0 %1481
        %1483 = vrot.lane.b32.xlu0 %v1239, 72
        %v1484 = vpop.permute.xlu0 %1483
        %1485 = vrot.lane.b32.xlu0 %v1240, 72
        %v1486 = vpop.permute.xlu0 %1485
        %1487 = vrot.lane.b32.xlu0 %v1241, 72
        %v1488 = vpop.permute.xlu0 %1487
        %1489 = vrot.lane.b32.xlu0 %v1242, 72
        %v1490 = vpop.permute.xlu0 %1489
        %1491 = vrot.lane.b32.xlu0 %v1243, 72
        %v1492 = vpop.permute.xlu0 %1491
        %1493 = vrot.lane.b32.xlu0 %v1244, 72
        %v1494 = vpop.permute.xlu0 %1493
        %vm1510 = vcmask 785984
        %1511 = vst.msk [vmem:[#allocation3] sm:$0xff] %vm1510, %v1466
        %1512 = vst.msk [vmem:[#allocation3 + $0x10] sm:$0xff] %vm1510, %v1468
        %1513 = vst.msk [vmem:[#allocation3 + $0x20] sm:$0xff] %vm1510, %v1470
        %1514 = vst.msk [vmem:[#allocation3 + $0x30] sm:$0xff] %vm1510, %v1472
        %1515 = vst.msk [vmem:[#allocation3 + $0x40] sm:$0xff] %vm1510, %v1474
        %1516 = vst.msk [vmem:[#allocation3 + $0x50] sm:$0xff] %vm1510, %v1476
        %1517 = vst.msk [vmem:[#allocation3 + $0x60] sm:$0xff] %vm1510, %v1478
        %1518 = vst.msk [vmem:[#allocation3 + $0x70] sm:$0xff] %vm1510, %v1480
        %1519 = vst.msk [vmem:[#allocation3 + $0x80] sm:$0xff] %vm1510, %v1482
        %1520 = vst.msk [vmem:[#allocation3 + $0x90] sm:$0xff] %vm1510, %v1484
        %1521 = vst.msk [vmem:[#allocation3 + $0xa0] sm:$0xff] %vm1510, %v1486
        %1522 = vst.msk [vmem:[#allocation3 + $0xb0] sm:$0xff] %vm1510, %v1488
        %1523 = vst.msk [vmem:[#allocation3 + $0xc0] sm:$0xff] %vm1510, %v1490
        %1524 = vst.msk [vmem:[#allocation3 + $0xd0] sm:$0xff] %vm1510, %v1492
        %1525 = vst.msk [vmem:[#allocation3 + $0xe0] sm:$0xff] %vm1510, %v1494
        %v1527 = vrot.slane %v1245, 1
        %v1528 = vsel %vm1279, %v1309, %v1527
        %1529 = vrot.lane.b32.xlu0 %v1284, 96
        %v1530 = vpop.permute.xlu0 %1529
        %1531 = vrot.lane.b32.xlu0 %v1286, 96
        %v1532 = vpop.permute.xlu0 %1531
        %1533 = vrot.lane.b32.xlu0 %v1288, 96
        %v1534 = vpop.permute.xlu0 %1533
        %1535 = vrot.lane.b32.xlu0 %v1290, 96
        %v1536 = vpop.permute.xlu0 %1535
        %1537 = vrot.lane.b32.xlu0 %v1292, 96
        %v1538 = vpop.permute.xlu0 %1537
        %1539 = vrot.lane.b32.xlu0 %v1294, 96
        %v1540 = vpop.permute.xlu0 %1539
        %1541 = vrot.lane.b32.xlu0 %v1296, 96
        %v1542 = vpop.permute.xlu0 %1541
        %1543 = vrot.lane.b32.xlu0 %v1298, 96
        %v1544 = vpop.permute.xlu0 %1543
        %1545 = vrot.lane.b32.xlu0 %v1300, 96
        %v1546 = vpop.permute.xlu0 %1545
        %1547 = vrot.lane.b32.xlu0 %v1302, 96
        %v1548 = vpop.permute.xlu0 %1547
        %1549 = vrot.lane.b32.xlu0 %v1304, 96
        %v1550 = vpop.permute.xlu0 %1549
        %1551 = vrot.lane.b32.xlu0 %v1306, 96
        %v1552 = vpop.permute.xlu0 %1551
        %1553 = vrot.lane.b32.xlu0 %v1308, 96
        %v1554 = vpop.permute.xlu0 %1553
        %1555 = vrot.lane.b32.xlu0 %v1310, 96
        %v1556 = vpop.permute.xlu0 %1555
        %1557 = vrot.lane.b32.xlu0 %v1528, 96
        %v1558 = vpop.permute.xlu0 %1557
        %vm1574 = vcmask 982784
        %1575 = vst.msk [vmem:[#allocation3] sm:$0xff] %vm1574, %v1530
        %1576 = vst.msk [vmem:[#allocation3 + $0x10] sm:$0xff] %vm1574, %v1532
        %1577 = vst.msk [vmem:[#allocation3 + $0x20] sm:$0xff] %vm1574, %v1534
        %1578 = vst.msk [vmem:[#allocation3 + $0x30] sm:$0xff] %vm1574, %v1536
        %1579 = vst.msk [vmem:[#allocation3 + $0x40] sm:$0xff] %vm1574, %v1538
        %1580 = vst.msk [vmem:[#allocation3 + $0x50] sm:$0xff] %vm1574, %v1540
        %1581 = vst.msk [vmem:[#allocation3 + $0x60] sm:$0xff] %vm1574, %v1542
        %1582 = vst.msk [vmem:[#allocation3 + $0x70] sm:$0xff] %vm1574, %v1544
        %1583 = vst.msk [vmem:[#allocation3 + $0x80] sm:$0xff] %vm1574, %v1546
        %1584 = vst.msk [vmem:[#allocation3 + $0x90] sm:$0xff] %vm1574, %v1548
        %1585 = vst.msk [vmem:[#allocation3 + $0xa0] sm:$0xff] %vm1574, %v1550
        %1586 = vst.msk [vmem:[#allocation3 + $0xb0] sm:$0xff] %vm1574, %v1552
        %1587 = vst.msk [vmem:[#allocation3 + $0xc0] sm:$0xff] %vm1574, %v1554
        %1588 = vst.msk [vmem:[#allocation3 + $0xd0] sm:$0xff] %vm1574, %v1556
        %1589 = vst.msk [vmem:[#allocation3 + $0xe0] sm:$0xff] %vm1574, %v1558
        %v1590 = vrot.slane %v1245, 2
        %v1591 = vsel %vm1372, %v1402, %v1590
        %1592 = vrot.lane.b32.xlu0 %v1377, 120
        %v1593 = vpop.permute.xlu0 %1592
        %1594 = vrot.lane.b32.xlu0 %v1379, 120
        %v1595 = vpop.permute.xlu0 %1594
        %1596 = vrot.lane.b32.xlu0 %v1381, 120
        %v1597 = vpop.permute.xlu0 %1596
        %1598 = vrot.lane.b32.xlu0 %v1383, 120
        %v1599 = vpop.permute.xlu0 %1598
        %1600 = vrot.lane.b32.xlu0 %v1385, 120
        %v1601 = vpop.permute.xlu0 %1600
        %1602 = vrot.lane.b32.xlu0 %v1387, 120
        %v1603 = vpop.permute.xlu0 %1602
        %1604 = vrot.lane.b32.xlu0 %v1389, 120
        %v1605 = vpop.permute.xlu0 %1604
        %1606 = vrot.lane.b32.xlu0 %v1391, 120
        %v1607 = vpop.permute.xlu0 %1606
        %1608 = vrot.lane.b32.xlu0 %v1393, 120
        %v1609 = vpop.permute.xlu0 %1608
        %1610 = vrot.lane.b32.xlu0 %v1395, 120
        %v1611 = vpop.permute.xlu0 %1610
        %1612 = vrot.lane.b32.xlu0 %v1397, 120
        %v1613 = vpop.permute.xlu0 %1612
        %1614 = vrot.lane.b32.xlu0 %v1399, 120
        %v1615 = vpop.permute.xlu0 %1614
        %1616 = vrot.lane.b32.xlu0 %v1401, 120
        %v1617 = vpop.permute.xlu0 %1616
        %1618 = vrot.lane.b32.xlu0 %v1403, 120
        %v1619 = vpop.permute.xlu0 %1618
        %1620 = vrot.lane.b32.xlu0 %v1591, 120
        %v1621 = vpop.permute.xlu0 %1620
        %vm1637 = vcmask 1048512
        %1638 = vst.msk [vmem:[#allocation3] sm:$0xff] %vm1637, %v1593
        %1639 = vst.msk [vmem:[#allocation3 + $0x8] sm:$0xff] %vm625, %v1593
        %1640 = vst.msk [vmem:[#allocation3 + $0x10] sm:$0xff] %vm1637, %v1595
        %1641 = vst.msk [vmem:[#allocation3 + $0x18] sm:$0xff] %vm625, %v1595
        %1642 = vst.msk [vmem:[#allocation3 + $0x20] sm:$0xff] %vm1637, %v1597
        %1643 = vst.msk [vmem:[#allocation3 + $0x28] sm:$0xff] %vm625, %v1597
        %1644 = vst.msk [vmem:[#allocation3 + $0x30] sm:$0xff] %vm1637, %v1599
        %1645 = vst.msk [vmem:[#allocation3 + $0x38] sm:$0xff] %vm625, %v1599
        %1646 = vst.msk [vmem:[#allocation3 + $0x40] sm:$0xff] %vm1637, %v1601
        %1647 = vst.msk [vmem:[#allocation3 + $0x48] sm:$0xff] %vm625, %v1601
        %1648 = vst.msk [vmem:[#allocation3 + $0x50] sm:$0xff] %vm1637, %v1603
        %1649 = vst.msk [vmem:[#allocation3 + $0x58] sm:$0xff] %vm625, %v1603
        %1650 = vst.msk [vmem:[#allocation3 + $0x60] sm:$0xff] %vm1637, %v1605
        %1651 = vst.msk [vmem:[#allocation3 + $0x68] sm:$0xff] %vm625, %v1605
        %1652 = vst.msk [vmem:[#allocation3 + $0x70] sm:$0xff] %vm1637, %v1607
        %1653 = vst.msk [vmem:[#allocation3 + $0x78] sm:$0xff] %vm625, %v1607
        %1654 = vst.msk [vmem:[#allocation3 + $0x80] sm:$0xff] %vm1637, %v1609
        %1655 = vst.msk [vmem:[#allocation3 + $0x88] sm:$0xff] %vm625, %v1609
        %1656 = vst.msk [vmem:[#allocation3 + $0x90] sm:$0xff] %vm1637, %v1611
        %1657 = vst.msk [vmem:[#allocation3 + $0x98] sm:$0xff] %vm625, %v1611
        %1658 = vst.msk [vmem:[#allocation3 + $0xa0] sm:$0xff] %vm1637, %v1613
        %1659 = vst.msk [vmem:[#allocation3 + $0xa8] sm:$0xff] %vm625, %v1613
        %1660 = vst.msk [vmem:[#allocation3 + $0xb0] sm:$0xff] %vm1637, %v1615
        %1661 = vst.msk [vmem:[#allocation3 + $0xb8] sm:$0xff] %vm625, %v1615
        %1662 = vst.msk [vmem:[#allocation3 + $0xc0] sm:$0xff] %vm1637, %v1617
        %1663 = vst.msk [vmem:[#allocation3 + $0xc8] sm:$0xff] %vm625, %v1617
        %1664 = vst.msk [vmem:[#allocation3 + $0xd0] sm:$0xff] %vm1637, %v1619
        %1665 = vst.msk [vmem:[#allocation3 + $0xd8] sm:$0xff] %vm625, %v1619
        %1666 = vst.msk [vmem:[#allocation3 + $0xe0] sm:$0xff] %vm1637, %v1621
        %1667 = vst.msk [vmem:[#allocation3 + $0xe8] sm:$0xff] %vm625, %v1621
        %1668 = vrot.lane.b32.xlu0 %v1231, 16
        %v1669 = vpop.permute.xlu0 %1668
        %1670 = vrot.lane.b32.xlu0 %v1232, 16
        %v1671 = vpop.permute.xlu0 %1670
        %1672 = vrot.lane.b32.xlu0 %v1233, 16
        %v1673 = vpop.permute.xlu0 %1672
        %1674 = vrot.lane.b32.xlu0 %v1234, 16
        %v1675 = vpop.permute.xlu0 %1674
        %1676 = vrot.lane.b32.xlu0 %v1235, 16
        %v1677 = vpop.permute.xlu0 %1676
        %1678 = vrot.lane.b32.xlu0 %v1236, 16
        %v1679 = vpop.permute.xlu0 %1678
        %1680 = vrot.lane.b32.xlu0 %v1237, 16
        %v1681 = vpop.permute.xlu0 %1680
        %1682 = vrot.lane.b32.xlu0 %v1238, 16
        %v1683 = vpop.permute.xlu0 %1682
        %1684 = vrot.lane.b32.xlu0 %v1239, 16
        %v1685 = vpop.permute.xlu0 %1684
        %1686 = vrot.lane.b32.xlu0 %v1240, 16
        %v1687 = vpop.permute.xlu0 %1686
        %1688 = vrot.lane.b32.xlu0 %v1241, 16
        %v1689 = vpop.permute.xlu0 %1688
        %1690 = vrot.lane.b32.xlu0 %v1242, 16
        %v1691 = vpop.permute.xlu0 %1690
        %1692 = vrot.lane.b32.xlu0 %v1243, 16
        %v1693 = vpop.permute.xlu0 %1692
        %1694 = vrot.lane.b32.xlu0 %v1244, 16
        %v1695 = vpop.permute.xlu0 %1694
        %1696 = vrot.lane.b32.xlu0 %v1245, 16
        %v1697 = vpop.permute.xlu0 %1696
        %vm1713 = vcmask 326784
        %1714 = vst.msk [vmem:[#allocation3 + $0x8] sm:$0xff] %vm1713, %v1669
        %1715 = vst.msk [vmem:[#allocation3 + $0x18] sm:$0xff] %vm1713, %v1671
        %1716 = vst.msk [vmem:[#allocation3 + $0x28] sm:$0xff] %vm1713, %v1673
        %1717 = vst.msk [vmem:[#allocation3 + $0x38] sm:$0xff] %vm1713, %v1675
        %1718 = vst.msk [vmem:[#allocation3 + $0x48] sm:$0xff] %vm1713, %v1677
        %1719 = vst.msk [vmem:[#allocation3 + $0x58] sm:$0xff] %vm1713, %v1679
        %1720 = vst.msk [vmem:[#allocation3 + $0x68] sm:$0xff] %vm1713, %v1681
        %1721 = vst.msk [vmem:[#allocation3 + $0x78] sm:$0xff] %vm1713, %v1683
        %1722 = vst.msk [vmem:[#allocation3 + $0x88] sm:$0xff] %vm1713, %v1685
        %1723 = vst.msk [vmem:[#allocation3 + $0x98] sm:$0xff] %vm1713, %v1687
        %1724 = vst.msk [vmem:[#allocation3 + $0xa8] sm:$0xff] %vm1713, %v1689
        %1725 = vst.msk [vmem:[#allocation3 + $0xb8] sm:$0xff] %vm1713, %v1691
        %1726 = vst.msk [vmem:[#allocation3 + $0xc8] sm:$0xff] %vm1713, %v1693
        %1727 = vst.msk [vmem:[#allocation3 + $0xd8] sm:$0xff] %vm1713, %v1695
        %1728 = vst.msk [vmem:[#allocation3 + $0xe8] sm:$0xff] %vm1713, %v1697
        %v1730 = vrot.slane %v1246, 1
        %v1731 = vsel %vm1279, %v1527, %v1730
        %1732 = vrot.lane.b32.xlu0 %v1286, 40
        %v1733 = vpop.permute.xlu0 %1732
        %1734 = vrot.lane.b32.xlu0 %v1288, 40
        %v1735 = vpop.permute.xlu0 %1734
        %1736 = vrot.lane.b32.xlu0 %v1290, 40
        %v1737 = vpop.permute.xlu0 %1736
        %1738 = vrot.lane.b32.xlu0 %v1292, 40
        %v1739 = vpop.permute.xlu0 %1738
        %1740 = vrot.lane.b32.xlu0 %v1294, 40
        %v1741 = vpop.permute.xlu0 %1740
        %1742 = vrot.lane.b32.xlu0 %v1296, 40
        %v1743 = vpop.permute.xlu0 %1742
        %1744 = vrot.lane.b32.xlu0 %v1298, 40
        %v1745 = vpop.permute.xlu0 %1744
        %1746 = vrot.lane.b32.xlu0 %v1300, 40
        %v1747 = vpop.permute.xlu0 %1746
        %1748 = vrot.lane.b32.xlu0 %v1302, 40
        %v1749 = vpop.permute.xlu0 %1748
        %1750 = vrot.lane.b32.xlu0 %v1304, 40
        %v1751 = vpop.permute.xlu0 %1750
        %1752 = vrot.lane.b32.xlu0 %v1306, 40
        %v1753 = vpop.permute.xlu0 %1752
        %1754 = vrot.lane.b32.xlu0 %v1308, 40
        %v1755 = vpop.permute.xlu0 %1754
        %1756 = vrot.lane.b32.xlu0 %v1310, 40
        %v1757 = vpop.permute.xlu0 %1756
        %1758 = vrot.lane.b32.xlu0 %v1528, 40
        %v1759 = vpop.permute.xlu0 %1758
        %1760 = vrot.lane.b32.xlu0 %v1731, 40
        %v1761 = vpop.permute.xlu0 %1760
        %vm1777 = vcmask 523584
        %1778 = vst.msk [vmem:[#allocation3 + $0x8] sm:$0xff] %vm1777, %v1733
        %1779 = vst.msk [vmem:[#allocation3 + $0x18] sm:$0xff] %vm1777, %v1735
        %1780 = vst.msk [vmem:[#allocation3 + $0x28] sm:$0xff] %vm1777, %v1737
        %1781 = vst.msk [vmem:[#allocation3 + $0x38] sm:$0xff] %vm1777, %v1739
        %1782 = vst.msk [vmem:[#allocation3 + $0x48] sm:$0xff] %vm1777, %v1741
        %1783 = vst.msk [vmem:[#allocation3 + $0x58] sm:$0xff] %vm1777, %v1743
        %1784 = vst.msk [vmem:[#allocation3 + $0x68] sm:$0xff] %vm1777, %v1745
        %1785 = vst.msk [vmem:[#allocation3 + $0x78] sm:$0xff] %vm1777, %v1747
        %1786 = vst.msk [vmem:[#allocation3 + $0x88] sm:$0xff] %vm1777, %v1749
        %1787 = vst.msk [vmem:[#allocation3 + $0x98] sm:$0xff] %vm1777, %v1751
        %1788 = vst.msk [vmem:[#allocation3 + $0xa8] sm:$0xff] %vm1777, %v1753
        %1789 = vst.msk [vmem:[#allocation3 + $0xb8] sm:$0xff] %vm1777, %v1755
        %1790 = vst.msk [vmem:[#allocation3 + $0xc8] sm:$0xff] %vm1777, %v1757
        %1791 = vst.msk [vmem:[#allocation3 + $0xd8] sm:$0xff] %vm1777, %v1759
        %1792 = vst.msk [vmem:[#allocation3 + $0xe8] sm:$0xff] %vm1777, %v1761
        %v1793 = vrot.slane %v1246, 2
        %v1794 = vsel %vm1372, %v1590, %v1793
        %1795 = vrot.lane.b32.xlu0 %v1379, 64
        %v1796 = vpop.permute.xlu0 %1795
        %1797 = vrot.lane.b32.xlu0 %v1381, 64
        %v1798 = vpop.permute.xlu0 %1797
        %1799 = vrot.lane.b32.xlu0 %v1383, 64
        %v1800 = vpop.permute.xlu0 %1799
        %1801 = vrot.lane.b32.xlu0 %v1385, 64
        %v1802 = vpop.permute.xlu0 %1801
        %1803 = vrot.lane.b32.xlu0 %v1387, 64
        %v1804 = vpop.permute.xlu0 %1803
        %1805 = vrot.lane.b32.xlu0 %v1389, 64
        %v1806 = vpop.permute.xlu0 %1805
        %1807 = vrot.lane.b32.xlu0 %v1391, 64
        %v1808 = vpop.permute.xlu0 %1807
        %1809 = vrot.lane.b32.xlu0 %v1393, 64
        %v1810 = vpop.permute.xlu0 %1809
        %1811 = vrot.lane.b32.xlu0 %v1395, 64
        %v1812 = vpop.permute.xlu0 %1811
        %1813 = vrot.lane.b32.xlu0 %v1397, 64
        %v1814 = vpop.permute.xlu0 %1813
        %1815 = vrot.lane.b32.xlu0 %v1399, 64
        %v1816 = vpop.permute.xlu0 %1815
        %1817 = vrot.lane.b32.xlu0 %v1401, 64
        %v1818 = vpop.permute.xlu0 %1817
        %1819 = vrot.lane.b32.xlu0 %v1403, 64
        %v1820 = vpop.permute.xlu0 %1819
        %1821 = vrot.lane.b32.xlu0 %v1591, 64
        %v1822 = vpop.permute.xlu0 %1821
        %1823 = vrot.lane.b32.xlu0 %v1794, 64
        %v1824 = vpop.permute.xlu0 %1823
        %vm1840 = vcmask 720384
        %1841 = vst.msk [vmem:[#allocation3 + $0x8] sm:$0xff] %vm1840, %v1796
        %1842 = vst.msk [vmem:[#allocation3 + $0x18] sm:$0xff] %vm1840, %v1798
        %1843 = vst.msk [vmem:[#allocation3 + $0x28] sm:$0xff] %vm1840, %v1800
        %1844 = vst.msk [vmem:[#allocation3 + $0x38] sm:$0xff] %vm1840, %v1802
        %1845 = vst.msk [vmem:[#allocation3 + $0x48] sm:$0xff] %vm1840, %v1804
        %1846 = vst.msk [vmem:[#allocation3 + $0x58] sm:$0xff] %vm1840, %v1806
        %1847 = vst.msk [vmem:[#allocation3 + $0x68] sm:$0xff] %vm1840, %v1808
        %1848 = vst.msk [vmem:[#allocation3 + $0x78] sm:$0xff] %vm1840, %v1810
        %1849 = vst.msk [vmem:[#allocation3 + $0x88] sm:$0xff] %vm1840, %v1812
        %1850 = vst.msk [vmem:[#allocation3 + $0x98] sm:$0xff] %vm1840, %v1814
        %1851 = vst.msk [vmem:[#allocation3 + $0xa8] sm:$0xff] %vm1840, %v1816
        %1852 = vst.msk [vmem:[#allocation3 + $0xb8] sm:$0xff] %vm1840, %v1818
        %1853 = vst.msk [vmem:[#allocation3 + $0xc8] sm:$0xff] %vm1840, %v1820
        %1854 = vst.msk [vmem:[#allocation3 + $0xd8] sm:$0xff] %vm1840, %v1822
        %1855 = vst.msk [vmem:[#allocation3 + $0xe8] sm:$0xff] %vm1840, %v1824
        %v1856 = vld [vmem:[#allocation3] sm:$0xff]
        %v1857 = vld [vmem:[#allocation3 + $0x8] sm:$0xff]
        %v1858 = vld [vmem:[#allocation3 + $0x10] sm:$0xff]
        %v1859 = vld [vmem:[#allocation3 + $0x18] sm:$0xff]
        %v1860 = vld [vmem:[#allocation3 + $0x20] sm:$0xff]
        %v1861 = vld [vmem:[#allocation3 + $0x28] sm:$0xff]
        %v1862 = vld [vmem:[#allocation3 + $0x30] sm:$0xff]
        %v1863 = vld [vmem:[#allocation3 + $0x38] sm:$0xff]
        %v1864 = vld [vmem:[#allocation3 + $0x40] sm:$0xff]
        %v1865 = vld [vmem:[#allocation3 + $0x48] sm:$0xff]
        %v1866 = vld [vmem:[#allocation3 + $0x50] sm:$0xff]
        %v1867 = vld [vmem:[#allocation3 + $0x58] sm:$0xff]
        %v1868 = vld [vmem:[#allocation3 + $0x60] sm:$0xff]
        %v1869 = vld [vmem:[#allocation3 + $0x68] sm:$0xff]
        %v1870 = vld [vmem:[#allocation3 + $0x70] sm:$0xff]
        %v1871 = vld [vmem:[#allocation3 + $0x78] sm:$0xff]
        %v1872 = vld [vmem:[#allocation3 + $0x80] sm:$0xff]
        %v1873 = vld [vmem:[#allocation3 + $0x88] sm:$0xff]
        %v1874 = vld [vmem:[#allocation3 + $0x90] sm:$0xff]
        %v1875 = vld [vmem:[#allocation3 + $0x98] sm:$0xff]
        %v1876 = vld [vmem:[#allocation3 + $0xa0] sm:$0xff]
        %v1877 = vld [vmem:[#allocation3 + $0xa8] sm:$0xff]
        %v1878 = vld [vmem:[#allocation3 + $0xb0] sm:$0xff]
        %v1879 = vld [vmem:[#allocation3 + $0xb8] sm:$0xff]
        %v1880 = vld [vmem:[#allocation3 + $0xc0] sm:$0xff]
        %v1881 = vld [vmem:[#allocation3 + $0xc8] sm:$0xff]
        %v1882 = vld [vmem:[#allocation3 + $0xd0] sm:$0xff]
        %v1883 = vld [vmem:[#allocation3 + $0xd8] sm:$0xff]
        %v1884 = vld [vmem:[#allocation3 + $0xe0] sm:$0xff]
        %v1885 = vld [vmem:[#allocation3 + $0xe8] sm:$0xff]
        %v1886 = vld [vmem:[%s3] sm:$0xff]
        %v1887 = vld [vmem:[%s3 + $0x8] sm:$0xff]
        %v1888 = vld [vmem:[%s3 + $0x10] sm:$0xff]
        %v1889 = vld [vmem:[%s3 + $0x18] sm:$0xff]
        %v1890 = vld [vmem:[%s3 + $0x20] sm:$0xff]
        %v1891 = vld [vmem:[%s3 + $0x28] sm:$0xff]
        %v1892 = vld [vmem:[%s3 + $0x30] sm:$0xff]
        %v1893 = vld [vmem:[%s3 + $0x38] sm:$0xff]
        %v1894 = vld [vmem:[%s3 + $0x40] sm:$0xff]
        %v1895 = vld [vmem:[%s3 + $0x48] sm:$0xff]
        %v1896 = vld [vmem:[%s3 + $0x50] sm:$0xff]
        %v1897 = vld [vmem:[%s3 + $0x58] sm:$0xff]
        %v1898 = vld [vmem:[%s3 + $0x60] sm:$0xff]
        %v1899 = vld [vmem:[%s3 + $0x68] sm:$0xff]
        %v1900 = vld [vmem:[%s3 + $0x70] sm:$0xff]
        %v1901 = vld [vmem:[%s3 + $0x78] sm:$0xff]
        %v1902 = vld [vmem:[%s3 + $0x80] sm:$0xff]
        %v1903 = vld [vmem:[%s3 + $0x88] sm:$0xff]
        %v1904 = vld [vmem:[%s3 + $0x90] sm:$0xff]
        %v1905 = vld [vmem:[%s3 + $0x98] sm:$0xff]
        %v1906 = vld [vmem:[%s3 + $0xa0] sm:$0xff]
        %v1907 = vld [vmem:[%s3 + $0xa8] sm:$0xff]
        %v1908 = vld [vmem:[%s3 + $0xb0] sm:$0xff]
        %v1909 = vld [vmem:[%s3 + $0xb8] sm:$0xff]
        %v1910 = vld [vmem:[%s3 + $0xc0] sm:$0xff]
        %v1911 = vld [vmem:[%s3 + $0xc8] sm:$0xff]
        %v1912 = vld [vmem:[%s3 + $0xd0] sm:$0xff]
        %vm1913 = vcmask 719872
        %v1915 = vsel %vm1913, %v1857, 0
        %v1918 = vsel %vm1913, %v1859, 0
        %v1921 = vsel %vm1913, %v1861, 0
        %v1924 = vsel %vm1913, %v1863, 0
        %v1927 = vsel %vm1913, %v1865, 0
        %v1930 = vsel %vm1913, %v1867, 0
        %v1933 = vsel %vm1913, %v1869, 0
        %v1936 = vsel %vm1913, %v1871, 0
        %v1939 = vsel %vm1913, %v1873, 0
        %v1942 = vsel %vm1913, %v1875, 0
        %v1945 = vsel %vm1913, %v1877, 0
        %v1948 = vsel %vm1913, %v1879, 0
        %v1951 = vsel %vm1913, %v1881, 0
        %v1954 = vsel %vm1913, %v1883, 0
        %v1957 = vsel %vm1913, %v1885, 0
        %1959 = vmatpush.msra.mxu0 %v1901
        %1960 = vmatpush.msra.mxu0 %v1900
        %1961 = vmatpush.msra.mxu0 %v1899
        %1962 = vmatpush.msra.mxu0 %v1898
        %1963 = vmatpush.msra.mxu0 %v1897
        %1964 = vmatpush.msra.mxu0 %v1896
        %1965 = vmatpush.msra.mxu0 %v1895
        %1966 = vmatpush.msra.mxu0 %v1894
        %1967 = vmatpush.msra.mxu0 %v1893
        %1968 = vmatpush.msra.mxu0 %v1892
        %1969 = vmatpush.msra.mxu0 %v1891
        %1970 = vmatpush.msra.mxu0 %v1890
        %1971 = vmatpush.msra.mxu0 %v1889
        %1972 = vmatpush.msra.mxu0 %v1888
        %1973 = vmatpush.msra.mxu0 %v1887
        %1974 = vmatpush.msra.mxu0 %v1886
        %1975 = vmatmul.f32.gmra.mxu0 %v1856
        %v1976 = vpop.f32.mrf.mxu0
        %v1977 = vadd.f32 0.0, %v1976
        %1978 = vmatmul.f32.gmra.mxu0 %v1858
        %v1979 = vpop.f32.mrf.mxu0
        %v1980 = vadd.f32 0.0, %v1979
        %1981 = vmatmul.f32.gmra.mxu0 %v1860
        %v1982 = vpop.f32.mrf.mxu0
        %v1983 = vadd.f32 0.0, %v1982
        %1984 = vmatmul.f32.gmra.mxu0 %v1862
        %v1985 = vpop.f32.mrf.mxu0
        %v1986 = vadd.f32 0.0, %v1985
        %1987 = vmatmul.f32.gmra.mxu0 %v1864
        %v1988 = vpop.f32.mrf.mxu0
        %v1989 = vadd.f32 0.0, %v1988
        %1990 = vmatmul.f32.gmra.mxu0 %v1866
        %v1991 = vpop.f32.mrf.mxu0
        %v1992 = vadd.f32 0.0, %v1991
        %1993 = vmatmul.f32.gmra.mxu0 %v1868
        %v1994 = vpop.f32.mrf.mxu0
        %v1995 = vadd.f32 0.0, %v1994
        %1996 = vmatmul.f32.gmra.mxu0 %v1870
        %v1997 = vpop.f32.mrf.mxu0
        %v1998 = vadd.f32 0.0, %v1997
        %1999 = vmatmul.f32.gmra.mxu0 %v1872
        %v2000 = vpop.f32.mrf.mxu0
        %v2001 = vadd.f32 0.0, %v2000
        %2002 = vmatmul.f32.gmra.mxu0 %v1874
        %v2003 = vpop.f32.mrf.mxu0
        %v2004 = vadd.f32 0.0, %v2003
        %2005 = vmatmul.f32.gmra.mxu0 %v1876
        %v2006 = vpop.f32.mrf.mxu0
        %v2007 = vadd.f32 0.0, %v2006
        %2008 = vmatmul.f32.gmra.mxu0 %v1878
        %v2009 = vpop.f32.mrf.mxu0
        %v2010 = vadd.f32 0.0, %v2009
        %2011 = vmatmul.f32.gmra.mxu0 %v1880
        %v2012 = vpop.f32.mrf.mxu0
        %v2013 = vadd.f32 0.0, %v2012
        %2014 = vmatmul.f32.gmra.mxu0 %v1882
        %v2015 = vpop.f32.mrf.mxu0
        %v2016 = vadd.f32 0.0, %v2015
        %2017 = vmatmul.f32.gmra.mxu0 %v1884
        %v2018 = vpop.f32.mrf.mxu0
        %v2019 = vadd.f32 0.0, %v2018
        %2020 = vdwg.mxu0
        %2021 = vmatpush.msra.mxu0 0.0
        %2022 = vmatpush.msra.mxu0 0.0
        %2023 = vmatpush.msra.mxu0 0.0
        %2024 = vmatpush.msra.mxu0 0.0
        %2025 = vmatpush.msra.mxu0 0.0
        %2026 = vmatpush.msra.mxu0 %v1912
        %2027 = vmatpush.msra.mxu0 %v1911
        %2028 = vmatpush.msra.mxu0 %v1910
        %2029 = vmatpush.msra.mxu0 %v1909
        %2030 = vmatpush.msra.mxu0 %v1908
        %2031 = vmatpush.msra.mxu0 %v1907
        %2032 = vmatpush.msra.mxu0 %v1906
        %2033 = vmatpush.msra.mxu0 %v1905
        %2034 = vmatpush.msra.mxu0 %v1904
        %2035 = vmatpush.msra.mxu0 %v1903
        %2036 = vmatpush.msra.mxu0 %v1902
        %2037 = vmatmul.f32.gmra.mxu0 %v1915
        %v2038 = vpop.f32.mrf.mxu0
        %v2039 = vadd.f32 %v1977, %v2038
        %2040 = vmatmul.f32.gmra.mxu0 %v1918
        %v2041 = vpop.f32.mrf.mxu0
        %v2042 = vadd.f32 %v1980, %v2041
        %2043 = vmatmul.f32.gmra.mxu0 %v1921
        %v2044 = vpop.f32.mrf.mxu0
        %v2045 = vadd.f32 %v1983, %v2044
        %2046 = vmatmul.f32.gmra.mxu0 %v1924
        %v2047 = vpop.f32.mrf.mxu0
        %v2048 = vadd.f32 %v1986, %v2047
        %2049 = vmatmul.f32.gmra.mxu0 %v1927
        %v2050 = vpop.f32.mrf.mxu0
        %v2051 = vadd.f32 %v1989, %v2050
        %2052 = vmatmul.f32.gmra.mxu0 %v1930
        %v2053 = vpop.f32.mrf.mxu0
        %v2054 = vadd.f32 %v1992, %v2053
        %2055 = vmatmul.f32.gmra.mxu0 %v1933
        %v2056 = vpop.f32.mrf.mxu0
        %v2057 = vadd.f32 %v1995, %v2056
        %2058 = vmatmul.f32.gmra.mxu0 %v1936
        %v2059 = vpop.f32.mrf.mxu0
        %v2060 = vadd.f32 %v1998, %v2059
        %2061 = vmatmul.f32.gmra.mxu0 %v1939
        %v2062 = vpop.f32.mrf.mxu0
        %v2063 = vadd.f32 %v2001, %v2062
        %2064 = vmatmul.f32.gmra.mxu0 %v1942
        %v2065 = vpop.f32.mrf.mxu0
        %v2066 = vadd.f32 %v2004, %v2065
        %2067 = vmatmul.f32.gmra.mxu0 %v1945
        %v2068 = vpop.f32.mrf.mxu0
        %v2069 = vadd.f32 %v2007, %v2068
        %2070 = vmatmul.f32.gmra.mxu0 %v1948
        %v2071 = vpop.f32.mrf.mxu0
        %v2072 = vadd.f32 %v2010, %v2071
        %2073 = vmatmul.f32.gmra.mxu0 %v1951
        %v2074 = vpop.f32.mrf.mxu0
        %v2075 = vadd.f32 %v2013, %v2074
        %2076 = vmatmul.f32.gmra.mxu0 %v1954
        %v2077 = vpop.f32.mrf.mxu0
        %v2078 = vadd.f32 %v2016, %v2077
        %2079 = vmatmul.f32.gmra.mxu0 %v1957
        %v2080 = vpop.f32.mrf.mxu0
        %v2081 = vadd.f32 %v2019, %v2080
        %2082 = vdwg.mxu0
        %2098 = vrot.lane.b32.xlu0 %v2039, 112
        %v2099 = vpop.permute.xlu0 %2098
        %2100 = vrot.lane.b32.xlu0 %v2042, 112
        %v2101 = vpop.permute.xlu0 %2100
        %2102 = vrot.lane.b32.xlu0 %v2045, 112
        %v2103 = vpop.permute.xlu0 %2102
        %2104 = vrot.lane.b32.xlu0 %v2048, 112
        %v2105 = vpop.permute.xlu0 %2104
        %2106 = vrot.lane.b32.xlu0 %v2051, 112
        %v2107 = vpop.permute.xlu0 %2106
        %2108 = vrot.lane.b32.xlu0 %v2054, 112
        %v2109 = vpop.permute.xlu0 %2108
        %2110 = vrot.lane.b32.xlu0 %v2057, 112
        %v2111 = vpop.permute.xlu0 %2110
        %2112 = vrot.lane.b32.xlu0 %v2060, 112
        %v2113 = vpop.permute.xlu0 %2112
        %2114 = vrot.lane.b32.xlu0 %v2063, 112
        %v2115 = vpop.permute.xlu0 %2114
        %2116 = vrot.lane.b32.xlu0 %v2066, 112
        %v2117 = vpop.permute.xlu0 %2116
        %2118 = vrot.lane.b32.xlu0 %v2069, 112
        %v2119 = vpop.permute.xlu0 %2118
        %2120 = vrot.lane.b32.xlu0 %v2072, 112
        %v2121 = vpop.permute.xlu0 %2120
        %2122 = vrot.lane.b32.xlu0 %v2075, 112
        %v2123 = vpop.permute.xlu0 %2122
        %2124 = vrot.lane.b32.xlu0 %v2078, 112
        %v2125 = vpop.permute.xlu0 %2124
        %2126 = vrot.lane.b32.xlu0 %v2081, 112
        %v2127 = vpop.permute.xlu0 %2126
        %v2143 = vmax.f32 %v2039, %v2099
        %v2144 = vmax.f32 %v2042, %v2101
        %v2145 = vmax.f32 %v2045, %v2103
        %v2146 = vmax.f32 %v2048, %v2105
        %v2147 = vmax.f32 %v2051, %v2107
        %v2148 = vmax.f32 %v2054, %v2109
        %v2149 = vmax.f32 %v2057, %v2111
        %v2150 = vmax.f32 %v2060, %v2113
        %v2151 = vmax.f32 %v2063, %v2115
        %v2152 = vmax.f32 %v2066, %v2117
        %v2153 = vmax.f32 %v2069, %v2119
        %v2154 = vmax.f32 %v2072, %v2121
        %v2155 = vmax.f32 %v2075, %v2123
        %v2156 = vmax.f32 %v2078, %v2125
        %v2157 = vmax.f32 %v2081, %v2127
        %2173 = vrot.lane.b32.xlu0 %v2143, 96
        %v2174 = vpop.permute.xlu0 %2173
        %2175 = vrot.lane.b32.xlu0 %v2144, 96
        %v2176 = vpop.permute.xlu0 %2175
        %2177 = vrot.lane.b32.xlu0 %v2145, 96
        %v2178 = vpop.permute.xlu0 %2177
        %2179 = vrot.lane.b32.xlu0 %v2146, 96
        %v2180 = vpop.permute.xlu0 %2179
        %2181 = vrot.lane.b32.xlu0 %v2147, 96
        %v2182 = vpop.permute.xlu0 %2181
        %2183 = vrot.lane.b32.xlu0 %v2148, 96
        %v2184 = vpop.permute.xlu0 %2183
        %2185 = vrot.lane.b32.xlu0 %v2149, 96
        %v2186 = vpop.permute.xlu0 %2185
        %2187 = vrot.lane.b32.xlu0 %v2150, 96
        %v2188 = vpop.permute.xlu0 %2187
        %2189 = vrot.lane.b32.xlu0 %v2151, 96
        %v2190 = vpop.permute.xlu0 %2189
        %2191 = vrot.lane.b32.xlu0 %v2152, 96
        %v2192 = vpop.permute.xlu0 %2191
        %2193 = vrot.lane.b32.xlu0 %v2153, 96
        %v2194 = vpop.permute.xlu0 %2193
        %2195 = vrot.lane.b32.xlu0 %v2154, 96
        %v2196 = vpop.permute.xlu0 %2195
        %2197 = vrot.lane.b32.xlu0 %v2155, 96
        %v2198 = vpop.permute.xlu0 %2197
        %2199 = vrot.lane.b32.xlu0 %v2156, 96
        %v2200 = vpop.permute.xlu0 %2199
        %2201 = vrot.lane.b32.xlu0 %v2157, 96
        %v2202 = vpop.permute.xlu0 %2201
        %v2218 = vmax.f32 %v2143, %v2174
        %v2219 = vmax.f32 %v2144, %v2176
        %v2220 = vmax.f32 %v2145, %v2178
        %v2221 = vmax.f32 %v2146, %v2180
        %v2222 = vmax.f32 %v2147, %v2182
        %v2223 = vmax.f32 %v2148, %v2184
        %v2224 = vmax.f32 %v2149, %v2186
        %v2225 = vmax.f32 %v2150, %v2188
        %v2226 = vmax.f32 %v2151, %v2190
        %v2227 = vmax.f32 %v2152, %v2192
        %v2228 = vmax.f32 %v2153, %v2194
        %v2229 = vmax.f32 %v2154, %v2196
        %v2230 = vmax.f32 %v2155, %v2198
        %v2231 = vmax.f32 %v2156, %v2200
        %v2232 = vmax.f32 %v2157, %v2202
        %v2233 = vld [vmem:[%s4] sm:$0x1]
        %v2235 = vperm.slane %v2233, 0
        %v2237 = vadd.f32 %v2218, %v2235
        %v2238 = vadd.f32 %v2219, %v2235
        %v2239 = vadd.f32 %v2220, %v2235
        %v2240 = vadd.f32 %v2221, %v2235
        %v2241 = vadd.f32 %v2222, %v2235
        %v2242 = vadd.f32 %v2223, %v2235
        %v2243 = vadd.f32 %v2224, %v2235
        %v2244 = vadd.f32 %v2225, %v2235
        %v2245 = vadd.f32 %v2226, %v2235
        %v2246 = vadd.f32 %v2227, %v2235
        %v2247 = vadd.f32 %v2228, %v2235
        %v2248 = vadd.f32 %v2229, %v2235
        %v2249 = vadd.f32 %v2230, %v2235
        %v2250 = vadd.f32 %v2231, %v2235
        %v2251 = vadd.f32 %v2232, %v2235
        %v2252 = vmax.f32 %v2237, 0.0
        %v2253 = vmax.f32 %v2238, 0.0
        %v2254 = vmax.f32 %v2239, 0.0
        %v2255 = vmax.f32 %v2240, 0.0
        %v2256 = vmax.f32 %v2241, 0.0
        %v2257 = vmax.f32 %v2242, 0.0
        %v2258 = vmax.f32 %v2243, 0.0
        %v2259 = vmax.f32 %v2244, 0.0
        %v2260 = vmax.f32 %v2245, 0.0
        %v2261 = vmax.f32 %v2246, 0.0
        %v2262 = vmax.f32 %v2247, 0.0
        %v2263 = vmax.f32 %v2248, 0.0
        %v2264 = vmax.f32 %v2249, 0.0
        %v2265 = vmax.f32 %v2250, 0.0
        %v2266 = vmax.f32 %v2251, 0.0
        %2267 = vst.msk [vmem:[#allocation4] sm:$0xff] %vm625, %v2252
        %2268 = vst.msk [vmem:[#allocation4 + $0x20] sm:$0xff] %vm625, %v2253
        %2269 = vst.msk [vmem:[#allocation4 + $0x40] sm:$0xff] %vm625, %v2254
        %2270 = vst.msk [vmem:[#allocation4 + $0x60] sm:$0xff] %vm625, %v2255
        %2271 = vst.msk [vmem:[#allocation4 + $0x80] sm:$0xff] %vm625, %v2256
        %2272 = vst.msk [vmem:[#allocation4 + $0xa0] sm:$0xff] %vm625, %v2257
        %2273 = vst.msk [vmem:[#allocation4 + $0xc0] sm:$0xff] %vm625, %v2258
        %2274 = vst.msk [vmem:[#allocation4 + $0xe0] sm:$0xff] %vm625, %v2259
        %2275 = vst.msk [vmem:[#allocation4 + $0x100] sm:$0xff] %vm625, %v2260
        %2276 = vst.msk [vmem:[#allocation4 + $0x120] sm:$0xff] %vm625, %v2261
        %vm2277 = vcmask 125952
        %2278 = vst.msk [vmem:[#allocation4 + $0x140] sm:$0xf] %vm2277, %v2262
        %v2290 = vrot.slane %v2252, 1
        %v2291 = vrot.slane %v2253, 1
        %v2292 = vsel %vm1279, %v2290, %v2291
        %v2293 = vrot.slane %v2254, 1
        %v2294 = vsel %vm1279, %v2291, %v2293
        %v2295 = vrot.slane %v2255, 1
        %v2296 = vsel %vm1279, %v2293, %v2295
        %v2297 = vrot.slane %v2256, 1
        %v2298 = vsel %vm1279, %v2295, %v2297
        %v2299 = vrot.slane %v2257, 1
        %v2300 = vsel %vm1279, %v2297, %v2299
        %v2301 = vrot.slane %v2258, 1
        %v2302 = vsel %vm1279, %v2299, %v2301
        %v2303 = vrot.slane %v2259, 1
        %v2304 = vsel %vm1279, %v2301, %v2303
        %v2305 = vrot.slane %v2260, 1
        %v2306 = vsel %vm1279, %v2303, %v2305
        %v2307 = vrot.slane %v2261, 1
        %v2308 = vsel %vm1279, %v2305, %v2307
        %v2309 = vrot.slane %v2262, 1
        %v2310 = vsel %vm1279, %v2307, %v2309
        %2311 = vrot.lane.b32.xlu0 %v2292, 16
        %v2312 = vpop.permute.xlu0 %2311
        %2313 = vrot.lane.b32.xlu0 %v2294, 16
        %v2314 = vpop.permute.xlu0 %2313
        %2315 = vrot.lane.b32.xlu0 %v2296, 16
        %v2316 = vpop.permute.xlu0 %2315
        %2317 = vrot.lane.b32.xlu0 %v2298, 16
        %v2318 = vpop.permute.xlu0 %2317
        %2319 = vrot.lane.b32.xlu0 %v2300, 16
        %v2320 = vpop.permute.xlu0 %2319
        %2321 = vrot.lane.b32.xlu0 %v2302, 16
        %v2322 = vpop.permute.xlu0 %2321
        %2323 = vrot.lane.b32.xlu0 %v2304, 16
        %v2324 = vpop.permute.xlu0 %2323
        %2325 = vrot.lane.b32.xlu0 %v2306, 16
        %v2326 = vpop.permute.xlu0 %2325
        %2327 = vrot.lane.b32.xlu0 %v2308, 16
        %v2328 = vpop.permute.xlu0 %2327
        %2329 = vrot.lane.b32.xlu0 %v2310, 16
        %v2330 = vpop.permute.xlu0 %2329
        %2331 = vrot.lane.b32.xlu0 %v2309, 16
        %v2332 = vpop.permute.xlu0 %2331
        %vm2344 = vcmask 261248
        %2345 = vst.msk [vmem:[#allocation4] sm:$0xff] %vm2344, %v2312
        %2346 = vst.msk [vmem:[#allocation4 + $0x20] sm:$0xff] %vm2344, %v2314
        %2347 = vst.msk [vmem:[#allocation4 + $0x40] sm:$0xff] %vm2344, %v2316
        %2348 = vst.msk [vmem:[#allocation4 + $0x60] sm:$0xff] %vm2344, %v2318
        %2349 = vst.msk [vmem:[#allocation4 + $0x80] sm:$0xff] %vm2344, %v2320
        %2350 = vst.msk [vmem:[#allocation4 + $0xa0] sm:$0xff] %vm2344, %v2322
        %2351 = vst.msk [vmem:[#allocation4 + $0xc0] sm:$0xff] %vm2344, %v2324
        %2352 = vst.msk [vmem:[#allocation4 + $0xe0] sm:$0xff] %vm2344, %v2326
        %2353 = vst.msk [vmem:[#allocation4 + $0x100] sm:$0xff] %vm2344, %v2328
        %2354 = vst.msk [vmem:[#allocation4 + $0x120] sm:$0xff] %vm2344, %v2330
        %vm2355 = vcmask 257152
        %2356 = vst.msk [vmem:[#allocation4 + $0x140] sm:$0xf] %vm2355, %v2332
        %v2357 = vrot.slane %v2252, 2
        %v2358 = vrot.slane %v2253, 2
        %v2359 = vsel %vm1372, %v2357, %v2358
        %v2360 = vrot.slane %v2254, 2
        %v2361 = vsel %vm1372, %v2358, %v2360
        %v2362 = vrot.slane %v2255, 2
        %v2363 = vsel %vm1372, %v2360, %v2362
        %v2364 = vrot.slane %v2256, 2
        %v2365 = vsel %vm1372, %v2362, %v2364
        %v2366 = vrot.slane %v2257, 2
        %v2367 = vsel %vm1372, %v2364, %v2366
        %v2368 = vrot.slane %v2258, 2
        %v2369 = vsel %vm1372, %v2366, %v2368
        %v2370 = vrot.slane %v2259, 2
        %v2371 = vsel %vm1372, %v2368, %v2370
        %v2372 = vrot.slane %v2260, 2
        %v2373 = vsel %vm1372, %v2370, %v2372
        %v2374 = vrot.slane %v2261, 2
        %v2375 = vsel %vm1372, %v2372, %v2374
        %v2376 = vrot.slane %v2262, 2
        %v2377 = vsel %vm1372, %v2374, %v2376
        %2378 = vrot.lane.b32.xlu0 %v2359, 32
        %v2379 = vpop.permute.xlu0 %2378
        %2380 = vrot.lane.b32.xlu0 %v2361, 32
        %v2381 = vpop.permute.xlu0 %2380
        %2382 = vrot.lane.b32.xlu0 %v2363, 32
        %v2383 = vpop.permute.xlu0 %2382
        %2384 = vrot.lane.b32.xlu0 %v2365, 32
        %v2385 = vpop.permute.xlu0 %2384
        %2386 = vrot.lane.b32.xlu0 %v2367, 32
        %v2387 = vpop.permute.xlu0 %2386
        %2388 = vrot.lane.b32.xlu0 %v2369, 32
        %v2389 = vpop.permute.xlu0 %2388
        %2390 = vrot.lane.b32.xlu0 %v2371, 32
        %v2391 = vpop.permute.xlu0 %2390
        %2392 = vrot.lane.b32.xlu0 %v2373, 32
        %v2393 = vpop.permute.xlu0 %2392
        %2394 = vrot.lane.b32.xlu0 %v2375, 32
        %v2395 = vpop.permute.xlu0 %2394
        %2396 = vrot.lane.b32.xlu0 %v2377, 32
        %v2397 = vpop.permute.xlu0 %2396
        %2398 = vrot.lane.b32.xlu0 %v2376, 32
        %v2399 = vpop.permute.xlu0 %2398
        %vm2411 = vcmask 392448
        %2412 = vst.msk [vmem:[#allocation4] sm:$0xff] %vm2411, %v2379
        %2413 = vst.msk [vmem:[#allocation4 + $0x20] sm:$0xff] %vm2411, %v2381
        %2414 = vst.msk [vmem:[#allocation4 + $0x40] sm:$0xff] %vm2411, %v2383
        %2415 = vst.msk [vmem:[#allocation4 + $0x60] sm:$0xff] %vm2411, %v2385
        %2416 = vst.msk [vmem:[#allocation4 + $0x80] sm:$0xff] %vm2411, %v2387
        %2417 = vst.msk [vmem:[#allocation4 + $0xa0] sm:$0xff] %vm2411, %v2389
        %2418 = vst.msk [vmem:[#allocation4 + $0xc0] sm:$0xff] %vm2411, %v2391
        %2419 = vst.msk [vmem:[#allocation4 + $0xe0] sm:$0xff] %vm2411, %v2393
        %2420 = vst.msk [vmem:[#allocation4 + $0x100] sm:$0xff] %vm2411, %v2395
        %2421 = vst.msk [vmem:[#allocation4 + $0x120] sm:$0xff] %vm2411, %v2397
        %vm2422 = vcmask 388352
        %2423 = vst.msk [vmem:[#allocation4 + $0x140] sm:$0xf] %vm2422, %v2399
        %vm2424 = vcmask 1044480
        %v2425 = vrot.slane %v2252, 3
        %v2426 = vrot.slane %v2253, 3
        %v2427 = vsel %vm2424, %v2425, %v2426
        %v2428 = vrot.slane %v2254, 3
        %v2429 = vsel %vm2424, %v2426, %v2428
        %v2430 = vrot.slane %v2255, 3
        %v2431 = vsel %vm2424, %v2428, %v2430
        %v2432 = vrot.slane %v2256, 3
        %v2433 = vsel %vm2424, %v2430, %v2432
        %v2434 = vrot.slane %v2257, 3
        %v2435 = vsel %vm2424, %v2432, %v2434
        %v2436 = vrot.slane %v2258, 3
        %v2437 = vsel %vm2424, %v2434, %v2436
        %v2438 = vrot.slane %v2259, 3
        %v2439 = vsel %vm2424, %v2436, %v2438
        %v2440 = vrot.slane %v2260, 3
        %v2441 = vsel %vm2424, %v2438, %v2440
        %v2442 = vrot.slane %v2261, 3
        %v2443 = vsel %vm2424, %v2440, %v2442
        %v2444 = vrot.slane %v2262, 3
        %v2445 = vsel %vm2424, %v2442, %v2444
        %2446 = vrot.lane.b32.xlu0 %v2427, 48
        %v2447 = vpop.permute.xlu0 %2446
        %2448 = vrot.lane.b32.xlu0 %v2429, 48
        %v2449 = vpop.permute.xlu0 %2448
        %2450 = vrot.lane.b32.xlu0 %v2431, 48
        %v2451 = vpop.permute.xlu0 %2450
        %2452 = vrot.lane.b32.xlu0 %v2433, 48
        %v2453 = vpop.permute.xlu0 %2452
        %2454 = vrot.lane.b32.xlu0 %v2435, 48
        %v2455 = vpop.permute.xlu0 %2454
        %2456 = vrot.lane.b32.xlu0 %v2437, 48
        %v2457 = vpop.permute.xlu0 %2456
        %2458 = vrot.lane.b32.xlu0 %v2439, 48
        %v2459 = vpop.permute.xlu0 %2458
        %2460 = vrot.lane.b32.xlu0 %v2441, 48
        %v2461 = vpop.permute.xlu0 %2460
        %2462 = vrot.lane.b32.xlu0 %v2443, 48
        %v2463 = vpop.permute.xlu0 %2462
        %2464 = vrot.lane.b32.xlu0 %v2445, 48
        %v2465 = vpop.permute.xlu0 %2464
        %2466 = vrot.lane.b32.xlu0 %v2444, 48
        %v2467 = vpop.permute.xlu0 %2466
        %vm2479 = vcmask 523648
        %2480 = vst.msk [vmem:[#allocation4] sm:$0xff] %vm2479, %v2447
        %2481 = vst.msk [vmem:[#allocation4 + $0x20] sm:$0xff] %vm2479, %v2449
        %2482 = vst.msk [vmem:[#allocation4 + $0x40] sm:$0xff] %vm2479, %v2451
        %2483 = vst.msk [vmem:[#allocation4 + $0x60] sm:$0xff] %vm2479, %v2453
        %2484 = vst.msk [vmem:[#allocation4 + $0x80] sm:$0xff] %vm2479, %v2455
        %2485 = vst.msk [vmem:[#allocation4 + $0xa0] sm:$0xff] %vm2479, %v2457
        %2486 = vst.msk [vmem:[#allocation4 + $0xc0] sm:$0xff] %vm2479, %v2459
        %2487 = vst.msk [vmem:[#allocation4 + $0xe0] sm:$0xff] %vm2479, %v2461
        %2488 = vst.msk [vmem:[#allocation4 + $0x100] sm:$0xff] %vm2479, %v2463
        %2489 = vst.msk [vmem:[#allocation4 + $0x120] sm:$0xff] %vm2479, %v2465
        %vm2490 = vcmask 519552
        %2491 = vst.msk [vmem:[#allocation4 + $0x140] sm:$0xf] %vm2490, %v2467
        %vm2492 = vcmask 1043456
        %v2493 = vrot.slane %v2252, 4
        %v2494 = vrot.slane %v2253, 4
        %v2495 = vsel %vm2492, %v2493, %v2494
        %v2496 = vrot.slane %v2254, 4
        %v2497 = vsel %vm2492, %v2494, %v2496
        %v2498 = vrot.slane %v2255, 4
        %v2499 = vsel %vm2492, %v2496, %v2498
        %v2500 = vrot.slane %v2256, 4
        %v2501 = vsel %vm2492, %v2498, %v2500
        %v2502 = vrot.slane %v2257, 4
        %v2503 = vsel %vm2492, %v2500, %v2502
        %v2504 = vrot.slane %v2258, 4
        %v2505 = vsel %vm2492, %v2502, %v2504
        %v2506 = vrot.slane %v2259, 4
        %v2507 = vsel %vm2492, %v2504, %v2506
        %v2508 = vrot.slane %v2260, 4
        %v2509 = vsel %vm2492, %v2506, %v2508
        %v2510 = vrot.slane %v2261, 4
        %v2511 = vsel %vm2492, %v2508, %v2510
        %v2512 = vrot.slane %v2262, 4
        %v2513 = vsel %vm2492, %v2510, %v2512
        %2514 = vrot.lane.b32.xlu0 %v2495, 64
        %v2515 = vpop.permute.xlu0 %2514
        %2516 = vrot.lane.b32.xlu0 %v2497, 64
        %v2517 = vpop.permute.xlu0 %2516
        %2518 = vrot.lane.b32.xlu0 %v2499, 64
        %v2519 = vpop.permute.xlu0 %2518
        %2520 = vrot.lane.b32.xlu0 %v2501, 64
        %v2521 = vpop.permute.xlu0 %2520
        %2522 = vrot.lane.b32.xlu0 %v2503, 64
        %v2523 = vpop.permute.xlu0 %2522
        %2524 = vrot.lane.b32.xlu0 %v2505, 64
        %v2525 = vpop.permute.xlu0 %2524
        %2526 = vrot.lane.b32.xlu0 %v2507, 64
        %v2527 = vpop.permute.xlu0 %2526
        %2528 = vrot.lane.b32.xlu0 %v2509, 64
        %v2529 = vpop.permute.xlu0 %2528
        %2530 = vrot.lane.b32.xlu0 %v2511, 64
        %v2531 = vpop.permute.xlu0 %2530
        %2532 = vrot.lane.b32.xlu0 %v2513, 64
        %v2533 = vpop.permute.xlu0 %2532
        %2534 = vrot.lane.b32.xlu0 %v2512, 64
        %v2535 = vpop.permute.xlu0 %2534
        %vm2547 = vcmask 654848
        %2548 = vst.msk [vmem:[#allocation4] sm:$0xff] %vm2547, %v2515
        %2549 = vst.msk [vmem:[#allocation4 + $0x20] sm:$0xff] %vm2547, %v2517
        %2550 = vst.msk [vmem:[#allocation4 + $0x40] sm:$0xff] %vm2547, %v2519
        %2551 = vst.msk [vmem:[#allocation4 + $0x60] sm:$0xff] %vm2547, %v2521
        %2552 = vst.msk [vmem:[#allocation4 + $0x80] sm:$0xff] %vm2547, %v2523
        %2553 = vst.msk [vmem:[#allocation4 + $0xa0] sm:$0xff] %vm2547, %v2525
        %2554 = vst.msk [vmem:[#allocation4 + $0xc0] sm:$0xff] %vm2547, %v2527
        %2555 = vst.msk [vmem:[#allocation4 + $0xe0] sm:$0xff] %vm2547, %v2529
        %2556 = vst.msk [vmem:[#allocation4 + $0x100] sm:$0xff] %vm2547, %v2531
        %2557 = vst.msk [vmem:[#allocation4 + $0x120] sm:$0xff] %vm2547, %v2533
        %vm2558 = vcmask 650752
        %2559 = vst.msk [vmem:[#allocation4 + $0x140] sm:$0xf] %vm2558, %v2535
        %2561 = vrot.lane.b32.xlu0 %v2253, 80
        %v2562 = vpop.permute.xlu0 %2561
        %2563 = vrot.lane.b32.xlu0 %v2254, 80
        %v2564 = vpop.permute.xlu0 %2563
        %2565 = vrot.lane.b32.xlu0 %v2255, 80
        %v2566 = vpop.permute.xlu0 %2565
        %2567 = vrot.lane.b32.xlu0 %v2256, 80
        %v2568 = vpop.permute.xlu0 %2567
        %2569 = vrot.lane.b32.xlu0 %v2257, 80
        %v2570 = vpop.permute.xlu0 %2569
        %2571 = vrot.lane.b32.xlu0 %v2258, 80
        %v2572 = vpop.permute.xlu0 %2571
        %2573 = vrot.lane.b32.xlu0 %v2259, 80
        %v2574 = vpop.permute.xlu0 %2573
        %2575 = vrot.lane.b32.xlu0 %v2260, 80
        %v2576 = vpop.permute.xlu0 %2575
        %2577 = vrot.lane.b32.xlu0 %v2261, 80
        %v2578 = vpop.permute.xlu0 %2577
        %2579 = vrot.lane.b32.xlu0 %v2262, 80
        %v2580 = vpop.permute.xlu0 %2579
        %2581 = vrot.lane.b32.xlu0 %v2263, 80
        %v2582 = vpop.permute.xlu0 %2581
        %vm2594 = vcmask 786048
        %2595 = vst.msk [vmem:[#allocation4] sm:$0xff] %vm2594, %v2562
        %2596 = vst.msk [vmem:[#allocation4 + $0x20] sm:$0xff] %vm2594, %v2564
        %2597 = vst.msk [vmem:[#allocation4 + $0x40] sm:$0xff] %vm2594, %v2566
        %2598 = vst.msk [vmem:[#allocation4 + $0x60] sm:$0xff] %vm2594, %v2568
        %2599 = vst.msk [vmem:[#allocation4 + $0x80] sm:$0xff] %vm2594, %v2570
        %2600 = vst.msk [vmem:[#allocation4 + $0xa0] sm:$0xff] %vm2594, %v2572
        %2601 = vst.msk [vmem:[#allocation4 + $0xc0] sm:$0xff] %vm2594, %v2574
        %2602 = vst.msk [vmem:[#allocation4 + $0xe0] sm:$0xff] %vm2594, %v2576
        %2603 = vst.msk [vmem:[#allocation4 + $0x100] sm:$0xff] %vm2594, %v2578
        %2604 = vst.msk [vmem:[#allocation4 + $0x120] sm:$0xff] %vm2594, %v2580
        %vm2605 = vcmask 781952
        %2606 = vst.msk [vmem:[#allocation4 + $0x140] sm:$0xf] %vm2605, %v2582
        %v2607 = vrot.slane %v2263, 1
        %v2608 = vsel %vm1279, %v2309, %v2607
        %2609 = vrot.lane.b32.xlu0 %v2294, 96
        %v2610 = vpop.permute.xlu0 %2609
        %2611 = vrot.lane.b32.xlu0 %v2296, 96
        %v2612 = vpop.permute.xlu0 %2611
        %2613 = vrot.lane.b32.xlu0 %v2298, 96
        %v2614 = vpop.permute.xlu0 %2613
        %2615 = vrot.lane.b32.xlu0 %v2300, 96
        %v2616 = vpop.permute.xlu0 %2615
        %2617 = vrot.lane.b32.xlu0 %v2302, 96
        %v2618 = vpop.permute.xlu0 %2617
        %2619 = vrot.lane.b32.xlu0 %v2304, 96
        %v2620 = vpop.permute.xlu0 %2619
        %2621 = vrot.lane.b32.xlu0 %v2306, 96
        %v2622 = vpop.permute.xlu0 %2621
        %2623 = vrot.lane.b32.xlu0 %v2308, 96
        %v2624 = vpop.permute.xlu0 %2623
        %2625 = vrot.lane.b32.xlu0 %v2310, 96
        %v2626 = vpop.permute.xlu0 %2625
        %2627 = vrot.lane.b32.xlu0 %v2608, 96
        %v2628 = vpop.permute.xlu0 %2627
        %2629 = vrot.lane.b32.xlu0 %v2607, 96
        %v2630 = vpop.permute.xlu0 %2629
        %vm2642 = vcmask 917248
        %2643 = vst.msk [vmem:[#allocation4] sm:$0xff] %vm2642, %v2610
        %2644 = vst.msk [vmem:[#allocation4 + $0x20] sm:$0xff] %vm2642, %v2612
        %2645 = vst.msk [vmem:[#allocation4 + $0x40] sm:$0xff] %vm2642, %v2614
        %2646 = vst.msk [vmem:[#allocation4 + $0x60] sm:$0xff] %vm2642, %v2616
        %2647 = vst.msk [vmem:[#allocation4 + $0x80] sm:$0xff] %vm2642, %v2618
        %2648 = vst.msk [vmem:[#allocation4 + $0xa0] sm:$0xff] %vm2642, %v2620
        %2649 = vst.msk [vmem:[#allocation4 + $0xc0] sm:$0xff] %vm2642, %v2622
        %2650 = vst.msk [vmem:[#allocation4 + $0xe0] sm:$0xff] %vm2642, %v2624
        %2651 = vst.msk [vmem:[#allocation4 + $0x100] sm:$0xff] %vm2642, %v2626
        %2652 = vst.msk [vmem:[#allocation4 + $0x120] sm:$0xff] %vm2642, %v2628
        %vm2653 = vcmask 913152
        %2654 = vst.msk [vmem:[#allocation4 + $0x140] sm:$0xf] %vm2653, %v2630
        %v2655 = vrot.slane %v2263, 2
        %v2656 = vsel %vm1372, %v2376, %v2655
        %2657 = vrot.lane.b32.xlu0 %v2361, 112
        %v2658 = vpop.permute.xlu0 %2657
        %2659 = vrot.lane.b32.xlu0 %v2363, 112
        %v2660 = vpop.permute.xlu0 %2659
        %2661 = vrot.lane.b32.xlu0 %v2365, 112
        %v2662 = vpop.permute.xlu0 %2661
        %2663 = vrot.lane.b32.xlu0 %v2367, 112
        %v2664 = vpop.permute.xlu0 %2663
        %2665 = vrot.lane.b32.xlu0 %v2369, 112
        %v2666 = vpop.permute.xlu0 %2665
        %2667 = vrot.lane.b32.xlu0 %v2371, 112
        %v2668 = vpop.permute.xlu0 %2667
        %2669 = vrot.lane.b32.xlu0 %v2373, 112
        %v2670 = vpop.permute.xlu0 %2669
        %2671 = vrot.lane.b32.xlu0 %v2375, 112
        %v2672 = vpop.permute.xlu0 %2671
        %2673 = vrot.lane.b32.xlu0 %v2377, 112
        %v2674 = vpop.permute.xlu0 %2673
        %2675 = vrot.lane.b32.xlu0 %v2656, 112
        %v2676 = vpop.permute.xlu0 %2675
        %2677 = vrot.lane.b32.xlu0 %v2655, 112
        %v2678 = vpop.permute.xlu0 %2677
        %vm2690 = vcmask 1048448
        %2691 = vst.msk [vmem:[#allocation4] sm:$0xff] %vm2690, %v2658
        %2692 = vst.msk [vmem:[#allocation4 + $0x20] sm:$0xff] %vm2690, %v2660
        %2693 = vst.msk [vmem:[#allocation4 + $0x40] sm:$0xff] %vm2690, %v2662
        %2694 = vst.msk [vmem:[#allocation4 + $0x60] sm:$0xff] %vm2690, %v2664
        %2695 = vst.msk [vmem:[#allocation4 + $0x80] sm:$0xff] %vm2690, %v2666
        %2696 = vst.msk [vmem:[#allocation4 + $0xa0] sm:$0xff] %vm2690, %v2668
        %2697 = vst.msk [vmem:[#allocation4 + $0xc0] sm:$0xff] %vm2690, %v2670
        %2698 = vst.msk [vmem:[#allocation4 + $0xe0] sm:$0xff] %vm2690, %v2672
        %2699 = vst.msk [vmem:[#allocation4 + $0x100] sm:$0xff] %vm2690, %v2674
        %2700 = vst.msk [vmem:[#allocation4 + $0x120] sm:$0xff] %vm2690, %v2676
        %vm2701 = vcmask 1044352
        %2702 = vst.msk [vmem:[#allocation4 + $0x140] sm:$0xf] %vm2701, %v2678
        %v2703 = vrot.slane %v2263, 3
        %v2704 = vsel %vm2424, %v2444, %v2703
        %2716 = vst.msk [vmem:[#allocation4 + $0x8] sm:$0xff] %vm625, %v2429
        %2717 = vst.msk [vmem:[#allocation4 + $0x28] sm:$0xff] %vm625, %v2431
        %2718 = vst.msk [vmem:[#allocation4 + $0x48] sm:$0xff] %vm625, %v2433
        %2719 = vst.msk [vmem:[#allocation4 + $0x68] sm:$0xff] %vm625, %v2435
        %2720 = vst.msk [vmem:[#allocation4 + $0x88] sm:$0xff] %vm625, %v2437
        %2721 = vst.msk [vmem:[#allocation4 + $0xa8] sm:$0xff] %vm625, %v2439
        %2722 = vst.msk [vmem:[#allocation4 + $0xc8] sm:$0xff] %vm625, %v2441
        %2723 = vst.msk [vmem:[#allocation4 + $0xe8] sm:$0xff] %vm625, %v2443
        %2724 = vst.msk [vmem:[#allocation4 + $0x108] sm:$0xff] %vm625, %v2445
        %2725 = vst.msk [vmem:[#allocation4 + $0x128] sm:$0xff] %vm625, %v2704
        %2726 = vst.msk [vmem:[#allocation4 + $0x148] sm:$0xf] %vm2277, %v2703
        %v2727 = vrot.slane %v2263, 4
        %v2728 = vsel %vm2492, %v2512, %v2727
        %2729 = vrot.lane.b32.xlu0 %v2497, 16
        %v2730 = vpop.permute.xlu0 %2729
        %2731 = vrot.lane.b32.xlu0 %v2499, 16
        %v2732 = vpop.permute.xlu0 %2731
        %2733 = vrot.lane.b32.xlu0 %v2501, 16
        %v2734 = vpop.permute.xlu0 %2733
        %2735 = vrot.lane.b32.xlu0 %v2503, 16
        %v2736 = vpop.permute.xlu0 %2735
        %2737 = vrot.lane.b32.xlu0 %v2505, 16
        %v2738 = vpop.permute.xlu0 %2737
        %2739 = vrot.lane.b32.xlu0 %v2507, 16
        %v2740 = vpop.permute.xlu0 %2739
        %2741 = vrot.lane.b32.xlu0 %v2509, 16
        %v2742 = vpop.permute.xlu0 %2741
        %2743 = vrot.lane.b32.xlu0 %v2511, 16
        %v2744 = vpop.permute.xlu0 %2743
        %2745 = vrot.lane.b32.xlu0 %v2513, 16
        %v2746 = vpop.permute.xlu0 %2745
        %2747 = vrot.lane.b32.xlu0 %v2728, 16
        %v2748 = vpop.permute.xlu0 %2747
        %2749 = vrot.lane.b32.xlu0 %v2727, 16
        %v2750 = vpop.permute.xlu0 %2749
        %2762 = vst.msk [vmem:[#allocation4 + $0x8] sm:$0xff] %vm2344, %v2730
        %2763 = vst.msk [vmem:[#allocation4 + $0x28] sm:$0xff] %vm2344, %v2732
        %2764 = vst.msk [vmem:[#allocation4 + $0x48] sm:$0xff] %vm2344, %v2734
        %2765 = vst.msk [vmem:[#allocation4 + $0x68] sm:$0xff] %vm2344, %v2736
        %2766 = vst.msk [vmem:[#allocation4 + $0x88] sm:$0xff] %vm2344, %v2738
        %2767 = vst.msk [vmem:[#allocation4 + $0xa8] sm:$0xff] %vm2344, %v2740
        %2768 = vst.msk [vmem:[#allocation4 + $0xc8] sm:$0xff] %vm2344, %v2742
        %2769 = vst.msk [vmem:[#allocation4 + $0xe8] sm:$0xff] %vm2344, %v2744
        %2770 = vst.msk [vmem:[#allocation4 + $0x108] sm:$0xff] %vm2344, %v2746
        %2771 = vst.msk [vmem:[#allocation4 + $0x128] sm:$0xff] %vm2344, %v2748
        %2772 = vst.msk [vmem:[#allocation4 + $0x148] sm:$0xf] %vm2355, %v2750
        %2774 = vrot.lane.b32.xlu0 %v2254, 32
        %v2775 = vpop.permute.xlu0 %2774
        %2776 = vrot.lane.b32.xlu0 %v2255, 32
        %v2777 = vpop.permute.xlu0 %2776
        %2778 = vrot.lane.b32.xlu0 %v2256, 32
        %v2779 = vpop.permute.xlu0 %2778
        %2780 = vrot.lane.b32.xlu0 %v2257, 32
        %v2781 = vpop.permute.xlu0 %2780
        %2782 = vrot.lane.b32.xlu0 %v2258, 32
        %v2783 = vpop.permute.xlu0 %2782
        %2784 = vrot.lane.b32.xlu0 %v2259, 32
        %v2785 = vpop.permute.xlu0 %2784
        %2786 = vrot.lane.b32.xlu0 %v2260, 32
        %v2787 = vpop.permute.xlu0 %2786
        %2788 = vrot.lane.b32.xlu0 %v2261, 32
        %v2789 = vpop.permute.xlu0 %2788
        %2790 = vrot.lane.b32.xlu0 %v2262, 32
        %v2791 = vpop.permute.xlu0 %2790
        %2792 = vrot.lane.b32.xlu0 %v2263, 32
        %v2793 = vpop.permute.xlu0 %2792
        %2794 = vrot.lane.b32.xlu0 %v2264, 32
        %v2795 = vpop.permute.xlu0 %2794
        %2807 = vst.msk [vmem:[#allocation4 + $0x8] sm:$0xff] %vm2411, %v2775
        %2808 = vst.msk [vmem:[#allocation4 + $0x28] sm:$0xff] %vm2411, %v2777
        %2809 = vst.msk [vmem:[#allocation4 + $0x48] sm:$0xff] %vm2411, %v2779
        %2810 = vst.msk [vmem:[#allocation4 + $0x68] sm:$0xff] %vm2411, %v2781
        %2811 = vst.msk [vmem:[#allocation4 + $0x88] sm:$0xff] %vm2411, %v2783
        %2812 = vst.msk [vmem:[#allocation4 + $0xa8] sm:$0xff] %vm2411, %v2785
        %2813 = vst.msk [vmem:[#allocation4 + $0xc8] sm:$0xff] %vm2411, %v2787
        %2814 = vst.msk [vmem:[#allocation4 + $0xe8] sm:$0xff] %vm2411, %v2789
        %2815 = vst.msk [vmem:[#allocation4 + $0x108] sm:$0xff] %vm2411, %v2791
        %2816 = vst.msk [vmem:[#allocation4 + $0x128] sm:$0xff] %vm2411, %v2793
        %2817 = vst.msk [vmem:[#allocation4 + $0x148] sm:$0xf] %vm2422, %v2795
        %v2818 = vrot.slane %v2264, 1
        %v2819 = vsel %vm1279, %v2607, %v2818
        %2820 = vrot.lane.b32.xlu0 %v2296, 48
        %v2821 = vpop.permute.xlu0 %2820
        %2822 = vrot.lane.b32.xlu0 %v2298, 48
        %v2823 = vpop.permute.xlu0 %2822
        %2824 = vrot.lane.b32.xlu0 %v2300, 48
        %v2825 = vpop.permute.xlu0 %2824
        %2826 = vrot.lane.b32.xlu0 %v2302, 48
        %v2827 = vpop.permute.xlu0 %2826
        %2828 = vrot.lane.b32.xlu0 %v2304, 48
        %v2829 = vpop.permute.xlu0 %2828
        %2830 = vrot.lane.b32.xlu0 %v2306, 48
        %v2831 = vpop.permute.xlu0 %2830
        %2832 = vrot.lane.b32.xlu0 %v2308, 48
        %v2833 = vpop.permute.xlu0 %2832
        %2834 = vrot.lane.b32.xlu0 %v2310, 48
        %v2835 = vpop.permute.xlu0 %2834
        %2836 = vrot.lane.b32.xlu0 %v2608, 48
        %v2837 = vpop.permute.xlu0 %2836
        %2838 = vrot.lane.b32.xlu0 %v2819, 48
        %v2839 = vpop.permute.xlu0 %2838
        %2840 = vrot.lane.b32.xlu0 %v2818, 48
        %v2841 = vpop.permute.xlu0 %2840
        %2853 = vst.msk [vmem:[#allocation4 + $0x8] sm:$0xff] %vm2479, %v2821
        %2854 = vst.msk [vmem:[#allocation4 + $0x28] sm:$0xff] %vm2479, %v2823
        %2855 = vst.msk [vmem:[#allocation4 + $0x48] sm:$0xff] %vm2479, %v2825
        %2856 = vst.msk [vmem:[#allocation4 + $0x68] sm:$0xff] %vm2479, %v2827
        %2857 = vst.msk [vmem:[#allocation4 + $0x88] sm:$0xff] %vm2479, %v2829
        %2858 = vst.msk [vmem:[#allocation4 + $0xa8] sm:$0xff] %vm2479, %v2831
        %2859 = vst.msk [vmem:[#allocation4 + $0xc8] sm:$0xff] %vm2479, %v2833
        %2860 = vst.msk [vmem:[#allocation4 + $0xe8] sm:$0xff] %vm2479, %v2835
        %2861 = vst.msk [vmem:[#allocation4 + $0x108] sm:$0xff] %vm2479, %v2837
        %2862 = vst.msk [vmem:[#allocation4 + $0x128] sm:$0xff] %vm2479, %v2839
        %2863 = vst.msk [vmem:[#allocation4 + $0x148] sm:$0xf] %vm2490, %v2841
        %v2864 = vrot.slane %v2264, 2
        %v2865 = vsel %vm1372, %v2655, %v2864
        %2866 = vrot.lane.b32.xlu0 %v2363, 64
        %v2867 = vpop.permute.xlu0 %2866
        %2868 = vrot.lane.b32.xlu0 %v2365, 64
        %v2869 = vpop.permute.xlu0 %2868
        %2870 = vrot.lane.b32.xlu0 %v2367, 64
        %v2871 = vpop.permute.xlu0 %2870
        %2872 = vrot.lane.b32.xlu0 %v2369, 64
        %v2873 = vpop.permute.xlu0 %2872
        %2874 = vrot.lane.b32.xlu0 %v2371, 64
        %v2875 = vpop.permute.xlu0 %2874
        %2876 = vrot.lane.b32.xlu0 %v2373, 64
        %v2877 = vpop.permute.xlu0 %2876
        %2878 = vrot.lane.b32.xlu0 %v2375, 64
        %v2879 = vpop.permute.xlu0 %2878
        %2880 = vrot.lane.b32.xlu0 %v2377, 64
        %v2881 = vpop.permute.xlu0 %2880
        %2882 = vrot.lane.b32.xlu0 %v2656, 64
        %v2883 = vpop.permute.xlu0 %2882
        %2884 = vrot.lane.b32.xlu0 %v2865, 64
        %v2885 = vpop.permute.xlu0 %2884
        %2886 = vrot.lane.b32.xlu0 %v2864, 64
        %v2887 = vpop.permute.xlu0 %2886
        %2899 = vst.msk [vmem:[#allocation4 + $0x8] sm:$0xff] %vm2547, %v2867
        %2900 = vst.msk [vmem:[#allocation4 + $0x28] sm:$0xff] %vm2547, %v2869
        %2901 = vst.msk [vmem:[#allocation4 + $0x48] sm:$0xff] %vm2547, %v2871
        %2902 = vst.msk [vmem:[#allocation4 + $0x68] sm:$0xff] %vm2547, %v2873
        %2903 = vst.msk [vmem:[#allocation4 + $0x88] sm:$0xff] %vm2547, %v2875
        %2904 = vst.msk [vmem:[#allocation4 + $0xa8] sm:$0xff] %vm2547, %v2877
        %2905 = vst.msk [vmem:[#allocation4 + $0xc8] sm:$0xff] %vm2547, %v2879
        %2906 = vst.msk [vmem:[#allocation4 + $0xe8] sm:$0xff] %vm2547, %v2881
        %2907 = vst.msk [vmem:[#allocation4 + $0x108] sm:$0xff] %vm2547, %v2883
        %2908 = vst.msk [vmem:[#allocation4 + $0x128] sm:$0xff] %vm2547, %v2885
        %2909 = vst.msk [vmem:[#allocation4 + $0x148] sm:$0xf] %vm2558, %v2887
        %v2910 = vrot.slane %v2264, 3
        %v2911 = vsel %vm2424, %v2703, %v2910
        %2912 = vrot.lane.b32.xlu0 %v2431, 80
        %v2913 = vpop.permute.xlu0 %2912
        %2914 = vrot.lane.b32.xlu0 %v2433, 80
        %v2915 = vpop.permute.xlu0 %2914
        %2916 = vrot.lane.b32.xlu0 %v2435, 80
        %v2917 = vpop.permute.xlu0 %2916
        %2918 = vrot.lane.b32.xlu0 %v2437, 80
        %v2919 = vpop.permute.xlu0 %2918
        %2920 = vrot.lane.b32.xlu0 %v2439, 80
        %v2921 = vpop.permute.xlu0 %2920
        %2922 = vrot.lane.b32.xlu0 %v2441, 80
        %v2923 = vpop.permute.xlu0 %2922
        %2924 = vrot.lane.b32.xlu0 %v2443, 80
        %v2925 = vpop.permute.xlu0 %2924
        %2926 = vrot.lane.b32.xlu0 %v2445, 80
        %v2927 = vpop.permute.xlu0 %2926
        %2928 = vrot.lane.b32.xlu0 %v2704, 80
        %v2929 = vpop.permute.xlu0 %2928
        %2930 = vrot.lane.b32.xlu0 %v2911, 80
        %v2931 = vpop.permute.xlu0 %2930
        %2932 = vrot.lane.b32.xlu0 %v2910, 80
        %v2933 = vpop.permute.xlu0 %2932
        %2945 = vst.msk [vmem:[#allocation4 + $0x8] sm:$0xff] %vm2594, %v2913
        %2946 = vst.msk [vmem:[#allocation4 + $0x28] sm:$0xff] %vm2594, %v2915
        %2947 = vst.msk [vmem:[#allocation4 + $0x48] sm:$0xff] %vm2594, %v2917
        %2948 = vst.msk [vmem:[#allocation4 + $0x68] sm:$0xff] %vm2594, %v2919
        %2949 = vst.msk [vmem:[#allocation4 + $0x88] sm:$0xff] %vm2594, %v2921
        %2950 = vst.msk [vmem:[#allocation4 + $0xa8] sm:$0xff] %vm2594, %v2923
        %2951 = vst.msk [vmem:[#allocation4 + $0xc8] sm:$0xff] %vm2594, %v2925
        %2952 = vst.msk [vmem:[#allocation4 + $0xe8] sm:$0xff] %vm2594, %v2927
        %2953 = vst.msk [vmem:[#allocation4 + $0x108] sm:$0xff] %vm2594, %v2929
        %2954 = vst.msk [vmem:[#allocation4 + $0x128] sm:$0xff] %vm2594, %v2931
        %2955 = vst.msk [vmem:[#allocation4 + $0x148] sm:$0xf] %vm2605, %v2933
        %v2956 = vrot.slane %v2264, 4
        %v2957 = vsel %vm2492, %v2727, %v2956
        %2958 = vrot.lane.b32.xlu0 %v2499, 96
        %v2959 = vpop.permute.xlu0 %2958
        %2960 = vrot.lane.b32.xlu0 %v2501, 96
        %v2961 = vpop.permute.xlu0 %2960
        %2962 = vrot.lane.b32.xlu0 %v2503, 96
        %v2963 = vpop.permute.xlu0 %2962
        %2964 = vrot.lane.b32.xlu0 %v2505, 96
        %v2965 = vpop.permute.xlu0 %2964
        %2966 = vrot.lane.b32.xlu0 %v2507, 96
        %v2967 = vpop.permute.xlu0 %2966
        %2968 = vrot.lane.b32.xlu0 %v2509, 96
        %v2969 = vpop.permute.xlu0 %2968
        %2970 = vrot.lane.b32.xlu0 %v2511, 96
        %v2971 = vpop.permute.xlu0 %2970
        %2972 = vrot.lane.b32.xlu0 %v2513, 96
        %v2973 = vpop.permute.xlu0 %2972
        %2974 = vrot.lane.b32.xlu0 %v2728, 96
        %v2975 = vpop.permute.xlu0 %2974
        %2976 = vrot.lane.b32.xlu0 %v2957, 96
        %v2977 = vpop.permute.xlu0 %2976
        %2978 = vrot.lane.b32.xlu0 %v2956, 96
        %v2979 = vpop.permute.xlu0 %2978
        %2991 = vst.msk [vmem:[#allocation4 + $0x8] sm:$0xff] %vm2642, %v2959
        %2992 = vst.msk [vmem:[#allocation4 + $0x28] sm:$0xff] %vm2642, %v2961
        %2993 = vst.msk [vmem:[#allocation4 + $0x48] sm:$0xff] %vm2642, %v2963
        %2994 = vst.msk [vmem:[#allocation4 + $0x68] sm:$0xff] %vm2642, %v2965
        %2995 = vst.msk [vmem:[#allocation4 + $0x88] sm:$0xff] %vm2642, %v2967
        %2996 = vst.msk [vmem:[#allocation4 + $0xa8] sm:$0xff] %vm2642, %v2969
        %2997 = vst.msk [vmem:[#allocation4 + $0xc8] sm:$0xff] %vm2642, %v2971
        %2998 = vst.msk [vmem:[#allocation4 + $0xe8] sm:$0xff] %vm2642, %v2973
        %2999 = vst.msk [vmem:[#allocation4 + $0x108] sm:$0xff] %vm2642, %v2975
        %3000 = vst.msk [vmem:[#allocation4 + $0x128] sm:$0xff] %vm2642, %v2977
        %3001 = vst.msk [vmem:[#allocation4 + $0x148] sm:$0xf] %vm2653, %v2979
        %3003 = vrot.lane.b32.xlu0 %v2255, 112
        %v3004 = vpop.permute.xlu0 %3003
        %3005 = vrot.lane.b32.xlu0 %v2256, 112
        %v3006 = vpop.permute.xlu0 %3005
        %3007 = vrot.lane.b32.xlu0 %v2257, 112
        %v3008 = vpop.permute.xlu0 %3007
        %3009 = vrot.lane.b32.xlu0 %v2258, 112
        %v3010 = vpop.permute.xlu0 %3009
        %3011 = vrot.lane.b32.xlu0 %v2259, 112
        %v3012 = vpop.permute.xlu0 %3011
        %3013 = vrot.lane.b32.xlu0 %v2260, 112
        %v3014 = vpop.permute.xlu0 %3013
        %3015 = vrot.lane.b32.xlu0 %v2261, 112
        %v3016 = vpop.permute.xlu0 %3015
        %3017 = vrot.lane.b32.xlu0 %v2262, 112
        %v3018 = vpop.permute.xlu0 %3017
        %3019 = vrot.lane.b32.xlu0 %v2263, 112
        %v3020 = vpop.permute.xlu0 %3019
        %3021 = vrot.lane.b32.xlu0 %v2264, 112
        %v3022 = vpop.permute.xlu0 %3021
        %3023 = vrot.lane.b32.xlu0 %v2265, 112
        %v3024 = vpop.permute.xlu0 %3023
        %3036 = vst.msk [vmem:[#allocation4 + $0x8] sm:$0xff] %vm2690, %v3004
        %3037 = vst.msk [vmem:[#allocation4 + $0x28] sm:$0xff] %vm2690, %v3006
        %3038 = vst.msk [vmem:[#allocation4 + $0x48] sm:$0xff] %vm2690, %v3008
        %3039 = vst.msk [vmem:[#allocation4 + $0x68] sm:$0xff] %vm2690, %v3010
        %3040 = vst.msk [vmem:[#allocation4 + $0x88] sm:$0xff] %vm2690, %v3012
        %3041 = vst.msk [vmem:[#allocation4 + $0xa8] sm:$0xff] %vm2690, %v3014
        %3042 = vst.msk [vmem:[#allocation4 + $0xc8] sm:$0xff] %vm2690, %v3016
        %3043 = vst.msk [vmem:[#allocation4 + $0xe8] sm:$0xff] %vm2690, %v3018
        %3044 = vst.msk [vmem:[#allocation4 + $0x108] sm:$0xff] %vm2690, %v3020
        %3045 = vst.msk [vmem:[#allocation4 + $0x128] sm:$0xff] %vm2690, %v3022
        %3046 = vst.msk [vmem:[#allocation4 + $0x148] sm:$0xf] %vm2701, %v3024
        %v3047 = vrot.slane %v2265, 1
        %v3048 = vsel %vm1279, %v2818, %v3047
        %3060 = vst.msk [vmem:[#allocation4 + $0x10] sm:$0xff] %vm625, %v2298
        %3061 = vst.msk [vmem:[#allocation4 + $0x30] sm:$0xff] %vm625, %v2300
        %3062 = vst.msk [vmem:[#allocation4 + $0x50] sm:$0xff] %vm625, %v2302
        %3063 = vst.msk [vmem:[#allocation4 + $0x70] sm:$0xff] %vm625, %v2304
        %3064 = vst.msk [vmem:[#allocation4 + $0x90] sm:$0xff] %vm625, %v2306
        %3065 = vst.msk [vmem:[#allocation4 + $0xb0] sm:$0xff] %vm625, %v2308
        %3066 = vst.msk [vmem:[#allocation4 + $0xd0] sm:$0xff] %vm625, %v2310
        %3067 = vst.msk [vmem:[#allocation4 + $0xf0] sm:$0xff] %vm625, %v2608
        %3068 = vst.msk [vmem:[#allocation4 + $0x110] sm:$0xff] %vm625, %v2819
        %3069 = vst.msk [vmem:[#allocation4 + $0x130] sm:$0xff] %vm625, %v3048
        %3070 = vst.msk [vmem:[#allocation4 + $0x150] sm:$0xf] %vm2277, %v3047
        %v3071 = vrot.slane %v2265, 2
        %v3072 = vsel %vm1372, %v2864, %v3071
        %3073 = vrot.lane.b32.xlu0 %v2365, 16
        %v3074 = vpop.permute.xlu0 %3073
        %3075 = vrot.lane.b32.xlu0 %v2367, 16
        %v3076 = vpop.permute.xlu0 %3075
        %3077 = vrot.lane.b32.xlu0 %v2369, 16
        %v3078 = vpop.permute.xlu0 %3077
        %3079 = vrot.lane.b32.xlu0 %v2371, 16
        %v3080 = vpop.permute.xlu0 %3079
        %3081 = vrot.lane.b32.xlu0 %v2373, 16
        %v3082 = vpop.permute.xlu0 %3081
        %3083 = vrot.lane.b32.xlu0 %v2375, 16
        %v3084 = vpop.permute.xlu0 %3083
        %3085 = vrot.lane.b32.xlu0 %v2377, 16
        %v3086 = vpop.permute.xlu0 %3085
        %3087 = vrot.lane.b32.xlu0 %v2656, 16
        %v3088 = vpop.permute.xlu0 %3087
        %3089 = vrot.lane.b32.xlu0 %v2865, 16
        %v3090 = vpop.permute.xlu0 %3089
        %3091 = vrot.lane.b32.xlu0 %v3072, 16
        %v3092 = vpop.permute.xlu0 %3091
        %3093 = vrot.lane.b32.xlu0 %v3071, 16
        %v3094 = vpop.permute.xlu0 %3093
        %3106 = vst.msk [vmem:[#allocation4 + $0x10] sm:$0xff] %vm2344, %v3074
        %3107 = vst.msk [vmem:[#allocation4 + $0x30] sm:$0xff] %vm2344, %v3076
        %3108 = vst.msk [vmem:[#allocation4 + $0x50] sm:$0xff] %vm2344, %v3078
        %3109 = vst.msk [vmem:[#allocation4 + $0x70] sm:$0xff] %vm2344, %v3080
        %3110 = vst.msk [vmem:[#allocation4 + $0x90] sm:$0xff] %vm2344, %v3082
        %3111 = vst.msk [vmem:[#allocation4 + $0xb0] sm:$0xff] %vm2344, %v3084
        %3112 = vst.msk [vmem:[#allocation4 + $0xd0] sm:$0xff] %vm2344, %v3086
        %3113 = vst.msk [vmem:[#allocation4 + $0xf0] sm:$0xff] %vm2344, %v3088
        %3114 = vst.msk [vmem:[#allocation4 + $0x110] sm:$0xff] %vm2344, %v3090
        %3115 = vst.msk [vmem:[#allocation4 + $0x130] sm:$0xff] %vm2344, %v3092
        %3116 = vst.msk [vmem:[#allocation4 + $0x150] sm:$0xf] %vm2355, %v3094
        %v3117 = vrot.slane %v2265, 3
        %v3118 = vsel %vm2424, %v2910, %v3117
        %3119 = vrot.lane.b32.xlu0 %v2433, 32
        %v3120 = vpop.permute.xlu0 %3119
        %3121 = vrot.lane.b32.xlu0 %v2435, 32
        %v3122 = vpop.permute.xlu0 %3121
        %3123 = vrot.lane.b32.xlu0 %v2437, 32
        %v3124 = vpop.permute.xlu0 %3123
        %3125 = vrot.lane.b32.xlu0 %v2439, 32
        %v3126 = vpop.permute.xlu0 %3125
        %3127 = vrot.lane.b32.xlu0 %v2441, 32
        %v3128 = vpop.permute.xlu0 %3127
        %3129 = vrot.lane.b32.xlu0 %v2443, 32
        %v3130 = vpop.permute.xlu0 %3129
        %3131 = vrot.lane.b32.xlu0 %v2445, 32
        %v3132 = vpop.permute.xlu0 %3131
        %3133 = vrot.lane.b32.xlu0 %v2704, 32
        %v3134 = vpop.permute.xlu0 %3133
        %3135 = vrot.lane.b32.xlu0 %v2911, 32
        %v3136 = vpop.permute.xlu0 %3135
        %3137 = vrot.lane.b32.xlu0 %v3118, 32
        %v3138 = vpop.permute.xlu0 %3137
        %3139 = vrot.lane.b32.xlu0 %v3117, 32
        %v3140 = vpop.permute.xlu0 %3139
        %3152 = vst.msk [vmem:[#allocation4 + $0x10] sm:$0xff] %vm2411, %v3120
        %3153 = vst.msk [vmem:[#allocation4 + $0x30] sm:$0xff] %vm2411, %v3122
        %3154 = vst.msk [vmem:[#allocation4 + $0x50] sm:$0xff] %vm2411, %v3124
        %3155 = vst.msk [vmem:[#allocation4 + $0x70] sm:$0xff] %vm2411, %v3126
        %3156 = vst.msk [vmem:[#allocation4 + $0x90] sm:$0xff] %vm2411, %v3128
        %3157 = vst.msk [vmem:[#allocation4 + $0xb0] sm:$0xff] %vm2411, %v3130
        %3158 = vst.msk [vmem:[#allocation4 + $0xd0] sm:$0xff] %vm2411, %v3132
        %3159 = vst.msk [vmem:[#allocation4 + $0xf0] sm:$0xff] %vm2411, %v3134
        %3160 = vst.msk [vmem:[#allocation4 + $0x110] sm:$0xff] %vm2411, %v3136
        %3161 = vst.msk [vmem:[#allocation4 + $0x130] sm:$0xff] %vm2411, %v3138
        %3162 = vst.msk [vmem:[#allocation4 + $0x150] sm:$0xf] %vm2422, %v3140
        %v3163 = vrot.slane %v2265, 4
        %v3164 = vsel %vm2492, %v2956, %v3163
        %3165 = vrot.lane.b32.xlu0 %v2501, 48
        %v3166 = vpop.permute.xlu0 %3165
        %3167 = vrot.lane.b32.xlu0 %v2503, 48
        %v3168 = vpop.permute.xlu0 %3167
        %3169 = vrot.lane.b32.xlu0 %v2505, 48
        %v3170 = vpop.permute.xlu0 %3169
        %3171 = vrot.lane.b32.xlu0 %v2507, 48
        %v3172 = vpop.permute.xlu0 %3171
        %3173 = vrot.lane.b32.xlu0 %v2509, 48
        %v3174 = vpop.permute.xlu0 %3173
        %3175 = vrot.lane.b32.xlu0 %v2511, 48
        %v3176 = vpop.permute.xlu0 %3175
        %3177 = vrot.lane.b32.xlu0 %v2513, 48
        %v3178 = vpop.permute.xlu0 %3177
        %3179 = vrot.lane.b32.xlu0 %v2728, 48
        %v3180 = vpop.permute.xlu0 %3179
        %3181 = vrot.lane.b32.xlu0 %v2957, 48
        %v3182 = vpop.permute.xlu0 %3181
        %3183 = vrot.lane.b32.xlu0 %v3164, 48
        %v3184 = vpop.permute.xlu0 %3183
        %3185 = vrot.lane.b32.xlu0 %v3163, 48
        %v3186 = vpop.permute.xlu0 %3185
        %3198 = vst.msk [vmem:[#allocation4 + $0x10] sm:$0xff] %vm2479, %v3166
        %3199 = vst.msk [vmem:[#allocation4 + $0x30] sm:$0xff] %vm2479, %v3168
        %3200 = vst.msk [vmem:[#allocation4 + $0x50] sm:$0xff] %vm2479, %v3170
        %3201 = vst.msk [vmem:[#allocation4 + $0x70] sm:$0xff] %vm2479, %v3172
        %3202 = vst.msk [vmem:[#allocation4 + $0x90] sm:$0xff] %vm2479, %v3174
        %3203 = vst.msk [vmem:[#allocation4 + $0xb0] sm:$0xff] %vm2479, %v3176
        %3204 = vst.msk [vmem:[#allocation4 + $0xd0] sm:$0xff] %vm2479, %v3178
        %3205 = vst.msk [vmem:[#allocation4 + $0xf0] sm:$0xff] %vm2479, %v3180
        %3206 = vst.msk [vmem:[#allocation4 + $0x110] sm:$0xff] %vm2479, %v3182
        %3207 = vst.msk [vmem:[#allocation4 + $0x130] sm:$0xff] %vm2479, %v3184
        %3208 = vst.msk [vmem:[#allocation4 + $0x150] sm:$0xf] %vm2490, %v3186
        %3210 = vrot.lane.b32.xlu0 %v2256, 64
        %v3211 = vpop.permute.xlu0 %3210
        %3212 = vrot.lane.b32.xlu0 %v2257, 64
        %v3213 = vpop.permute.xlu0 %3212
        %3214 = vrot.lane.b32.xlu0 %v2258, 64
        %v3215 = vpop.permute.xlu0 %3214
        %3216 = vrot.lane.b32.xlu0 %v2259, 64
        %v3217 = vpop.permute.xlu0 %3216
        %3218 = vrot.lane.b32.xlu0 %v2260, 64
        %v3219 = vpop.permute.xlu0 %3218
        %3220 = vrot.lane.b32.xlu0 %v2261, 64
        %v3221 = vpop.permute.xlu0 %3220
        %3222 = vrot.lane.b32.xlu0 %v2262, 64
        %v3223 = vpop.permute.xlu0 %3222
        %3224 = vrot.lane.b32.xlu0 %v2263, 64
        %v3225 = vpop.permute.xlu0 %3224
        %3226 = vrot.lane.b32.xlu0 %v2264, 64
        %v3227 = vpop.permute.xlu0 %3226
        %3228 = vrot.lane.b32.xlu0 %v2265, 64
        %v3229 = vpop.permute.xlu0 %3228
        %3230 = vrot.lane.b32.xlu0 %v2266, 64
        %v3231 = vpop.permute.xlu0 %3230
        %3243 = vst.msk [vmem:[#allocation4 + $0x10] sm:$0xff] %vm2547, %v3211
        %3244 = vst.msk [vmem:[#allocation4 + $0x30] sm:$0xff] %vm2547, %v3213
        %3245 = vst.msk [vmem:[#allocation4 + $0x50] sm:$0xff] %vm2547, %v3215
        %3246 = vst.msk [vmem:[#allocation4 + $0x70] sm:$0xff] %vm2547, %v3217
        %3247 = vst.msk [vmem:[#allocation4 + $0x90] sm:$0xff] %vm2547, %v3219
        %3248 = vst.msk [vmem:[#allocation4 + $0xb0] sm:$0xff] %vm2547, %v3221
        %3249 = vst.msk [vmem:[#allocation4 + $0xd0] sm:$0xff] %vm2547, %v3223
        %3250 = vst.msk [vmem:[#allocation4 + $0xf0] sm:$0xff] %vm2547, %v3225
        %3251 = vst.msk [vmem:[#allocation4 + $0x110] sm:$0xff] %vm2547, %v3227
        %3252 = vst.msk [vmem:[#allocation4 + $0x130] sm:$0xff] %vm2547, %v3229
        %3253 = vst.msk [vmem:[#allocation4 + $0x150] sm:$0xf] %vm2558, %v3231
        %v3254 = vrot.slane %v2266, 1
        %v3255 = vsel %vm1279, %v3047, %v3254
        %3256 = vrot.lane.b32.xlu0 %v2300, 80
        %v3257 = vpop.permute.xlu0 %3256
        %3258 = vrot.lane.b32.xlu0 %v2302, 80
        %v3259 = vpop.permute.xlu0 %3258
        %3260 = vrot.lane.b32.xlu0 %v2304, 80
        %v3261 = vpop.permute.xlu0 %3260
        %3262 = vrot.lane.b32.xlu0 %v2306, 80
        %v3263 = vpop.permute.xlu0 %3262
        %3264 = vrot.lane.b32.xlu0 %v2308, 80
        %v3265 = vpop.permute.xlu0 %3264
        %3266 = vrot.lane.b32.xlu0 %v2310, 80
        %v3267 = vpop.permute.xlu0 %3266
        %3268 = vrot.lane.b32.xlu0 %v2608, 80
        %v3269 = vpop.permute.xlu0 %3268
        %3270 = vrot.lane.b32.xlu0 %v2819, 80
        %v3271 = vpop.permute.xlu0 %3270
        %3272 = vrot.lane.b32.xlu0 %v3048, 80
        %v3273 = vpop.permute.xlu0 %3272
        %3274 = vrot.lane.b32.xlu0 %v3255, 80
        %v3275 = vpop.permute.xlu0 %3274
        %3276 = vrot.lane.b32.xlu0 %v3254, 80
        %v3277 = vpop.permute.xlu0 %3276
        %3289 = vst.msk [vmem:[#allocation4 + $0x10] sm:$0xff] %vm2594, %v3257
        %3290 = vst.msk [vmem:[#allocation4 + $0x30] sm:$0xff] %vm2594, %v3259
        %3291 = vst.msk [vmem:[#allocation4 + $0x50] sm:$0xff] %vm2594, %v3261
        %3292 = vst.msk [vmem:[#allocation4 + $0x70] sm:$0xff] %vm2594, %v3263
        %3293 = vst.msk [vmem:[#allocation4 + $0x90] sm:$0xff] %vm2594, %v3265
        %3294 = vst.msk [vmem:[#allocation4 + $0xb0] sm:$0xff] %vm2594, %v3267
        %3295 = vst.msk [vmem:[#allocation4 + $0xd0] sm:$0xff] %vm2594, %v3269
        %3296 = vst.msk [vmem:[#allocation4 + $0xf0] sm:$0xff] %vm2594, %v3271
        %3297 = vst.msk [vmem:[#allocation4 + $0x110] sm:$0xff] %vm2594, %v3273
        %3298 = vst.msk [vmem:[#allocation4 + $0x130] sm:$0xff] %vm2594, %v3275
        %3299 = vst.msk [vmem:[#allocation4 + $0x150] sm:$0xf] %vm2605, %v3277
        %v3300 = vrot.slane %v2266, 2
        %v3301 = vsel %vm1372, %v3071, %v3300
        %3302 = vrot.lane.b32.xlu0 %v2367, 96
        %v3303 = vpop.permute.xlu0 %3302
        %3304 = vrot.lane.b32.xlu0 %v2369, 96
        %v3305 = vpop.permute.xlu0 %3304
        %3306 = vrot.lane.b32.xlu0 %v2371, 96
        %v3307 = vpop.permute.xlu0 %3306
        %3308 = vrot.lane.b32.xlu0 %v2373, 96
        %v3309 = vpop.permute.xlu0 %3308
        %3310 = vrot.lane.b32.xlu0 %v2375, 96
        %v3311 = vpop.permute.xlu0 %3310
        %3312 = vrot.lane.b32.xlu0 %v2377, 96
        %v3313 = vpop.permute.xlu0 %3312
        %3314 = vrot.lane.b32.xlu0 %v2656, 96
        %v3315 = vpop.permute.xlu0 %3314
        %3316 = vrot.lane.b32.xlu0 %v2865, 96
        %v3317 = vpop.permute.xlu0 %3316
        %3318 = vrot.lane.b32.xlu0 %v3072, 96
        %v3319 = vpop.permute.xlu0 %3318
        %3320 = vrot.lane.b32.xlu0 %v3301, 96
        %v3321 = vpop.permute.xlu0 %3320
        %3322 = vrot.lane.b32.xlu0 %v3300, 96
        %v3323 = vpop.permute.xlu0 %3322
        %3335 = vst.msk [vmem:[#allocation4 + $0x10] sm:$0xff] %vm2642, %v3303
        %3336 = vst.msk [vmem:[#allocation4 + $0x30] sm:$0xff] %vm2642, %v3305
        %3337 = vst.msk [vmem:[#allocation4 + $0x50] sm:$0xff] %vm2642, %v3307
        %3338 = vst.msk [vmem:[#allocation4 + $0x70] sm:$0xff] %vm2642, %v3309
        %3339 = vst.msk [vmem:[#allocation4 + $0x90] sm:$0xff] %vm2642, %v3311
        %3340 = vst.msk [vmem:[#allocation4 + $0xb0] sm:$0xff] %vm2642, %v3313
        %3341 = vst.msk [vmem:[#allocation4 + $0xd0] sm:$0xff] %vm2642, %v3315
        %3342 = vst.msk [vmem:[#allocation4 + $0xf0] sm:$0xff] %vm2642, %v3317
        %3343 = vst.msk [vmem:[#allocation4 + $0x110] sm:$0xff] %vm2642, %v3319
        %3344 = vst.msk [vmem:[#allocation4 + $0x130] sm:$0xff] %vm2642, %v3321
        %3345 = vst.msk [vmem:[#allocation4 + $0x150] sm:$0xf] %vm2653, %v3323
        %v3346 = vrot.slane %v2266, 3
        %v3347 = vsel %vm2424, %v3117, %v3346
        %3348 = vrot.lane.b32.xlu0 %v2435, 112
        %v3349 = vpop.permute.xlu0 %3348
        %3350 = vrot.lane.b32.xlu0 %v2437, 112
        %v3351 = vpop.permute.xlu0 %3350
        %3352 = vrot.lane.b32.xlu0 %v2439, 112
        %v3353 = vpop.permute.xlu0 %3352
        %3354 = vrot.lane.b32.xlu0 %v2441, 112
        %v3355 = vpop.permute.xlu0 %3354
        %3356 = vrot.lane.b32.xlu0 %v2443, 112
        %v3357 = vpop.permute.xlu0 %3356
        %3358 = vrot.lane.b32.xlu0 %v2445, 112
        %v3359 = vpop.permute.xlu0 %3358
        %3360 = vrot.lane.b32.xlu0 %v2704, 112
        %v3361 = vpop.permute.xlu0 %3360
        %3362 = vrot.lane.b32.xlu0 %v2911, 112
        %v3363 = vpop.permute.xlu0 %3362
        %3364 = vrot.lane.b32.xlu0 %v3118, 112
        %v3365 = vpop.permute.xlu0 %3364
        %3366 = vrot.lane.b32.xlu0 %v3347, 112
        %v3367 = vpop.permute.xlu0 %3366
        %3368 = vrot.lane.b32.xlu0 %v3346, 112
        %v3369 = vpop.permute.xlu0 %3368
        %3381 = vst.msk [vmem:[#allocation4 + $0x10] sm:$0xff] %vm2690, %v3349
        %3382 = vst.msk [vmem:[#allocation4 + $0x30] sm:$0xff] %vm2690, %v3351
        %3383 = vst.msk [vmem:[#allocation4 + $0x50] sm:$0xff] %vm2690, %v3353
        %3384 = vst.msk [vmem:[#allocation4 + $0x70] sm:$0xff] %vm2690, %v3355
        %3385 = vst.msk [vmem:[#allocation4 + $0x90] sm:$0xff] %vm2690, %v3357
        %3386 = vst.msk [vmem:[#allocation4 + $0xb0] sm:$0xff] %vm2690, %v3359
        %3387 = vst.msk [vmem:[#allocation4 + $0xd0] sm:$0xff] %vm2690, %v3361
        %3388 = vst.msk [vmem:[#allocation4 + $0xf0] sm:$0xff] %vm2690, %v3363
        %3389 = vst.msk [vmem:[#allocation4 + $0x110] sm:$0xff] %vm2690, %v3365
        %3390 = vst.msk [vmem:[#allocation4 + $0x130] sm:$0xff] %vm2690, %v3367
        %3391 = vst.msk [vmem:[#allocation4 + $0x150] sm:$0xf] %vm2701, %v3369
        %v3392 = vrot.slane %v2266, 4
        %v3393 = vsel %vm2492, %v3163, %v3392
        %3405 = vst.msk [vmem:[#allocation4 + $0x18] sm:$0xff] %vm625, %v2503
        %3406 = vst.msk [vmem:[#allocation4 + $0x38] sm:$0xff] %vm625, %v2505
        %3407 = vst.msk [vmem:[#allocation4 + $0x58] sm:$0xff] %vm625, %v2507
        %3408 = vst.msk [vmem:[#allocation4 + $0x78] sm:$0xff] %vm625, %v2509
        %3409 = vst.msk [vmem:[#allocation4 + $0x98] sm:$0xff] %vm625, %v2511
        %3410 = vst.msk [vmem:[#allocation4 + $0xb8] sm:$0xff] %vm625, %v2513
        %3411 = vst.msk [vmem:[#allocation4 + $0xd8] sm:$0xff] %vm625, %v2728
        %3412 = vst.msk [vmem:[#allocation4 + $0xf8] sm:$0xff] %vm625, %v2957
        %3413 = vst.msk [vmem:[#allocation4 + $0x118] sm:$0xff] %vm625, %v3164
        %3414 = vst.msk [vmem:[#allocation4 + $0x138] sm:$0xff] %vm625, %v3393
        %3415 = vst.msk [vmem:[#allocation4 + $0x158] sm:$0xf] %vm2277, %v3392
        %v3416 = vlaneseq
        %v3417 = vand.u32 %v3416, 127
        %v3418 = vlaneseq
        %v3419 = vshrl.u32 %v3418, 7
        %v3420 = vmul.u32 %v3419, 80
        %vm3421 = vcmp.eq.s32.totalorder %v3417, %v3420
        %v3422 = vsel %vm3421, 1, 0
        %v3423 = vcvt.s32.f32 %v3422
        %v3424 = vld [vmem:[#allocation4] sm:$0xff]
        %v3425 = vld [vmem:[#allocation4 + $0x8] sm:$0xff]
        %v3426 = vld [vmem:[#allocation4 + $0x10] sm:$0xff]
        %v3427 = vld [vmem:[#allocation4 + $0x18] sm:$0xff]
        %v3428 = vld [vmem:[#allocation4 + $0x20] sm:$0xff]
        %v3429 = vld [vmem:[#allocation4 + $0x28] sm:$0xff]
        %v3430 = vld [vmem:[#allocation4 + $0x30] sm:$0xff]
        %v3431 = vld [vmem:[#allocation4 + $0x38] sm:$0xff]
        %v3432 = vld [vmem:[#allocation4 + $0x40] sm:$0xff]
        %v3433 = vld [vmem:[#allocation4 + $0x48] sm:$0xff]
        %v3434 = vld [vmem:[#allocation4 + $0x50] sm:$0xff]
        %v3435 = vld [vmem:[#allocation4 + $0x58] sm:$0xff]
        %v3436 = vld [vmem:[#allocation4 + $0x60] sm:$0xff]
        %v3437 = vld [vmem:[#allocation4 + $0x68] sm:$0xff]
        %v3438 = vld [vmem:[#allocation4 + $0x70] sm:$0xff]
        %v3439 = vld [vmem:[#allocation4 + $0x78] sm:$0xff]
        %v3440 = vld [vmem:[#allocation4 + $0x80] sm:$0xff]
        %v3441 = vld [vmem:[#allocation4 + $0x88] sm:$0xff]
        %v3442 = vld [vmem:[#allocation4 + $0x90] sm:$0xff]
        %v3443 = vld [vmem:[#allocation4 + $0x98] sm:$0xff]
        %v3444 = vld [vmem:[#allocation4 + $0xa0] sm:$0xff]
        %v3445 = vld [vmem:[#allocation4 + $0xa8] sm:$0xff]
        %v3446 = vld [vmem:[#allocation4 + $0xb0] sm:$0xff]
        %v3447 = vld [vmem:[#allocation4 + $0xb8] sm:$0xff]
        %v3448 = vld [vmem:[#allocation4 + $0xc0] sm:$0xff]
        %v3449 = vld [vmem:[#allocation4 + $0xc8] sm:$0xff]
        %v3450 = vld [vmem:[#allocation4 + $0xd0] sm:$0xff]
        %v3451 = vld [vmem:[#allocation4 + $0xd8] sm:$0xff]
        %v3452 = vld [vmem:[#allocation4 + $0xe0] sm:$0xff]
        %v3453 = vld [vmem:[#allocation4 + $0xe8] sm:$0xff]
        %v3454 = vld [vmem:[#allocation4 + $0xf0] sm:$0xff]
        %v3455 = vld [vmem:[#allocation4 + $0xf8] sm:$0xff]
        %v3456 = vld [vmem:[#allocation4 + $0x100] sm:$0xff]
        %v3457 = vld [vmem:[#allocation4 + $0x108] sm:$0xff]
        %v3458 = vld [vmem:[#allocation4 + $0x110] sm:$0xff]
        %v3459 = vld [vmem:[#allocation4 + $0x118] sm:$0xff]
        %v3460 = vld [vmem:[#allocation4 + $0x120] sm:$0xff]
        %v3461 = vld [vmem:[#allocation4 + $0x128] sm:$0xff]
        %v3462 = vld [vmem:[#allocation4 + $0x130] sm:$0xff]
        %v3463 = vld [vmem:[#allocation4 + $0x138] sm:$0xff]
        %v3464 = vld [vmem:[#allocation4 + $0x140] sm:$0xf]
        %v3465 = vld [vmem:[#allocation4 + $0x148] sm:$0xf]
        %v3466 = vld [vmem:[#allocation4 + $0x150] sm:$0xf]
        %v3467 = vld [vmem:[#allocation4 + $0x158] sm:$0xf]
        %vm3468 = vcmask 687104
        %v3470 = vsel %vm3468, %v3423, 0
        %v3473 = vsel %vm2492, %v3464, 0
        %v3476 = vsel %vm2492, %v3465, 0
        %v3479 = vsel %vm2492, %v3466, 0
        %v3482 = vsel %vm2492, %v3467, 0
        %3484 = vmatpush.msra.mxu0 0.0
        %3485 = vmatpush.msra.mxu0 0.0
        %3486 = vmatpush.msra.mxu0 0.0
        %3487 = vmatpush.msra.mxu0 0.0
        %3488 = vmatpush.msra.mxu0 0.0
        %3489 = vmatpush.msra.mxu0 %v3473
        %3490 = vmatpush.msra.mxu0 %v3460
        %3491 = vmatpush.msra.mxu0 %v3456
        %3492 = vmatpush.msra.mxu0 %v3452
        %3493 = vmatpush.msra.mxu0 %v3448
        %3494 = vmatpush.msra.mxu0 %v3444
        %3495 = vmatpush.msra.mxu0 %v3440
        %3496 = vmatpush.msra.mxu0 %v3436
        %3497 = vmatpush.msra.mxu0 %v3432
        %3498 = vmatpush.msra.mxu0 %v3428
        %3499 = vmatpush.msra.mxu0 %v3424
        %3500 = vmatmul.f32.gmra.mxu0 %v3470
        %v3501 = vpop.f32.mrf.mxu0
        %v3502 = vadd.f32 0.0, %v3501
        %3503 = vdwg.mxu0
        %3504 = vmatpush.msra.mxu0 0.0
        %3505 = vmatpush.msra.mxu0 0.0
        %3506 = vmatpush.msra.mxu0 0.0
        %3507 = vmatpush.msra.mxu0 0.0
        %3508 = vmatpush.msra.mxu0 0.0
        %3509 = vmatpush.msra.mxu0 %v3476
        %3510 = vmatpush.msra.mxu0 %v3461
        %3511 = vmatpush.msra.mxu0 %v3457
        %3512 = vmatpush.msra.mxu0 %v3453
        %3513 = vmatpush.msra.mxu0 %v3449
        %3514 = vmatpush.msra.mxu0 %v3445
        %3515 = vmatpush.msra.mxu0 %v3441
        %3516 = vmatpush.msra.mxu0 %v3437
        %3517 = vmatpush.msra.mxu0 %v3433
        %3518 = vmatpush.msra.mxu0 %v3429
        %3519 = vmatpush.msra.mxu0 %v3425
        %3520 = vmatmul.f32.gmra.mxu0 %v3470
        %v3521 = vpop.f32.mrf.mxu0
        %v3522 = vadd.f32 0.0, %v3521
        %3523 = vdwg.mxu0
        %3524 = vmatpush.msra.mxu0 0.0
        %3525 = vmatpush.msra.mxu0 0.0
        %3526 = vmatpush.msra.mxu0 0.0
        %3527 = vmatpush.msra.mxu0 0.0
        %3528 = vmatpush.msra.mxu0 0.0
        %3529 = vmatpush.msra.mxu0 %v3479
        %3530 = vmatpush.msra.mxu0 %v3462
        %3531 = vmatpush.msra.mxu0 %v3458
        %3532 = vmatpush.msra.mxu0 %v3454
        %3533 = vmatpush.msra.mxu0 %v3450
        %3534 = vmatpush.msra.mxu0 %v3446
        %3535 = vmatpush.msra.mxu0 %v3442
        %3536 = vmatpush.msra.mxu0 %v3438
        %3537 = vmatpush.msra.mxu0 %v3434
        %3538 = vmatpush.msra.mxu0 %v3430
        %3539 = vmatpush.msra.mxu0 %v3426
        %3540 = vmatmul.f32.gmra.mxu0 %v3470
        %v3541 = vpop.f32.mrf.mxu0
        %v3542 = vadd.f32 0.0, %v3541
        %3543 = vdwg.mxu0
        %3544 = vmatpush.msra.mxu0 0.0
        %3545 = vmatpush.msra.mxu0 0.0
        %3546 = vmatpush.msra.mxu0 0.0
        %3547 = vmatpush.msra.mxu0 0.0
        %3548 = vmatpush.msra.mxu0 0.0
        %3549 = vmatpush.msra.mxu0 %v3482
        %3550 = vmatpush.msra.mxu0 %v3463
        %3551 = vmatpush.msra.mxu0 %v3459
        %3552 = vmatpush.msra.mxu0 %v3455
        %3553 = vmatpush.msra.mxu0 %v3451
        %3554 = vmatpush.msra.mxu0 %v3447
        %3555 = vmatpush.msra.mxu0 %v3443
        %3556 = vmatpush.msra.mxu0 %v3439
        %3557 = vmatpush.msra.mxu0 %v3435
        %3558 = vmatpush.msra.mxu0 %v3431
        %3559 = vmatpush.msra.mxu0 %v3427
        %3560 = vmatmul.f32.gmra.mxu0 %v3470
        %v3561 = vpop.f32.mrf.mxu0
        %v3562 = vadd.f32 0.0, %v3561
        %3563 = vdwg.mxu0
        %v3564 = vld [vmem:[%s5] sm:$0xff]
        %v3565 = vld [vmem:[%s5 + $0x8] sm:$0xff]
        %v3566 = vld [vmem:[%s5 + $0x10] sm:$0xff]
        %v3567 = vld [vmem:[%s5 + $0x18] sm:$0xff]
        %v3568 = vld [vmem:[%s5 + $0x20] sm:$0xff]
        %v3569 = vld [vmem:[%s5 + $0x28] sm:$0xff]
        %v3570 = vld [vmem:[%s5 + $0x30] sm:$0xff]
        %v3571 = vld [vmem:[%s5 + $0x38] sm:$0xff]
        %v3572 = vld [vmem:[%s5 + $0x40] sm:$0xff]
        %v3573 = vld [vmem:[%s5 + $0x48] sm:$0xff]
        %v3574 = vld [vmem:[%s5 + $0x50] sm:$0xff]
        %v3575 = vld [vmem:[%s5 + $0x58] sm:$0xff]
        %v3576 = vld [vmem:[%s5 + $0x60] sm:$0xff]
        %v3577 = vld [vmem:[%s5 + $0x68] sm:$0xff]
        %v3578 = vld [vmem:[%s5 + $0x70] sm:$0xff]
        %v3579 = vld [vmem:[%s5 + $0x78] sm:$0xff]
        %v3580 = vld [vmem:[%s5 + $0x80] sm:$0xff]
        %v3581 = vld [vmem:[%s5 + $0x88] sm:$0xff]
        %v3582 = vld [vmem:[%s5 + $0x90] sm:$0xff]
        %v3583 = vld [vmem:[%s5 + $0x98] sm:$0xff]
        %v3584 = vld [vmem:[%s5 + $0xa0] sm:$0xff]
        %v3585 = vld [vmem:[%s5 + $0xa8] sm:$0xff]
        %v3586 = vld [vmem:[%s5 + $0xb0] sm:$0xff]
        %v3587 = vld [vmem:[%s5 + $0xb8] sm:$0xff]
        %v3588 = vld [vmem:[%s5 + $0xc0] sm:$0xff]
        %v3589 = vld [vmem:[%s5 + $0xc8] sm:$0xff]
        %v3590 = vld [vmem:[%s5 + $0xd0] sm:$0xff]
        %v3591 = vld [vmem:[%s5 + $0xd8] sm:$0xff]
        %v3592 = vld [vmem:[%s5 + $0xe0] sm:$0xff]
        %v3593 = vld [vmem:[%s5 + $0xe8] sm:$0xff]
        %v3594 = vld [vmem:[%s5 + $0xf0] sm:$0xff]
        %v3595 = vld [vmem:[%s5 + $0xf8] sm:$0xff]
        %v3596 = vld [vmem:[%s5 + $0x100] sm:$0xff]
        %v3597 = vld [vmem:[%s5 + $0x108] sm:$0xff]
        %v3598 = vld [vmem:[%s5 + $0x110] sm:$0xff]
        %v3599 = vld [vmem:[%s5 + $0x118] sm:$0xff]
        %v3600 = vld [vmem:[%s5 + $0x120] sm:$0xff]
        %v3601 = vld [vmem:[%s5 + $0x128] sm:$0xff]
        %v3602 = vld [vmem:[%s5 + $0x130] sm:$0xff]
        %v3603 = vld [vmem:[%s5 + $0x138] sm:$0xff]
        %v3604 = vld [vmem:[%s5 + $0x140] sm:$0xff]
        %v3605 = vld [vmem:[%s5 + $0x148] sm:$0xff]
        %v3606 = vld [vmem:[%s5 + $0x150] sm:$0xff]
        %v3607 = vld [vmem:[%s5 + $0x158] sm:$0xff]
        %v3608 = vld [vmem:[%s5 + $0x160] sm:$0xff]
        %v3609 = vld [vmem:[%s5 + $0x168] sm:$0xff]
        %v3610 = vld [vmem:[%s5 + $0x170] sm:$0xff]
        %v3611 = vld [vmem:[%s5 + $0x178] sm:$0xff]
        %v3612 = vld [vmem:[%s5 + $0x180] sm:$0xff]
        %v3613 = vld [vmem:[%s5 + $0x188] sm:$0xff]
        %v3614 = vld [vmem:[%s6] sm:$0x1]
        %v3616 = vperm.slane %v3614, 0
        %v3619 = vsel %vm625, %v3562, 0
        %3621 = vmatpush.msra.mxu0 %v3579
        %3622 = vmatpush.msra.mxu0 %v3578
        %3623 = vmatpush.msra.mxu0 %v3577
        %3624 = vmatpush.msra.mxu0 %v3576
        %3625 = vmatpush.msra.mxu0 %v3575
        %3626 = vmatpush.msra.mxu0 %v3574
        %3627 = vmatpush.msra.mxu0 %v3573
        %3628 = vmatpush.msra.mxu0 %v3572
        %3629 = vmatpush.msra.mxu0 %v3571
        %3630 = vmatpush.msra.mxu0 %v3570
        %3631 = vmatpush.msra.mxu0 %v3569
        %3632 = vmatpush.msra.mxu0 %v3568
        %3633 = vmatpush.msra.mxu0 %v3567
        %3634 = vmatpush.msra.mxu0 %v3566
        %3635 = vmatpush.msra.mxu0 %v3565
        %3636 = vmatpush.msra.mxu0 %v3564
        %3637 = vmatmul.f32.gmra.mxu0 %v3502
        %v3638 = vpop.f32.mrf.mxu0
        %v3639 = vadd.f32 %v3616, %v3638
        %3640 = vdwg.mxu0
        %3641 = vmatpush.msra.mxu0 %v3595
        %3642 = vmatpush.msra.mxu0 %v3594
        %3643 = vmatpush.msra.mxu0 %v3593
        %3644 = vmatpush.msra.mxu0 %v3592
        %3645 = vmatpush.msra.mxu0 %v3591
        %3646 = vmatpush.msra.mxu0 %v3590
        %3647 = vmatpush.msra.mxu0 %v3589
        %3648 = vmatpush.msra.mxu0 %v3588
        %3649 = vmatpush.msra.mxu0 %v3587
        %3650 = vmatpush.msra.mxu0 %v3586
        %3651 = vmatpush.msra.mxu0 %v3585
        %3652 = vmatpush.msra.mxu0 %v3584
        %3653 = vmatpush.msra.mxu0 %v3583
        %3654 = vmatpush.msra.mxu0 %v3582
        %3655 = vmatpush.msra.mxu0 %v3581
        %3656 = vmatpush.msra.mxu0 %v3580
        %3657 = vmatmul.f32.gmra.mxu0 %v3522
        %v3658 = vpop.f32.mrf.mxu0
        %v3659 = vadd.f32 %v3639, %v3658
        %3660 = vdwg.mxu0
        %3661 = vmatpush.msra.mxu0 %v3611
        %3662 = vmatpush.msra.mxu0 %v3610
        %3663 = vmatpush.msra.mxu0 %v3609
        %3664 = vmatpush.msra.mxu0 %v3608
        %3665 = vmatpush.msra.mxu0 %v3607
        %3666 = vmatpush.msra.mxu0 %v3606
        %3667 = vmatpush.msra.mxu0 %v3605
        %3668 = vmatpush.msra.mxu0 %v3604
        %3669 = vmatpush.msra.mxu0 %v3603
        %3670 = vmatpush.msra.mxu0 %v3602
        %3671 = vmatpush.msra.mxu0 %v3601
        %3672 = vmatpush.msra.mxu0 %v3600
        %3673 = vmatpush.msra.mxu0 %v3599
        %3674 = vmatpush.msra.mxu0 %v3598
        %3675 = vmatpush.msra.mxu0 %v3597
        %3676 = vmatpush.msra.mxu0 %v3596
        %3677 = vmatmul.f32.gmra.mxu0 %v3542
        %v3678 = vpop.f32.mrf.mxu0
        %v3679 = vadd.f32 %v3659, %v3678
        %3680 = vdwg.mxu0
        %3681 = vmatpush.msra.mxu0 0.0
        %3682 = vmatpush.msra.mxu0 0.0
        %3683 = vmatpush.msra.mxu0 0.0
        %3684 = vmatpush.msra.mxu0 0.0
        %3685 = vmatpush.msra.mxu0 0.0
        %3686 = vmatpush.msra.mxu0 0.0
        %3687 = vmatpush.msra.mxu0 0.0
        %3688 = vmatpush.msra.mxu0 0.0
        %3689 = vmatpush.msra.mxu0 0.0
        %3690 = vmatpush.msra.mxu0 0.0
        %3691 = vmatpush.msra.mxu0 0.0
        %3692 = vmatpush.msra.mxu0 0.0
        %3693 = vmatpush.msra.mxu0 0.0
        %3694 = vmatpush.msra.mxu0 0.0
        %3695 = vmatpush.msra.mxu0 %v3613
        %3696 = vmatpush.msra.mxu0 %v3612
        %3697 = vmatmul.f32.gmra.mxu0 %v3619
        %v3698 = vpop.f32.mrf.mxu0
        %v3699 = vadd.f32 %v3679, %v3698
        %3700 = vdwg.mxu0
        %v3701 = vmax.f32 %v3699, 0.0
        %v3702 = vld [vmem:[%s7] sm:$0xff]
        %v3703 = vld [vmem:[%s7 + $0x8] sm:$0xff]
        %v3704 = vld [vmem:[%s7 + $0x10] sm:$0xff]
        %v3705 = vld [vmem:[%s7 + $0x18] sm:$0xff]
        %v3706 = vld [vmem:[%s7 + $0x20] sm:$0xff]
        %v3707 = vld [vmem:[%s7 + $0x28] sm:$0xff]
        %v3708 = vld [vmem:[%s7 + $0x30] sm:$0xff]
        %v3709 = vld [vmem:[%s7 + $0x38] sm:$0xff]
        %v3710 = vld [vmem:[%s7 + $0x40] sm:$0xff]
        %v3711 = vld [vmem:[%s7 + $0x48] sm:$0xff]
        %v3712 = vld [vmem:[%s7 + $0x50] sm:$0xff]
        %v3713 = vld [vmem:[%s7 + $0x58] sm:$0xff]
        %v3714 = vld [vmem:[%s7 + $0x60] sm:$0xff]
        %v3715 = vld [vmem:[%s7 + $0x68] sm:$0xff]
        %v3716 = vld [vmem:[%s7 + $0x70] sm:$0xff]
        %v3717 = vld [vmem:[%s7 + $0x78] sm:$0xff]
        %v3718 = vld [vmem:[%s8] sm:$0x1]
        %v3720 = vperm.slane %v3718, 0
        %3722 = vmatpush.msra.mxu0 %v3717
        %3723 = vmatpush.msra.mxu0 %v3716
        %3724 = vmatpush.msra.mxu0 %v3715
        %3725 = vmatpush.msra.mxu0 %v3714
        %3726 = vmatpush.msra.mxu0 %v3713
        %3727 = vmatpush.msra.mxu0 %v3712
        %3728 = vmatpush.msra.mxu0 %v3711
        %3729 = vmatpush.msra.mxu0 %v3710
        %3730 = vmatpush.msra.mxu0 %v3709
        %3731 = vmatpush.msra.mxu0 %v3708
        %3732 = vmatpush.msra.mxu0 %v3707
        %3733 = vmatpush.msra.mxu0 %v3706
        %3734 = vmatpush.msra.mxu0 %v3705
        %3735 = vmatpush.msra.mxu0 %v3704
        %3736 = vmatpush.msra.mxu0 %v3703
        %3737 = vmatpush.msra.mxu0 %v3702
        %3738 = vmatmul.f32.gmra.mxu0 %v3701
        %v3739 = vpop.f32.mrf.mxu0
        %v3740 = vadd.f32 %v3720, %v3739
        %3741 = vdwg.mxu0
        %v3742 = vmax.f32 %v3740, 0.0
        %v3743 = vld [vmem:[%s9] sm:$0xff]
        %v3744 = vld [vmem:[%s9 + $0x8] sm:$0xff]
        %v3745 = vld [vmem:[%s9 + $0x10] sm:$0xff]
        %v3746 = vld [vmem:[%s9 + $0x18] sm:$0xff]
        %v3747 = vld [vmem:[%s9 + $0x20] sm:$0xff]
        %v3748 = vld [vmem:[%s9 + $0x28] sm:$0xff]
        %v3749 = vld [vmem:[%s9 + $0x30] sm:$0xff]
        %v3750 = vld [vmem:[%s9 + $0x38] sm:$0xff]
        %v3751 = vld [vmem:[%s9 + $0x40] sm:$0xff]
        %v3752 = vld [vmem:[%s9 + $0x48] sm:$0xff]
        %v3753 = vld [vmem:[%s9 + $0x50] sm:$0xff]
        %v3754 = vld [vmem:[%s9 + $0x58] sm:$0xff]
        %v3755 = vld [vmem:[%s9 + $0x60] sm:$0xff]
        %v3756 = vld [vmem:[%s9 + $0x68] sm:$0xff]
        %v3757 = vld [vmem:[%s9 + $0x70] sm:$0xff]
        %v3758 = vld [vmem:[%s9 + $0x78] sm:$0xff]
        %v3759 = vld [vmem:[%s10] sm:$0x1]
        %v3761 = vperm.slane %v3759, 0
        %3763 = vmatpush.msra.mxu0 %v3758
        %3764 = vmatpush.msra.mxu0 %v3757
        %3765 = vmatpush.msra.mxu0 %v3756
        %3766 = vmatpush.msra.mxu0 %v3755
        %3767 = vmatpush.msra.mxu0 %v3754
        %3768 = vmatpush.msra.mxu0 %v3753
        %3769 = vmatpush.msra.mxu0 %v3752
        %3770 = vmatpush.msra.mxu0 %v3751
        %3771 = vmatpush.msra.mxu0 %v3750
        %3772 = vmatpush.msra.mxu0 %v3749
        %3773 = vmatpush.msra.mxu0 %v3748
        %3774 = vmatpush.msra.mxu0 %v3747
        %3775 = vmatpush.msra.mxu0 %v3746
        %3776 = vmatpush.msra.mxu0 %v3745
        %3777 = vmatpush.msra.mxu0 %v3744
        %3778 = vmatpush.msra.mxu0 %v3743
        %3779 = vmatmul.f32.gmra.mxu0 %v3742
        %v3780 = vpop.f32.mrf.mxu0
        %v3781 = vadd.f32 %v3761, %v3780
        %3782 = vdwg.mxu0
        %vm3783 = vcmask 74752
        %v3784 = vsel %vm3783, %v3781, -inf
        %3785 = vmax.xlane.f32.xlu0 %v3784
        %v3786 = vpop.xlane.xlu0 %3785
        %v3787 = vsub.f32 %v3781, %v3786
        %v3788 = vmul.f32 %v3787, 1.442695
        %v3789 = vpow.pop %v3788
        %v3790 = vsel %vm3783, %v3789, 0.0
        %3791 = vadd.xlane.f32.xlu0 %v3790
        %v3792 = vpop.xlane.xlu0 %3791
        %v3793 = vlog2.pop %v3792
        %v3794 = vmul.f32 %v3793, 0.6931472
        %v3795 = vadd.f32 %v3794, %v3786
        %v3796 = vsub.f32 %v3781, %v3795
        %3797 = vst [vmem:[%s380] sm:$0x3] %v3796
        %s3798 = sand.u32 %s269, 1
        %s3799 = scalar_lea.sflag [#allocation6], %s3798
        %s3800 = sand.u32 %s269, 1
        %s3801 = smul.addr %s3800, 2
        %s3802 = scalar_lea.vmem [#allocation5], %s3801
        // Predicated region
        $region65: #{cnn_custom_forward.1} parent=63 // pred_check
          %p3803 = pneg %p279
        $region66: #{cnn_custom_forward.1} parent=63 // pred_check_branch
          %3805 = sbr.rel (%p3803) target = $region68
        $region67: #{cnn_custom_forward.1} parent=63 // pred_region
          %3807 = vsyncadd %s3799, 0
          %s3808 = smul.addr %s25, 2
          %s3809 = scalar_lea.hbm %s11, %s3808
          %s3811 = sshll.u32 %s3802, 4
          %s3812 = int_to_ptr.vmem [resolvable:$true] %s3811
          %s3813 = sshll.u32 %s3809, 4
          %s3814 = int_to_ptr.hbm [resolvable:$true] %s3813
          %3816 = dma.vmem_to_hbm [thread:$0]  %s3812, 32, %s3814, %s3799
        $region68: #{cnn_custom_forward.1} parent=63 // pred_fallthru
          _
      $region64: #{cnn_custom_forward.1} parent=5 // pred_fallthru
        _
      %p3817 = scmp.le.s32.totalorder 2, %s20
      // Predicated region
      $region69: #{cnn_custom_forward.1} parent=5 // pred_check
        %p3818 = pneg %p3817
      $region70: #{cnn_custom_forward.1} parent=5 // pred_check_branch
        %3820 = sbr.rel (%p3818) target = $region72
      $region71: #{cnn_custom_forward.1} parent=5 // pred_region
        %s3821 = ssub.s32 %s20, 2
        // Predicated region
        $region73: #{cnn_custom_forward.1} parent=71 // pred_check
          %p3822 = pneg %p285
        $region74: #{cnn_custom_forward.1} parent=71 // pred_check_branch
          %3824 = sbr.rel (%p3822) target = $region76
        $region75: #{cnn_custom_forward.1} parent=71 // pred_region
          %s3825 = sand.u32 %s270, 1
          %s3826 = scalar_lea.sflag [#allocation6], %s3825
          %s3827 = sand.u32 %s270, 1
          %s3828 = smul.addr %s3827, 2
          %s3829 = scalar_lea.vmem [#allocation5], %s3828
          %3831 = dma.done %s3826, 32
        $region76: #{cnn_custom_forward.1} parent=71 // pred_fallthru
          _
      $region72: #{cnn_custom_forward.1} parent=5 // pred_fallthru
        _
    $region6: #{cnn_custom_forward.1} parent=1 // loop_footer
      %s24 = sadd.s32 1, %s20
    $region7: #{cnn_custom_forward.1} parent=1 // loop_footer_branch
      %19 = sbr.rel target = $region3
    $region8: #{cnn_custom_forward.1} parent=1 // loop_exit
      _
    %3832 = vsyncpa [#allocation6], 1
    %s3833 = scalar_lea.sflag [#allocation6], 1
    %3834 = vsyncpa %s3833, 1

</llo_original>
